<compile_context>
chip_gen: v7x
topology: tpu7x:2x2x1
jax: 0.10.0
libtpu: 0.0.40
codegen_flags: <defaults>
</compile_context>

<pallas_src>
import functools

import jax
import jax.numpy as jnp
import numpy as np
from jax.experimental import pallas as pl
from jax.experimental.pallas import tpu as pltpu

_EPS = 1e-5
_VMEM_LIMIT = 48 * 1024 * 1024        # > default scoped limits, < v7x physical
_VMEM_TILE_BUDGET = 40 * 1024 * 1024  # what the double-buffered tiles may use


def _round_up(x, m):
    return (x + m - 1) // m * m


# ------------------------------ Pallas kernels ------------------------------
def _conv_stats_kernel(xcol_ref, w_ref, conv_ref, stats_ref, *, tm, m_total):
    """One M-tile of the conv matmul + per-tile centered BN statistics.

    xcol_ref: (tm, Kp) bf16; w_ref: (Kp, Cp) bf16; conv_ref: (tm, Cp) bf16;
    stats_ref: (1, 2, Cp) f32 -> row 0 = per-channel tile sum,
                                 row 1 = per-channel sum of squared deviations
                                         from the tile mean.
    """
    acc = jnp.dot(xcol_ref[...], w_ref[...], preferred_element_type=jnp.float32)
    conv_ref[...] = acc.astype(conv_ref.dtype)

    # Mask rows that are pure M-padding; this and the stats math below are
    # free VPU filler under the MXU matmul.
    i = pl.program_id(0)
    row = jax.lax.broadcasted_iota(jnp.int32, acc.shape, 0) + i * tm
    valid = (row < m_total).astype(jnp.float32)
    count = jnp.minimum(tm, m_total - i * tm).astype(jnp.float32)

    s = jnp.sum(acc * valid, axis=0, keepdims=True)          # (1, Cp)
    tile_mean = s / count
    centered = (acc - tile_mean) * valid
    ssd = jnp.sum(centered * centered, axis=0, keepdims=True)

    stats_ref[0, 0:1, :] = s
    stats_ref[0, 1:2, :] = ssd


def _bn_relu_kernel(conv_ref, scale_ref, shift_ref, out_ref):
    """Fused BN-apply + ReLU: load bf16, compute in f32, store lane-dense."""
    x = conv_ref[...].astype(jnp.float32)
    y = jnp.maximum(x * scale_ref[...] + shift_ref[...], 0.0)
    out_ref[...] = y.astype(out_ref.dtype)


# ------------------------------ pallas_call wrappers -------------------------
def _conv_stats(xcol, w, conv_dtype, *, tm, m_total):
    mp, kp = xcol.shape
    cp = w.shape[1]
    nt = mp // tm
    kernel = functools.partial(_conv_stats_kernel, tm=tm, m_total=m_total)
    return pl.pallas_call(
        kernel,
        out_shape=(
            jax.ShapeDtypeStruct((mp, cp), conv_dtype),        # conv output (bf16)
            jax.ShapeDtypeStruct((nt, 2, cp), jnp.float32),    # per-tile stats
        ),
        grid=(nt,),
        in_specs=[
            pl.BlockSpec((tm, kp), lambda i: (i, 0)),
            pl.BlockSpec((kp, cp), lambda i: (0, 0)),
        ],
        out_specs=(
            pl.BlockSpec((tm, cp), lambda i: (i, 0)),
            pl.BlockSpec((1, 2, cp), lambda i: (i, 0, 0)),
        ),
        compiler_params=pltpu.CompilerParams(
            dimension_semantics=("parallel",),
            vmem_limit_bytes=_VMEM_LIMIT,
        ),
    )(xcol, w)


def _bn_relu(conv, scale, shift, out_dtype, *, tm):
    mp, cp = conv.shape
    nt = mp // tm
    return pl.pallas_call(
        _bn_relu_kernel,
        out_shape=jax.ShapeDtypeStruct((mp, cp), out_dtype),
        grid=(nt,),
        in_specs=[
            pl.BlockSpec((tm, cp), lambda i: (i, 0)),
            pl.BlockSpec((1, cp), lambda i: (0, 0)),
            pl.BlockSpec((1, cp), lambda i: (0, 0)),
        ],
        out_specs=pl.BlockSpec((tm, cp), lambda i: (i, 0)),
        compiler_params=pltpu.CompilerParams(
            dimension_semantics=("parallel",),
            vmem_limit_bytes=_VMEM_LIMIT,
        ),
    )(conv, scale, shift)


# ------------------------------ conv block ----------------------------------
def _im2col_3d(x_ndhwc):
    """(N, D, H, W, C) -> lane-dense (N*D*H*W, 27*C), zero spatial padding of 1."""
    N, D, H, W, C = x_ndhwc.shape
    xp = jnp.pad(x_ndhwc, ((0, 0), (1, 1), (1, 1), (1, 1), (0, 0)))
    cols = [
        xp[:, kd:kd + D, kh:kh + H, kw:kw + W, :]
        for kd in range(3) for kh in range(3) for kw in range(3)
    ]
    xcol = jnp.stack(cols, axis=4)                     # (N, D, H, W, 27, C)
    return xcol.reshape(N * D * H * W, 27 * C)


def _pick_tm(m, kp, cp, conv_itemsize):
    """Largest M-tile (multiple of 16, <=1024) whose double-buffered working
    set fits the VMEM budget, while keeping >=2 grid tiles for v7x megacore."""
    fixed = 2 * kp * cp * 2 + 2 * 2 * cp * 4           # bf16 weights + stats (x2 buf)
    tm = min(1024, _round_up(max(m // 2, 16), 16))
    while tm > 16 and fixed + 2 * tm * (kp * 2 + cp * conv_itemsize) > _VMEM_TILE_BUDGET:
        tm //= 2
    return _round_up(max(tm, 16), 16)


def _conv_block(x_ndhwc, w_oidhw, gamma, beta, out_dtype):
    """Conv3d(k=3, s=1, p=1, bias folded away) + BN3d(train stats) + ReLU."""
    N, D, H, W, Cin = x_ndhwc.shape
    Cout = w_oidhw.shape[0]
    M = N * D * H * W
    K = 27 * Cin
    Kp = _round_up(K, 128)                 # lane-dense contraction dim
    Cp = _round_up(Cout, 128)              # lane-dense output channels
    tm = _pick_tm(M, Kp, Cp, 2)            # bf16 conv intermediate
    Mp = _round_up(M, tm)
    nt = Mp // tm

    # bf16 HBM operands (the MXU rounds to bf16 anyway); zero padding keeps the
    # matmul and the BN statistics exact over the true M x Cout region.
    xcol = jnp.pad(_im2col_3d(x_ndhwc.astype(jnp.bfloat16)),
                   ((0, Mp - M), (0, Kp - K)))
    wk = jnp.transpose(w_oidhw, (2, 3, 4, 1, 0)).reshape(K, Cout)
    wk = jnp.pad(wk.astype(jnp.bfloat16), ((0, Kp - K), (0, Cp - Cout)))
    # NOTE: padded gamma must stay 0 so scale=0 neutralizes the 1/sqrt(eps)
    # inv_std of the zero-variance padded channels.
    gp = jnp.pad(gamma, (0, Cp - Cout)).reshape(1, Cp)
    bp = jnp.pad(beta, (0, Cp - Cout)).reshape(1, Cp)

    # Pass 1: conv matmul (bf16 in/out, f32 acc) + per-tile centered stats.
    conv, stats = _conv_stats(xcol, wk, jnp.bfloat16, tm=tm, m_total=M)

    # Tiny XLA finalize: Chan combination of per-tile centered statistics ->
    # per-channel mean / biased variance over the true M voxels, folded into
    # fused scale & shift vectors for the apply pass.
    counts = jnp.asarray([min(tm, M - t * tm) for t in range(nt)],
                         jnp.float32).reshape(nt, 1)
    s_t = stats[:, 0, :]                                 # (nt, Cp)
    ssd_t = stats[:, 1, :]                               # (nt, Cp)
    mean = jnp.sum(s_t, axis=0, keepdims=True) / M
    mu_t = s_t / counts
    ss = (jnp.sum(ssd_t, axis=0, keepdims=True)
          + jnp.sum(counts * (mu_t - mean) ** 2, axis=0, keepdims=True))
    var = jnp.maximum(ss / M, 0.0)
    inv_std = jax.lax.rsqrt(var + _EPS)
    scale = gp * inv_std
    shift = bp - mean * scale

    # Pass 2: fused BN-apply + ReLU, lane-dense stores.
    y = _bn_relu(conv, scale, shift, out_dtype, tm=tm)
    return y[:M, :Cout].reshape(N, D, H, W, Cout)


@jax.jit
def double_conv_forward(x, params):
    """x: (N, C_in, D, H, W) float32, PyTorch NCDHW convention."""
    xt = jnp.transpose(x, (0, 2, 3, 4, 1))                       # -> NDHWC
    # Conv biases intentionally unused: exactly cancelled by training-mode BN.
    h = _conv_block(xt, params["w1"], params["g1"], params["be1"],
                    jnp.bfloat16)                                # inner activation
    y = _conv_block(h, params["w2"], params["g2"], params["be2"],
                    jnp.float32)                                 # final output
    return jnp.transpose(y, (0, 4, 1, 2, 3))                     # -> NCDHW


# ----------------------------- pure-JAX reference -----------------------------
def _reference_forward(x, params):
    def conv3d(x, w, b):
        y = jax.lax.conv_general_dilated(
            x, w, window_strides=(1, 1, 1), padding=((1, 1),) * 3,
            dimension_numbers=("NCDHW", "OIDHW", "NCDHW"),
        )
        return y + b[None, :, None, None, None]

    def bn_relu(x, g, be):
        mean = x.mean(axis=(0, 2, 3, 4), keepdims=True)
        var = ((x - mean) ** 2).mean(axis=(0, 2, 3, 4), keepdims=True)
        y = (x - mean) * jax.lax.rsqrt(var + _EPS)
        y = y * g[None, :, None, None, None] + be[None, :, None, None, None]
        return jnp.maximum(y, 0.0)

    h = bn_relu(conv3d(x, params["w1"], params["b1"]), params["g1"], params["be1"])
    return bn_relu(conv3d(h, params["w2"], params["b2"]), params["g2"], params["be2"])


def make_params(key, in_ch, out_ch):
    channels = out_ch // 2 if in_ch <= out_ch else in_ch // 2
    ks = jax.random.split(key, 8)
    return {
        "w1": jax.random.normal(ks[0], (channels, in_ch, 3, 3, 3), jnp.float32) * 0.1,
        "b1": jax.random.normal(ks[1], (channels,), jnp.float32) * 0.05,
        "g1": 1.0 + jax.random.normal(ks[2], (channels,), jnp.float32) * 0.1,
        "be1": jax.random.normal(ks[3], (channels,), jnp.float32) * 0.1,
        "w2": jax.random.normal(ks[4], (out_ch, channels, 3, 3, 3), jnp.float32) * 0.1,
        "b2": jax.random.normal(ks[5], (out_ch,), jnp.float32) * 0.05,
        "g2": 1.0 + jax.random.normal(ks[6], (out_ch,), jnp.float32) * 0.1,
        "be2": jax.random.normal(ks[7], (out_ch,), jnp.float32) * 0.1,
    }


if __name__ == "__main__":
    key = jax.random.PRNGKey(0)
    k_x, k_p = jax.random.split(key)

    N, in_ch, out_ch, D, H, W = 2, 4, 8, 8, 8, 8
    x = jax.random.normal(k_x, (N, in_ch, D, H, W), jnp.float32)
    params = make_params(k_p, in_ch, out_ch)

    out = jax.block_until_ready(double_conv_forward(x, params))
    assert out.shape == (N, out_ch, D, H, W), out.shape

    ref = jax.block_until_ready(_reference_forward(x, params))
    # Tolerance accounts for bf16 MXU operands (same as default precision) plus
    # the bf16 HBM storage of the conv intermediate / inner activation; BN
    # renormalizes so errors stay well below a few 1e-2 absolute.
    np.testing.assert_allclose(np.asarray(out), np.asarray(ref), rtol=3e-2, atol=3e-2)

    print("KERNEL_OK")
</pallas_src>

<mosaic_0001>
module attributes {stable_mosaic.version = 11 : i64} {
  func.func @_conv_stats_kernel(%arg0: i32, %arg1: memref<512x128xbf16, #tpu.memory_space<vmem>>, %arg2: memref<128x128xbf16, #tpu.memory_space<vmem>>, %arg3: memref<512x128xbf16, #tpu.memory_space<vmem>>, %arg4: memref<1x2x128xf32, #tpu.memory_space<vmem>>) attributes {dimension_semantics = [#tpu.dimension_semantics<parallel>], iteration_bounds = array<i64: 2>, scalar_prefetch = 0 : i64, scratch_operands = 0 : i64, tpu.core_type = #tpu.core_type<tc>, window_params = [{transform_indices = @transform_0, window_bounds = array<i64: 512, 128>}, {pipeline_mode = #tpu.pipeline_mode<synchronous>, transform_indices = @transform_1, window_bounds = array<i64: 128, 128>}, {transform_indices = @transform_2, window_bounds = array<i64: 512, 128>}, {transform_indices = @transform_3, window_bounds = array<i64: 1, 2, 128>}]} {
    %c0 = arith.constant 0 : index
    %c0_0 = arith.constant 0 : index
    %0 = vector.load %arg1[%c0, %c0_0] : memref<512x128xbf16, #tpu.memory_space<vmem>>, vector<512x128xbf16>
    %c0_1 = arith.constant 0 : index
    %c0_2 = arith.constant 0 : index
    %1 = vector.load %arg2[%c0_1, %c0_2] : memref<128x128xbf16, #tpu.memory_space<vmem>>, vector<128x128xbf16>
    %cst = arith.constant dense<0.000000e+00> : vector<512x128xf32>
    %2 = tpu.matmul %0, %1, %cst {dimension_numbers = #tpu.dot_dimension_numbers<[1], [0], [0], [1], [0, 0, 1, 1], [], []>} : vector<512x128xbf16>, vector<128x128xbf16>, vector<512x128xf32> -> vector<512x128xf32>
    %3 = arith.truncf %2 : vector<512x128xf32> to vector<512x128xbf16>
    %c0_3 = arith.constant 0 : index
    %c0_4 = arith.constant 0 : index
    %4 = vector.load %arg3[%c0_3, %c0_4] : memref<512x128xbf16, #tpu.memory_space<vmem>>, vector<512x128xbf16>
    tpu.vector_store %arg3[%c0_3, %c0_4], %3 {strides = array<i32>} : memref<512x128xbf16, #tpu.memory_space<vmem>>, vector<512x128xbf16>,
    %5 = tpu.iota {dimensions = array<i32: 0>} : vector<512x128xi32>
    %c512_i32 = arith.constant 512 : i32
    %6 = arith.muli %arg0, %c512_i32 : i32
    %7 = vector.broadcast %6 : i32 to vector<512x128xi32>
    %8 = arith.addi %5, %7 : vector<512x128xi32>
    %c1024_i32 = arith.constant 1024 : i32
    %9 = vector.broadcast %c1024_i32 : i32 to vector<512x128xi32>
    %10 = arith.cmpi slt, %8, %9 : vector<512x128xi32>
    %11 = arith.extui %10 : vector<512x128xi1> to vector<512x128xi32>
    %12 = arith.sitofp %11 : vector<512x128xi32> to vector<512x128xf32>
    %c512_i32_5 = arith.constant 512 : i32
    %13 = arith.muli %arg0, %c512_i32_5 : i32
    %c1024_i32_6 = arith.constant 1024 : i32
    %14 = arith.subi %c1024_i32_6, %13 : i32
    %c512_i32_7 = arith.constant 512 : i32
    %15 = arith.minsi %c512_i32_7, %14 : i32
    %16 = arith.sitofp %15 : i32 to f32
    %17 = arith.mulf %2, %12 : vector<512x128xf32>
    %cst_8 = arith.constant dense<0.000000e+00> : vector<128xf32>
    %18 = vector.multi_reduction <add>, %17, %cst_8 [0] : vector<512x128xf32> to vector<128xf32>
    %19 = vector.shape_cast %18 : vector<128xf32> to vector<1x128xf32>
    %20 = vector.broadcast %16 : f32 to vector<1x128xf32>
    %21 = arith.divf %19, %20 : vector<1x128xf32>
    %22 = vector.broadcast %21 : vector<1x128xf32> to vector<512x128xf32>
    %23 = arith.subf %2, %22 : vector<512x128xf32>
    %24 = arith.mulf %23, %12 : vector<512x128xf32>
    %25 = arith.mulf %24, %24 : vector<512x128xf32>
    %cst_9 = arith.constant dense<0.000000e+00> : vector<128xf32>
    %26 = vector.multi_reduction <add>, %25, %cst_9 [0] : vector<512x128xf32> to vector<128xf32>
    %27 = vector.shape_cast %26 : vector<128xf32> to vector<1x128xf32>
    %c0_10 = arith.constant 0 : index
    %c0_11 = arith.constant 0 : index
    %c0_12 = arith.constant 0 : index
    %28 = vector.load %arg4[%c0_10, %c0_11, %c0_12] : memref<1x2x128xf32, #tpu.memory_space<vmem>>, vector<1x1x128xf32>
    %29 = vector.shape_cast %28 : vector<1x1x128xf32> to vector<1x128xf32>
    %30 = vector.shape_cast %19 : vector<1x128xf32> to vector<1x1x128xf32>
    tpu.vector_store %arg4[%c0_10, %c0_11, %c0_12], %30 {strides = array<i32>} : memref<1x2x128xf32, #tpu.memory_space<vmem>>, vector<1x1x128xf32>,
    %c0_13 = arith.constant 0 : index
    %c1 = arith.constant 1 : index
    %c0_14 = arith.constant 0 : index
    %31 = vector.load %arg4[%c0_13, %c1, %c0_14] : memref<1x2x128xf32, #tpu.memory_space<vmem>>, vector<1x1x128xf32>
    %32 = vector.shape_cast %31 : vector<1x1x128xf32> to vector<1x128xf32>
    %33 = vector.shape_cast %27 : vector<1x128xf32> to vector<1x1x128xf32>
    tpu.vector_store %arg4[%c0_13, %c1, %c0_14], %33 {strides = array<i32>} : memref<1x2x128xf32, #tpu.memory_space<vmem>>, vector<1x1x128xf32>,
    return
  }
  func.func @transform_0(%arg0: i32) -> (i32, i32) {
    %c0_i32 = arith.constant 0 : i32
    %c0_i32_0 = arith.constant 0 : i32
    return %arg0, %c0_i32 : i32, i32
  }
  func.func @transform_1(%arg0: i32) -> (i32, i32) {
    %c0_i32 = arith.constant 0 : i32
    %c0_i32_0 = arith.constant 0 : i32
    %c0_i32_1 = arith.constant 0 : i32
    return %c0_i32, %c0_i32_0 : i32, i32
  }
  func.func @transform_2(%arg0: i32) -> (i32, i32) {
    %c0_i32 = arith.constant 0 : i32
    %c0_i32_0 = arith.constant 0 : i32
    return %arg0, %c0_i32 : i32, i32
  }
  func.func @transform_3(%arg0: i32) -> (i32, i32, i32) {
    %c0_i32 = arith.constant 0 : i32
    %c0_i32_0 = arith.constant 0 : i32
    %c0_i32_1 = arith.constant 0 : i32
    return %arg0, %c0_i32, %c0_i32_0 : i32, i32, i32
  }
}

module attributes {stable_mosaic.version = 11 : i64} {
  func.func @_bn_relu_kernel(%arg0: i32, %arg1: memref<512x128xbf16, #tpu.memory_space<vmem>>, %arg2: memref<1x128xf32, #tpu.memory_space<vmem>>, %arg3: memref<1x128xf32, #tpu.memory_space<vmem>>, %arg4: memref<512x128xbf16, #tpu.memory_space<vmem>>) attributes {dimension_semantics = [#tpu.dimension_semantics<parallel>], iteration_bounds = array<i64: 2>, scalar_prefetch = 0 : i64, scratch_operands = 0 : i64, tpu.core_type = #tpu.core_type<tc>, window_params = [{transform_indices = @transform_0, window_bounds = array<i64: 512, 128>}, {pipeline_mode = #tpu.pipeline_mode<synchronous>, transform_indices = @transform_1, window_bounds = array<i64: 1, 128>}, {pipeline_mode = #tpu.pipeline_mode<synchronous>, transform_indices = @transform_2, window_bounds = array<i64: 1, 128>}, {transform_indices = @transform_3, window_bounds = array<i64: 512, 128>}]} {
    %c0 = arith.constant 0 : index
    %c0_0 = arith.constant 0 : index
    %0 = vector.load %arg1[%c0, %c0_0] : memref<512x128xbf16, #tpu.memory_space<vmem>>, vector<512x128xbf16>
    %1 = arith.extf %0 : vector<512x128xbf16> to vector<512x128xf32>
    %c0_1 = arith.constant 0 : index
    %c0_2 = arith.constant 0 : index
    %2 = vector.load %arg2[%c0_1, %c0_2] : memref<1x128xf32, #tpu.memory_space<vmem>>, vector<1x128xf32>
    %3 = vector.broadcast %2 : vector<1x128xf32> to vector<512x128xf32>
    %4 = arith.mulf %1, %3 : vector<512x128xf32>
    %c0_3 = arith.constant 0 : index
    %c0_4 = arith.constant 0 : index
    %5 = vector.load %arg3[%c0_3, %c0_4] : memref<1x128xf32, #tpu.memory_space<vmem>>, vector<1x128xf32>
    %6 = vector.broadcast %5 : vector<1x128xf32> to vector<512x128xf32>
    %7 = arith.addf %4, %6 : vector<512x128xf32>
    %cst = arith.constant 0.000000e+00 : f32
    %8 = vector.broadcast %cst : f32 to vector<512x128xf32>
    %9 = arith.maximumf %7, %8 : vector<512x128xf32>
    %10 = arith.truncf %9 : vector<512x128xf32> to vector<512x128xbf16>
    %c0_5 = arith.constant 0 : index
    %c0_6 = arith.constant 0 : index
    %11 = vector.load %arg4[%c0_5, %c0_6] : memref<512x128xbf16, #tpu.memory_space<vmem>>, vector<512x128xbf16>
    tpu.vector_store %arg4[%c0_5, %c0_6], %10 {strides = array<i32>} : memref<512x128xbf16, #tpu.memory_space<vmem>>, vector<512x128xbf16>,
    return
  }
  func.func @transform_0(%arg0: i32) -> (i32, i32) {
    %c0_i32 = arith.constant 0 : i32
    %c0_i32_0 = arith.constant 0 : i32
    return %arg0, %c0_i32 : i32, i32
  }
  func.func @transform_1(%arg0: i32) -> (i32, i32) {
    %c0_i32 = arith.constant 0 : i32
    %c0_i32_0 = arith.constant 0 : i32
    %c0_i32_1 = arith.constant 0 : i32
    return %c0_i32, %c0_i32_0 : i32, i32
  }
  func.func @transform_2(%arg0: i32) -> (i32, i32) {
    %c0_i32 = arith.constant 0 : i32
    %c0_i32_0 = arith.constant 0 : i32
    %c0_i32_1 = arith.constant 0 : i32
    return %c0_i32, %c0_i32_0 : i32, i32
  }
  func.func @transform_3(%arg0: i32) -> (i32, i32) {
    %c0_i32 = arith.constant 0 : i32
    %c0_i32_0 = arith.constant 0 : i32
    return %arg0, %c0_i32 : i32, i32
  }
}

module attributes {stable_mosaic.version = 11 : i64} {
  func.func @_bn_relu_kernel(%arg0: i32, %arg1: memref<512x128xbf16, #tpu.memory_space<vmem>>, %arg2: memref<1x128xf32, #tpu.memory_space<vmem>>, %arg3: memref<1x128xf32, #tpu.memory_space<vmem>>, %arg4: memref<512x128xf32, #tpu.memory_space<vmem>>) attributes {dimension_semantics = [#tpu.dimension_semantics<parallel>], iteration_bounds = array<i64: 2>, scalar_prefetch = 0 : i64, scratch_operands = 0 : i64, tpu.core_type = #tpu.core_type<tc>, window_params = [{transform_indices = @transform_0, window_bounds = array<i64: 512, 128>}, {pipeline_mode = #tpu.pipeline_mode<synchronous>, transform_indices = @transform_1, window_bounds = array<i64: 1, 128>}, {pipeline_mode = #tpu.pipeline_mode<synchronous>, transform_indices = @transform_2, window_bounds = array<i64: 1, 128>}, {transform_indices = @transform_3, window_bounds = array<i64: 512, 128>}]} {
    %c0 = arith.constant 0 : index
    %c0_0 = arith.constant 0 : index
    %0 = vector.load %arg1[%c0, %c0_0] : memref<512x128xbf16, #tpu.memory_space<vmem>>, vector<512x128xbf16>
    %1 = arith.extf %0 : vector<512x128xbf16> to vector<512x128xf32>
    %c0_1 = arith.constant 0 : index
    %c0_2 = arith.constant 0 : index
    %2 = vector.load %arg2[%c0_1, %c0_2] : memref<1x128xf32, #tpu.memory_space<vmem>>, vector<1x128xf32>
    %3 = vector.broadcast %2 : vector<1x128xf32> to vector<512x128xf32>
    %4 = arith.mulf %1, %3 : vector<512x128xf32>
    %c0_3 = arith.constant 0 : index
    %c0_4 = arith.constant 0 : index
    %5 = vector.load %arg3[%c0_3, %c0_4] : memref<1x128xf32, #tpu.memory_space<vmem>>, vector<1x128xf32>
    %6 = vector.broadcast %5 : vector<1x128xf32> to vector<512x128xf32>
    %7 = arith.addf %4, %6 : vector<512x128xf32>
    %cst = arith.constant 0.000000e+00 : f32
    %8 = vector.broadcast %cst : f32 to vector<512x128xf32>
    %9 = arith.maximumf %7, %8 : vector<512x128xf32>
    %c0_5 = arith.constant 0 : index
    %c0_6 = arith.constant 0 : index
    %10 = vector.load %arg4[%c0_5, %c0_6] : memref<512x128xf32, #tpu.memory_space<vmem>>, vector<512x128xf32>
    tpu.vector_store %arg4[%c0_5, %c0_6], %9 {strides = array<i32>} : memref<512x128xf32, #tpu.memory_space<vmem>>, vector<512x128xf32>,
    return
  }
  func.func @transform_0(%arg0: i32) -> (i32, i32) {
    %c0_i32 = arith.constant 0 : i32
    %c0_i32_0 = arith.constant 0 : i32
    return %arg0, %c0_i32 : i32, i32
  }
  func.func @transform_1(%arg0: i32) -> (i32, i32) {
    %c0_i32 = arith.constant 0 : i32
    %c0_i32_0 = arith.constant 0 : i32
    %c0_i32_1 = arith.constant 0 : i32
    return %c0_i32, %c0_i32_0 : i32, i32
  }
  func.func @transform_2(%arg0: i32) -> (i32, i32) {
    %c0_i32 = arith.constant 0 : i32
    %c0_i32_0 = arith.constant 0 : i32
    %c0_i32_1 = arith.constant 0 : i32
    return %c0_i32, %c0_i32_0 : i32, i32
  }
  func.func @transform_3(%arg0: i32) -> (i32, i32) {
    %c0_i32 = arith.constant 0 : i32
    %c0_i32_0 = arith.constant 0 : i32
    return %arg0, %c0_i32 : i32, i32
  }
}

</mosaic_0001>

<llo_original>
// kernel: double_conv_forward.5
$region0: #{double_conv_forward.5}
  #allocation0 [shape = 'u32[]', space=smem, size = 0x4, offset = 0x4, fixed_abs, tag = 'smem constant byte address 0x4 - core index']
  #allocation1 [shape = 'u32[144,128]{1,0:T(1,128)}', space=vmem, size = 0x12000, scoped, tag = 'internal scratch']
  %s0 = inlined_call_operand.vmem [shape: bf16[1024,128], index: 0, kind: input, shape index: {}]
  %s1 = inlined_call_operand.vmem [shape: f32[1,128], index: 1, kind: input, shape index: {}]
  %s2 = inlined_call_operand.vmem [shape: f32[1,128], index: 2, kind: input, shape index: {}]
  %s3 = inlined_call_operand.vmem [shape: bf16[1024,128], index: 3, kind: output, shape index: {}]
  %s4 = sld [smem:[#allocation0]]
  $region45: #{double_conv_forward.5} parent=0
    _
  %s6 = ssub.s32 1, %s4
  %s7 = scalar_select 0, %s6, %s4
  loop: start=0, step=1, limit=4
  $region2: #{double_conv_forward.5} parent=0 // loop_pre_header
    _
  $region3: #{double_conv_forward.5} parent=0 // loop_header
    %s9 = sphi 0, %s13
    %p10 = scmp.ge.s32.totalorder %s9, 4
    %s19 = sphi 0, %s21
    %s22 = sphi 0, %s19
    %s23 = sphi 0, %s22
    %s39 = sphi 0, %s23
    %s43 = sphi 0, %s43
    %s45 = sphi 0, %s43
    %s46 = sphi 0, %s45
    %s60 = sphi 0, %s46
    %s64 = sphi 0, %s64
    %s66 = sphi 0, %s64
    %s67 = sphi 0, %s66
    %s81 = sphi 0, %s67
    %s87 = sphi 0, %s89
    %s90 = sphi 0, %s87
    %s91 = sphi 0, %s90
    %s107 = sphi 0, %s91
  $region4: #{double_conv_forward.5} parent=0 // loop_header_branch
    %12 = sbr.rel (%p10) target = $region8
  $region5: #{double_conv_forward.5} parent=0 // loop_body
    %s14 = ssub.s32 %s9, 1
    %s15 = ssub.s32 %s9, 2
    %s16 = sadd.s32 %s9, 1
    %s17 = ssub.s32 %s9, %s16
    %p18 = scmp.eq.s32.totalorder %s17, 0
    %s20 = sadd.s32 %s19, 1
    %s21 = scalar_select %p18, %s19, %s20
    %p24 = pneg %p18
    %p25 = scmp.eq.s32.totalorder %s9, 1
    %p26 = por %p24, %p25
    %p27 = scmp.ne.s32.totalorder %s19, %s22
    %p28 = scmp.eq.s32.totalorder %s9, 0
    %p29 = por %p27, %p28
    %p30 = scmp.ne.s32.totalorder %s19, %s22
    %p31 = scmp.eq.s32.totalorder %s14, 1
    %p32 = por %p30, %p31
    %p33 = scmp.ne.s32.totalorder %s22, %s23
    %p34 = scmp.eq.s32.totalorder %s14, 0
    %p35 = por %p33, %p34
    %p36 = scmp.ne.s32.totalorder %s22, %s23
    %p37 = scmp.eq.s32.totalorder %s15, 1
    %p38 = por %p36, %p37
    %p40 = scmp.ne.s32.totalorder %s23, %s39
    %p41 = scmp.eq.s32.totalorder %s15, 0
    %p42 = por %p40, %p41
    %s44 = sadd.s32 %s43, 1
    %p47 = scmp.eq.s32.totalorder %s9, 1
    %p48 = scmp.ne.s32.totalorder %s43, %s45
    %p49 = scmp.eq.s32.totalorder %s9, 0
    %p50 = por %p48, %p49
    %p51 = scmp.ne.s32.totalorder %s43, %s45
    %p52 = scmp.eq.s32.totalorder %s14, 1
    %p53 = por %p51, %p52
    %p54 = scmp.ne.s32.totalorder %s45, %s46
    %p55 = scmp.eq.s32.totalorder %s14, 0
    %p56 = por %p54, %p55
    %p57 = scmp.ne.s32.totalorder %s45, %s46
    %p58 = scmp.eq.s32.totalorder %s15, 1
    %p59 = por %p57, %p58
    %p61 = scmp.ne.s32.totalorder %s46, %s60
    %p62 = scmp.eq.s32.totalorder %s15, 0
    %p63 = por %p61, %p62
    %s65 = sadd.s32 %s64, 1
    %p68 = scmp.eq.s32.totalorder %s9, 1
    %p69 = scmp.ne.s32.totalorder %s64, %s66
    %p70 = scmp.eq.s32.totalorder %s9, 0
    %p71 = por %p69, %p70
    %p72 = scmp.ne.s32.totalorder %s64, %s66
    %p73 = scmp.eq.s32.totalorder %s14, 1
    %p74 = por %p72, %p73
    %p75 = scmp.ne.s32.totalorder %s66, %s67
    %p76 = scmp.eq.s32.totalorder %s14, 0
    %p77 = por %p75, %p76
    %p78 = scmp.ne.s32.totalorder %s66, %s67
    %p79 = scmp.eq.s32.totalorder %s15, 1
    %p80 = por %p78, %p79
    %p82 = scmp.ne.s32.totalorder %s67, %s81
    %p83 = scmp.eq.s32.totalorder %s15, 0
    %p84 = por %p82, %p83
    %s85 = ssub.s32 %s9, %s16
    %p86 = scmp.eq.s32.totalorder %s85, 0
    %s88 = sadd.s32 %s87, 1
    %s89 = scalar_select %p86, %s87, %s88
    %p92 = pneg %p86
    %p93 = scmp.eq.s32.totalorder %s9, 1
    %p94 = por %p92, %p93
    %p95 = scmp.ne.s32.totalorder %s87, %s90
    %p96 = scmp.eq.s32.totalorder %s9, 0
    %p97 = por %p95, %p96
    %p98 = scmp.ne.s32.totalorder %s87, %s90
    %p99 = scmp.eq.s32.totalorder %s14, 1
    %p100 = por %p98, %p99
    %p101 = scmp.ne.s32.totalorder %s90, %s91
    %p102 = scmp.eq.s32.totalorder %s14, 0
    %p103 = por %p101, %p102
    %p104 = scmp.ne.s32.totalorder %s90, %s91
    %p105 = scmp.eq.s32.totalorder %s15, 1
    %p106 = por %p104, %p105
    %p108 = scmp.ne.s32.totalorder %s91, %s107
    %p109 = scmp.eq.s32.totalorder %s15, 0
    %p110 = por %p108, %p109
    %p111 = scmp.le.s32.totalorder 1, %s9
    %p112 = scmp.lt.s32.totalorder %s9, 3
    %p113 = pnand %p111, %p112
    %p114 = pneg %p113
    // Predicated region
    $region9: #{double_conv_forward.5} parent=5 // pred_check
      _
    $region10: #{double_conv_forward.5} parent=5 // pred_check_branch
      %116 = sbr.rel (%p113) target = $region12
    $region11: #{double_conv_forward.5} parent=5 // pred_region
      %s117 = ssub.s32 %s9, 1
      // Predicated region
      $region13: #{double_conv_forward.5} parent=11 // pred_check
        %p118 = pneg %p56
      $region14: #{double_conv_forward.5} parent=11 // pred_check_branch
        %120 = sbr.rel (%p118) target = $region16
      $region15: #{double_conv_forward.5} parent=11 // pred_region
        _
      $region16: #{double_conv_forward.5} parent=11 // pred_fallthru
        _
      // Predicated region
      $region17: #{double_conv_forward.5} parent=11 // pred_check
        %p121 = pneg %p77
      $region18: #{double_conv_forward.5} parent=11 // pred_check_branch
        %123 = sbr.rel (%p121) target = $region20
      $region19: #{double_conv_forward.5} parent=11 // pred_region
        _
      $region20: #{double_conv_forward.5} parent=11 // pred_fallthru
        _
    $region12: #{double_conv_forward.5} parent=5 // pred_fallthru
      _
    %p124 = scmp.lt.s32.totalorder %s9, 2
    // Predicated region
    $region21: #{double_conv_forward.5} parent=5 // pred_check
      %p125 = pneg %p124
    $region22: #{double_conv_forward.5} parent=5 // pred_check_branch
      %127 = sbr.rel (%p125) target = $region24
    $region23: #{double_conv_forward.5} parent=5 // pred_region
      // Predicated region
      $region25: #{double_conv_forward.5} parent=23 // pred_check
        %p128 = pneg %p29
      $region26: #{double_conv_forward.5} parent=23 // pred_check_branch
        %130 = sbr.rel (%p128) target = $region28
      $region27: #{double_conv_forward.5} parent=23 // pred_region
        %s131 = smul.u32 64, %s9
        %p132 = scmp.lt.s32.totalorder %s131, 127
        %s133 = scalar_select %p132, %s131, 127
        %s134 = smul.addr %s133, 4
        %s135 = scalar_lea.vmem %s0, %s134
        %s136 = smul.u32 64, %s9
      $region28: #{double_conv_forward.5} parent=23 // pred_fallthru
        _
    $region24: #{double_conv_forward.5} parent=5 // pred_fallthru
      _
    %p137 = scmp.le.s32.totalorder 1, %s9
    %p138 = scmp.lt.s32.totalorder %s9, 3
    %p139 = pnand %p137, %p138
    %p140 = pneg %p139
    // Predicated region
    $region29: #{double_conv_forward.5} parent=5 // pred_check
      _
    $region30: #{double_conv_forward.5} parent=5 // pred_check_branch
      %142 = sbr.rel (%p139) target = $region32
    $region31: #{double_conv_forward.5} parent=5 // pred_region
      %s143 = ssub.s32 %s9, 1
      %s144 = smul.u32 64, %s14
      %p145 = scmp.lt.s32.totalorder %s144, 127
      %s146 = scalar_select %p145, %s144, 127
      %s147 = smul.addr %s146, 4
      %s148 = scalar_lea.vmem %s0, %s147
      %p149 = pneg %p35
      %p150 = pneg %p32
      %p151 = pneg %p56
      %p152 = pneg %p53
      %p153 = pneg %p77
      %p154 = pneg %p74
      %p155 = pneg %p103
      %p156 = pneg %p100
      %s157 = smul.u32 64, %s14
      %p158 = scmp.lt.s32.totalorder %s157, 127
      %s159 = scalar_select %p158, %s157, 127
      %s160 = smul.addr %s159, 4
      %s161 = scalar_lea.vmem %s3, %s160
      %s162 = smul.u32 64, %s14
      %p163 = scmp.lt.s32.totalorder %s162, 127
      %s164 = scalar_select %p163, %s162, 127
      %s165 = smul.addr %s164, 4
      %s166 = scalar_lea.vmem %s0, %s165
      %s167 = smul.u32 64, %s14
      %s168 = smul.u32 64, %s14
      %p169 = scmp.lt.s32.totalorder %s168, 127
      %s170 = scalar_select %p169, %s168, 127
      %s171 = smul.addr %s170, 4
      %s172 = scalar_lea.vmem %s3, %s171
      %s173 = smul.u32 64, %s14
      %v174 = vld [vmem:[%s166] sm:$0xf]
      %v175 = vld [vmem:[%s166 + $0x4] sm:$0xf]
      %v176 = vld [vmem:[%s166 + $0x8] sm:$0xf]
      %v177 = vld [vmem:[%s166 + $0xc] sm:$0xf]
      %v178 = vld [vmem:[%s166 + $0x10] sm:$0xf]
      %v179 = vld [vmem:[%s166 + $0x14] sm:$0xf]
      %v180 = vld [vmem:[%s166 + $0x18] sm:$0xf]
      %v181 = vld [vmem:[%s166 + $0x1c] sm:$0xf]
      %v182 = vld [vmem:[%s166 + $0x20] sm:$0xf]
      %v183 = vld [vmem:[%s166 + $0x24] sm:$0xf]
      %v184 = vld [vmem:[%s166 + $0x28] sm:$0xf]
      %v185 = vld [vmem:[%s166 + $0x2c] sm:$0xf]
      %v186 = vld [vmem:[%s166 + $0x30] sm:$0xf]
      %v187 = vld [vmem:[%s166 + $0x34] sm:$0xf]
      %v188 = vld [vmem:[%s166 + $0x38] sm:$0xf]
      %v189 = vld [vmem:[%s166 + $0x3c] sm:$0xf]
      %v190 = vld [vmem:[%s166 + $0x40] sm:$0xf]
      %v191 = vld [vmem:[%s166 + $0x44] sm:$0xf]
      %v192 = vld [vmem:[%s166 + $0x48] sm:$0xf]
      %v193 = vld [vmem:[%s166 + $0x4c] sm:$0xf]
      %v194 = vld [vmem:[%s166 + $0x50] sm:$0xf]
      %v195 = vld [vmem:[%s166 + $0x54] sm:$0xf]
      %v196 = vld [vmem:[%s166 + $0x58] sm:$0xf]
      %v197 = vld [vmem:[%s166 + $0x5c] sm:$0xf]
      %v198 = vld [vmem:[%s166 + $0x60] sm:$0xf]
      %v199 = vld [vmem:[%s166 + $0x64] sm:$0xf]
      %v200 = vld [vmem:[%s166 + $0x68] sm:$0xf]
      %v201 = vld [vmem:[%s166 + $0x6c] sm:$0xf]
      %v202 = vld [vmem:[%s166 + $0x70] sm:$0xf]
      %v203 = vld [vmem:[%s166 + $0x74] sm:$0xf]
      %v204 = vld [vmem:[%s166 + $0x78] sm:$0xf]
      %v205 = vld [vmem:[%s166 + $0x7c] sm:$0xf]
      %v206 = vld [vmem:[%s166 + $0x80] sm:$0xf]
      %v207 = vld [vmem:[%s166 + $0x84] sm:$0xf]
      %v208 = vld [vmem:[%s166 + $0x88] sm:$0xf]
      %v209 = vld [vmem:[%s166 + $0x8c] sm:$0xf]
      %v210 = vld [vmem:[%s166 + $0x90] sm:$0xf]
      %v211 = vld [vmem:[%s166 + $0x94] sm:$0xf]
      %v212 = vld [vmem:[%s166 + $0x98] sm:$0xf]
      %v213 = vld [vmem:[%s166 + $0x9c] sm:$0xf]
      %v214 = vld [vmem:[%s166 + $0xa0] sm:$0xf]
      %v215 = vld [vmem:[%s166 + $0xa4] sm:$0xf]
      %v216 = vld [vmem:[%s166 + $0xa8] sm:$0xf]
      %v217 = vld [vmem:[%s166 + $0xac] sm:$0xf]
      %v218 = vld [vmem:[%s166 + $0xb0] sm:$0xf]
      %v219 = vld [vmem:[%s166 + $0xb4] sm:$0xf]
      %v220 = vld [vmem:[%s166 + $0xb8] sm:$0xf]
      %v221 = vld [vmem:[%s166 + $0xbc] sm:$0xf]
      %v222 = vld [vmem:[%s166 + $0xc0] sm:$0xf]
      %v223 = vld [vmem:[%s166 + $0xc4] sm:$0xf]
      %v224 = vld [vmem:[%s166 + $0xc8] sm:$0xf]
      %v225 = vld [vmem:[%s166 + $0xcc] sm:$0xf]
      %v226 = vld [vmem:[%s166 + $0xd0] sm:$0xf]
      %v227 = vld [vmem:[%s166 + $0xd4] sm:$0xf]
      %v228 = vld [vmem:[%s166 + $0xd8] sm:$0xf]
      %v229 = vld [vmem:[%s166 + $0xdc] sm:$0xf]
      %v230 = vld [vmem:[%s166 + $0xe0] sm:$0xf]
      %v231 = vld [vmem:[%s166 + $0xe4] sm:$0xf]
      %v232 = vld [vmem:[%s166 + $0xe8] sm:$0xf]
      %v233 = vld [vmem:[%s166 + $0xec] sm:$0xf]
      %v234 = vld [vmem:[%s166 + $0xf0] sm:$0xf]
      %v235 = vld [vmem:[%s166 + $0xf4] sm:$0xf]
      %v236 = vld [vmem:[%s166 + $0xf8] sm:$0xf]
      %v237 = vld [vmem:[%s166 + $0xfc] sm:$0xf]
      %v238 = vunpack.c.l.bf16 %v174
      %v239 = vunpack.c.l.bf16 %v175
      %v240 = vunpack.c.l.bf16 %v176
      %v241 = vunpack.c.l.bf16 %v177
      %v242 = vunpack.c.l.bf16 %v178
      %v243 = vunpack.c.l.bf16 %v179
      %v244 = vunpack.c.l.bf16 %v180
      %v245 = vunpack.c.l.bf16 %v181
      %v246 = vunpack.c.l.bf16 %v182
      %v247 = vunpack.c.l.bf16 %v183
      %v248 = vunpack.c.l.bf16 %v184
      %v249 = vunpack.c.l.bf16 %v185
      %v250 = vunpack.c.l.bf16 %v186
      %v251 = vunpack.c.l.bf16 %v187
      %v252 = vunpack.c.l.bf16 %v188
      %v253 = vunpack.c.l.bf16 %v189
      %v254 = vunpack.c.l.bf16 %v190
      %v255 = vunpack.c.l.bf16 %v191
      %v256 = vunpack.c.l.bf16 %v192
      %v257 = vunpack.c.l.bf16 %v193
      %v258 = vunpack.c.l.bf16 %v194
      %v259 = vunpack.c.l.bf16 %v195
      %v260 = vunpack.c.l.bf16 %v196
      %v261 = vunpack.c.l.bf16 %v197
      %v262 = vunpack.c.l.bf16 %v198
      %v263 = vunpack.c.l.bf16 %v199
      %v264 = vunpack.c.l.bf16 %v200
      %v265 = vunpack.c.l.bf16 %v201
      %v266 = vunpack.c.l.bf16 %v202
      %v267 = vunpack.c.l.bf16 %v203
      %v268 = vunpack.c.l.bf16 %v204
      %v269 = vunpack.c.l.bf16 %v205
      %v270 = vunpack.c.l.bf16 %v206
      %v271 = vunpack.c.l.bf16 %v207
      %v272 = vunpack.c.l.bf16 %v208
      %v273 = vunpack.c.l.bf16 %v209
      %v274 = vunpack.c.l.bf16 %v210
      %v275 = vunpack.c.l.bf16 %v211
      %v276 = vunpack.c.l.bf16 %v212
      %v277 = vunpack.c.l.bf16 %v213
      %v278 = vunpack.c.l.bf16 %v214
      %v279 = vunpack.c.l.bf16 %v215
      %v280 = vunpack.c.l.bf16 %v216
      %v281 = vunpack.c.l.bf16 %v217
      %v282 = vunpack.c.l.bf16 %v218
      %v283 = vunpack.c.l.bf16 %v219
      %v284 = vunpack.c.l.bf16 %v220
      %v285 = vunpack.c.l.bf16 %v221
      %v286 = vunpack.c.l.bf16 %v222
      %v287 = vunpack.c.l.bf16 %v223
      %v288 = vunpack.c.l.bf16 %v224
      %v289 = vunpack.c.l.bf16 %v225
      %v290 = vunpack.c.l.bf16 %v226
      %v291 = vunpack.c.l.bf16 %v227
      %v292 = vunpack.c.l.bf16 %v228
      %v293 = vunpack.c.l.bf16 %v229
      %v294 = vunpack.c.l.bf16 %v230
      %v295 = vunpack.c.l.bf16 %v231
      %v296 = vunpack.c.l.bf16 %v232
      %v297 = vunpack.c.l.bf16 %v233
      %v298 = vunpack.c.l.bf16 %v234
      %v299 = vunpack.c.l.bf16 %v235
      %v300 = vunpack.c.l.bf16 %v236
      %v301 = vunpack.c.l.bf16 %v237
      %v302 = vld [vmem:[%s1] sm:$0x1]
      %v304 = vlaneseq
      %v305 = vshrl.u32 %v304, 7
      %v306 = vsub.s32 0, %v305
      %v307 = vrot.slane %v302, %v306
      %v309 = vmul.f32 %v238, %v307
      %v310 = vmul.f32 %v239, %v307
      %v311 = vmul.f32 %v240, %v307
      %v312 = vmul.f32 %v241, %v307
      %v313 = vmul.f32 %v242, %v307
      %v314 = vmul.f32 %v243, %v307
      %v315 = vmul.f32 %v244, %v307
      %v316 = vmul.f32 %v245, %v307
      %v317 = vmul.f32 %v246, %v307
      %v318 = vmul.f32 %v247, %v307
      %v319 = vmul.f32 %v248, %v307
      %v320 = vmul.f32 %v249, %v307
      %v321 = vmul.f32 %v250, %v307
      %v322 = vmul.f32 %v251, %v307
      %v323 = vmul.f32 %v252, %v307
      %v324 = vmul.f32 %v253, %v307
      %v325 = vmul.f32 %v254, %v307
      %v326 = vmul.f32 %v255, %v307
      %v327 = vmul.f32 %v256, %v307
      %v328 = vmul.f32 %v257, %v307
      %v329 = vmul.f32 %v258, %v307
      %v330 = vmul.f32 %v259, %v307
      %v331 = vmul.f32 %v260, %v307
      %v332 = vmul.f32 %v261, %v307
      %v333 = vmul.f32 %v262, %v307
      %v334 = vmul.f32 %v263, %v307
      %v335 = vmul.f32 %v264, %v307
      %v336 = vmul.f32 %v265, %v307
      %v337 = vmul.f32 %v266, %v307
      %v338 = vmul.f32 %v267, %v307
      %v339 = vmul.f32 %v268, %v307
      %v340 = vmul.f32 %v269, %v307
      %v341 = vmul.f32 %v270, %v307
      %v342 = vmul.f32 %v271, %v307
      %v343 = vmul.f32 %v272, %v307
      %v344 = vmul.f32 %v273, %v307
      %v345 = vmul.f32 %v274, %v307
      %v346 = vmul.f32 %v275, %v307
      %v347 = vmul.f32 %v276, %v307
      %v348 = vmul.f32 %v277, %v307
      %v349 = vmul.f32 %v278, %v307
      %v350 = vmul.f32 %v279, %v307
      %v351 = vmul.f32 %v280, %v307
      %v352 = vmul.f32 %v281, %v307
      %v353 = vmul.f32 %v282, %v307
      %v354 = vmul.f32 %v283, %v307
      %v355 = vmul.f32 %v284, %v307
      %v356 = vmul.f32 %v285, %v307
      %v357 = vmul.f32 %v286, %v307
      %v358 = vmul.f32 %v287, %v307
      %v359 = vmul.f32 %v288, %v307
      %v360 = vmul.f32 %v289, %v307
      %v361 = vmul.f32 %v290, %v307
      %v362 = vmul.f32 %v291, %v307
      %v363 = vmul.f32 %v292, %v307
      %v364 = vmul.f32 %v293, %v307
      %v365 = vmul.f32 %v294, %v307
      %v366 = vmul.f32 %v295, %v307
      %v367 = vmul.f32 %v296, %v307
      %v368 = vmul.f32 %v297, %v307
      %v369 = vmul.f32 %v298, %v307
      %v370 = vmul.f32 %v299, %v307
      %v371 = vmul.f32 %v300, %v307
      %v372 = vmul.f32 %v301, %v307
      %v373 = vld [vmem:[%s2] sm:$0x1]
      %v375 = vlaneseq
      %v376 = vshrl.u32 %v375, 7
      %v377 = vsub.s32 0, %v376
      %v378 = vrot.slane %v373, %v377
      %v380 = vadd.f32 %v309, %v378
      %v381 = vadd.f32 %v310, %v378
      %v382 = vadd.f32 %v311, %v378
      %v383 = vadd.f32 %v312, %v378
      %v384 = vadd.f32 %v313, %v378
      %v385 = vadd.f32 %v314, %v378
      %v386 = vadd.f32 %v315, %v378
      %v387 = vadd.f32 %v316, %v378
      %v388 = vadd.f32 %v317, %v378
      %v389 = vadd.f32 %v318, %v378
      %v390 = vadd.f32 %v319, %v378
      %v391 = vadd.f32 %v320, %v378
      %v392 = vadd.f32 %v321, %v378
      %v393 = vadd.f32 %v322, %v378
      %v394 = vadd.f32 %v323, %v378
      %v395 = vadd.f32 %v324, %v378
      %v396 = vadd.f32 %v325, %v378
      %v397 = vadd.f32 %v326, %v378
      %v398 = vadd.f32 %v327, %v378
      %v399 = vadd.f32 %v328, %v378
      %v400 = vadd.f32 %v329, %v378
      %v401 = vadd.f32 %v330, %v378
      %v402 = vadd.f32 %v331, %v378
      %v403 = vadd.f32 %v332, %v378
      %v404 = vadd.f32 %v333, %v378
      %v405 = vadd.f32 %v334, %v378
      %v406 = vadd.f32 %v335, %v378
      %v407 = vadd.f32 %v336, %v378
      %v408 = vadd.f32 %v337, %v378
      %v409 = vadd.f32 %v338, %v378
      %v410 = vadd.f32 %v339, %v378
      %v411 = vadd.f32 %v340, %v378
      %v412 = vadd.f32 %v341, %v378
      %v413 = vadd.f32 %v342, %v378
      %v414 = vadd.f32 %v343, %v378
      %v415 = vadd.f32 %v344, %v378
      %v416 = vadd.f32 %v345, %v378
      %v417 = vadd.f32 %v346, %v378
      %v418 = vadd.f32 %v347, %v378
      %v419 = vadd.f32 %v348, %v378
      %v420 = vadd.f32 %v349, %v378
      %v421 = vadd.f32 %v350, %v378
      %v422 = vadd.f32 %v351, %v378
      %v423 = vadd.f32 %v352, %v378
      %v424 = vadd.f32 %v353, %v378
      %v425 = vadd.f32 %v354, %v378
      %v426 = vadd.f32 %v355, %v378
      %v427 = vadd.f32 %v356, %v378
      %v428 = vadd.f32 %v357, %v378
      %v429 = vadd.f32 %v358, %v378
      %v430 = vadd.f32 %v359, %v378
      %v431 = vadd.f32 %v360, %v378
      %v432 = vadd.f32 %v361, %v378
      %v433 = vadd.f32 %v362, %v378
      %v434 = vadd.f32 %v363, %v378
      %v435 = vadd.f32 %v364, %v378
      %v436 = vadd.f32 %v365, %v378
      %v437 = vadd.f32 %v366, %v378
      %v438 = vadd.f32 %v367, %v378
      %v439 = vadd.f32 %v368, %v378
      %v440 = vadd.f32 %v369, %v378
      %v441 = vadd.f32 %v370, %v378
      %v442 = vadd.f32 %v371, %v378
      %v443 = vadd.f32 %v372, %v378
      %v444 = vmax.f32 %v380, 0.0
      %v445 = vmax.f32 %v381, 0.0
      %v446 = vmax.f32 %v382, 0.0
      %v447 = vmax.f32 %v383, 0.0
      %v448 = vmax.f32 %v384, 0.0
      %v449 = vmax.f32 %v385, 0.0
      %v450 = vmax.f32 %v386, 0.0
      %v451 = vmax.f32 %v387, 0.0
      %v452 = vmax.f32 %v388, 0.0
      %v453 = vmax.f32 %v389, 0.0
      %v454 = vmax.f32 %v390, 0.0
      %v455 = vmax.f32 %v391, 0.0
      %v456 = vmax.f32 %v392, 0.0
      %v457 = vmax.f32 %v393, 0.0
      %v458 = vmax.f32 %v394, 0.0
      %v459 = vmax.f32 %v395, 0.0
      %v460 = vmax.f32 %v396, 0.0
      %v461 = vmax.f32 %v397, 0.0
      %v462 = vmax.f32 %v398, 0.0
      %v463 = vmax.f32 %v399, 0.0
      %v464 = vmax.f32 %v400, 0.0
      %v465 = vmax.f32 %v401, 0.0
      %v466 = vmax.f32 %v402, 0.0
      %v467 = vmax.f32 %v403, 0.0
      %v468 = vmax.f32 %v404, 0.0
      %v469 = vmax.f32 %v405, 0.0
      %v470 = vmax.f32 %v406, 0.0
      %v471 = vmax.f32 %v407, 0.0
      %v472 = vmax.f32 %v408, 0.0
      %v473 = vmax.f32 %v409, 0.0
      %v474 = vmax.f32 %v410, 0.0
      %v475 = vmax.f32 %v411, 0.0
      %v476 = vmax.f32 %v412, 0.0
      %v477 = vmax.f32 %v413, 0.0
      %v478 = vmax.f32 %v414, 0.0
      %v479 = vmax.f32 %v415, 0.0
      %v480 = vmax.f32 %v416, 0.0
      %v481 = vmax.f32 %v417, 0.0
      %v482 = vmax.f32 %v418, 0.0
      %v483 = vmax.f32 %v419, 0.0
      %v484 = vmax.f32 %v420, 0.0
      %v485 = vmax.f32 %v421, 0.0
      %v486 = vmax.f32 %v422, 0.0
      %v487 = vmax.f32 %v423, 0.0
      %v488 = vmax.f32 %v424, 0.0
      %v489 = vmax.f32 %v425, 0.0
      %v490 = vmax.f32 %v426, 0.0
      %v491 = vmax.f32 %v427, 0.0
      %v492 = vmax.f32 %v428, 0.0
      %v493 = vmax.f32 %v429, 0.0
      %v494 = vmax.f32 %v430, 0.0
      %v495 = vmax.f32 %v431, 0.0
      %v496 = vmax.f32 %v432, 0.0
      %v497 = vmax.f32 %v433, 0.0
      %v498 = vmax.f32 %v434, 0.0
      %v499 = vmax.f32 %v435, 0.0
      %v500 = vmax.f32 %v436, 0.0
      %v501 = vmax.f32 %v437, 0.0
      %v502 = vmax.f32 %v438, 0.0
      %v503 = vmax.f32 %v439, 0.0
      %v504 = vmax.f32 %v440, 0.0
      %v505 = vmax.f32 %v441, 0.0
      %v506 = vmax.f32 %v442, 0.0
      %v507 = vmax.f32 %v443, 0.0
      %v508 = vpack.c.bf16 %v445, %v444
      %v509 = vpack.c.bf16 %v447, %v446
      %v510 = vpack.c.bf16 %v449, %v448
      %v511 = vpack.c.bf16 %v451, %v450
      %v512 = vpack.c.bf16 %v453, %v452
      %v513 = vpack.c.bf16 %v455, %v454
      %v514 = vpack.c.bf16 %v457, %v456
      %v515 = vpack.c.bf16 %v459, %v458
      %v516 = vpack.c.bf16 %v461, %v460
      %v517 = vpack.c.bf16 %v463, %v462
      %v518 = vpack.c.bf16 %v465, %v464
      %v519 = vpack.c.bf16 %v467, %v466
      %v520 = vpack.c.bf16 %v469, %v468
      %v521 = vpack.c.bf16 %v471, %v470
      %v522 = vpack.c.bf16 %v473, %v472
      %v523 = vpack.c.bf16 %v475, %v474
      %v524 = vpack.c.bf16 %v477, %v476
      %v525 = vpack.c.bf16 %v479, %v478
      %v526 = vpack.c.bf16 %v481, %v480
      %v527 = vpack.c.bf16 %v483, %v482
      %v528 = vpack.c.bf16 %v485, %v484
      %v529 = vpack.c.bf16 %v487, %v486
      %v530 = vpack.c.bf16 %v489, %v488
      %v531 = vpack.c.bf16 %v491, %v490
      %v532 = vpack.c.bf16 %v493, %v492
      %v533 = vpack.c.bf16 %v495, %v494
      %v534 = vpack.c.bf16 %v497, %v496
      %v535 = vpack.c.bf16 %v499, %v498
      %v536 = vpack.c.bf16 %v501, %v500
      %v537 = vpack.c.bf16 %v503, %v502
      %v538 = vpack.c.bf16 %v505, %v504
      %v539 = vpack.c.bf16 %v507, %v506
      %v572 = vunpack.c.l.b16 %v508
      %v573 = vunpack.c.h.b16 %v508
      %v574 = vunpack.c.l.b16 %v509
      %v575 = vunpack.c.h.b16 %v509
      %v576 = vunpack.c.l.b16 %v510
      %v577 = vunpack.c.h.b16 %v510
      %v578 = vunpack.c.l.b16 %v511
      %v579 = vunpack.c.h.b16 %v511
      %v580 = vunpack.c.l.b16 %v512
      %v581 = vunpack.c.h.b16 %v512
      %v582 = vunpack.c.l.b16 %v513
      %v583 = vunpack.c.h.b16 %v513
      %v584 = vunpack.c.l.b16 %v514
      %v585 = vunpack.c.h.b16 %v514
      %v586 = vunpack.c.l.b16 %v515
      %v587 = vunpack.c.h.b16 %v515
      %v588 = vunpack.c.l.b16 %v516
      %v589 = vunpack.c.h.b16 %v516
      %v590 = vunpack.c.l.b16 %v517
      %v591 = vunpack.c.h.b16 %v517
      %v592 = vunpack.c.l.b16 %v518
      %v593 = vunpack.c.h.b16 %v518
      %v594 = vunpack.c.l.b16 %v519
      %v595 = vunpack.c.h.b16 %v519
      %v596 = vunpack.c.l.b16 %v520
      %v597 = vunpack.c.h.b16 %v520
      %v598 = vunpack.c.l.b16 %v521
      %v599 = vunpack.c.h.b16 %v521
      %v600 = vunpack.c.l.b16 %v522
      %v601 = vunpack.c.h.b16 %v522
      %v602 = vunpack.c.l.b16 %v523
      %v603 = vunpack.c.h.b16 %v523
      %v604 = vunpack.c.l.b16 %v524
      %v605 = vunpack.c.h.b16 %v524
      %v606 = vunpack.c.l.b16 %v525
      %v607 = vunpack.c.h.b16 %v525
      %v608 = vunpack.c.l.b16 %v526
      %v609 = vunpack.c.h.b16 %v526
      %v610 = vunpack.c.l.b16 %v527
      %v611 = vunpack.c.h.b16 %v527
      %v612 = vunpack.c.l.b16 %v528
      %v613 = vunpack.c.h.b16 %v528
      %v614 = vunpack.c.l.b16 %v529
      %v615 = vunpack.c.h.b16 %v529
      %v616 = vunpack.c.l.b16 %v530
      %v617 = vunpack.c.h.b16 %v530
      %v618 = vunpack.c.l.b16 %v531
      %v619 = vunpack.c.h.b16 %v531
      %v620 = vunpack.c.l.b16 %v532
      %v621 = vunpack.c.h.b16 %v532
      %v622 = vunpack.c.l.b16 %v533
      %v623 = vunpack.c.h.b16 %v533
      %v624 = vunpack.c.l.b16 %v534
      %v625 = vunpack.c.h.b16 %v534
      %v626 = vunpack.c.l.b16 %v535
      %v627 = vunpack.c.h.b16 %v535
      %v628 = vunpack.c.l.b16 %v536
      %v629 = vunpack.c.h.b16 %v536
      %v630 = vunpack.c.l.b16 %v537
      %v631 = vunpack.c.h.b16 %v537
      %v632 = vunpack.c.l.b16 %v538
      %v633 = vunpack.c.h.b16 %v538
      %v634 = vunpack.c.l.b16 %v539
      %v635 = vunpack.c.h.b16 %v539
      %v636 = vpack.c.b16 %v572, %v572
      %v637 = vpack.c.b16 %v573, %v573
      %v638 = vpack.c.b16 %v574, %v574
      %v639 = vpack.c.b16 %v575, %v575
      %v640 = vpack.c.b16 %v576, %v576
      %v641 = vpack.c.b16 %v577, %v577
      %v642 = vpack.c.b16 %v578, %v578
      %v643 = vpack.c.b16 %v579, %v579
      %v644 = vpack.c.b16 %v580, %v580
      %v645 = vpack.c.b16 %v581, %v581
      %v646 = vpack.c.b16 %v582, %v582
      %v647 = vpack.c.b16 %v583, %v583
      %v648 = vpack.c.b16 %v584, %v584
      %v649 = vpack.c.b16 %v585, %v585
      %v650 = vpack.c.b16 %v586, %v586
      %v651 = vpack.c.b16 %v587, %v587
      %v652 = vpack.c.b16 %v588, %v588
      %v653 = vpack.c.b16 %v589, %v589
      %v654 = vpack.c.b16 %v590, %v590
      %v655 = vpack.c.b16 %v591, %v591
      %v656 = vpack.c.b16 %v592, %v592
      %v657 = vpack.c.b16 %v593, %v593
      %v658 = vpack.c.b16 %v594, %v594
      %v659 = vpack.c.b16 %v595, %v595
      %v660 = vpack.c.b16 %v596, %v596
      %v661 = vpack.c.b16 %v597, %v597
      %v662 = vpack.c.b16 %v598, %v598
      %v663 = vpack.c.b16 %v599, %v599
      %v664 = vpack.c.b16 %v600, %v600
      %v665 = vpack.c.b16 %v601, %v601
      %v666 = vpack.c.b16 %v602, %v602
      %v667 = vpack.c.b16 %v603, %v603
      %v668 = vpack.c.b16 %v604, %v604
      %v669 = vpack.c.b16 %v605, %v605
      %v670 = vpack.c.b16 %v606, %v606
      %v671 = vpack.c.b16 %v607, %v607
      %v672 = vpack.c.b16 %v608, %v608
      %v673 = vpack.c.b16 %v609, %v609
      %v674 = vpack.c.b16 %v610, %v610
      %v675 = vpack.c.b16 %v611, %v611
      %v676 = vpack.c.b16 %v612, %v612
      %v677 = vpack.c.b16 %v613, %v613
      %v678 = vpack.c.b16 %v614, %v614
      %v679 = vpack.c.b16 %v615, %v615
      %v680 = vpack.c.b16 %v616, %v616
      %v681 = vpack.c.b16 %v617, %v617
      %v682 = vpack.c.b16 %v618, %v618
      %v683 = vpack.c.b16 %v619, %v619
      %v684 = vpack.c.b16 %v620, %v620
      %v685 = vpack.c.b16 %v621, %v621
      %v686 = vpack.c.b16 %v622, %v622
      %v687 = vpack.c.b16 %v623, %v623
      %v688 = vpack.c.b16 %v624, %v624
      %v689 = vpack.c.b16 %v625, %v625
      %v690 = vpack.c.b16 %v626, %v626
      %v691 = vpack.c.b16 %v627, %v627
      %v692 = vpack.c.b16 %v628, %v628
      %v693 = vpack.c.b16 %v629, %v629
      %v694 = vpack.c.b16 %v630, %v630
      %v695 = vpack.c.b16 %v631, %v631
      %v696 = vpack.c.b16 %v632, %v632
      %v697 = vpack.c.b16 %v633, %v633
      %v698 = vpack.c.b16 %v634, %v634
      %v699 = vpack.c.b16 %v635, %v635
      %764 = vst [vmem:[%s172] sm:$0xf] %v636
      %765 = vst [vmem:[%s172 + $0x4] sm:$0xf] %v637
      %766 = vst [vmem:[%s172 + $0x8] sm:$0xf] %v638
      %767 = vst [vmem:[%s172 + $0xc] sm:$0xf] %v639
      %768 = vst [vmem:[%s172 + $0x10] sm:$0xf] %v640
      %769 = vst [vmem:[%s172 + $0x14] sm:$0xf] %v641
      %770 = vst [vmem:[%s172 + $0x18] sm:$0xf] %v642
      %771 = vst [vmem:[%s172 + $0x1c] sm:$0xf] %v643
      %772 = vst [vmem:[%s172 + $0x20] sm:$0xf] %v644
      %773 = vst [vmem:[%s172 + $0x24] sm:$0xf] %v645
      %774 = vst [vmem:[%s172 + $0x28] sm:$0xf] %v646
      %775 = vst [vmem:[%s172 + $0x2c] sm:$0xf] %v647
      %776 = vst [vmem:[%s172 + $0x30] sm:$0xf] %v648
      %777 = vst [vmem:[%s172 + $0x34] sm:$0xf] %v649
      %778 = vst [vmem:[%s172 + $0x38] sm:$0xf] %v650
      %779 = vst [vmem:[%s172 + $0x3c] sm:$0xf] %v651
      %780 = vst [vmem:[%s172 + $0x40] sm:$0xf] %v652
      %781 = vst [vmem:[%s172 + $0x44] sm:$0xf] %v653
      %782 = vst [vmem:[%s172 + $0x48] sm:$0xf] %v654
      %783 = vst [vmem:[%s172 + $0x4c] sm:$0xf] %v655
      %784 = vst [vmem:[%s172 + $0x50] sm:$0xf] %v656
      %785 = vst [vmem:[%s172 + $0x54] sm:$0xf] %v657
      %786 = vst [vmem:[%s172 + $0x58] sm:$0xf] %v658
      %787 = vst [vmem:[%s172 + $0x5c] sm:$0xf] %v659
      %788 = vst [vmem:[%s172 + $0x60] sm:$0xf] %v660
      %789 = vst [vmem:[%s172 + $0x64] sm:$0xf] %v661
      %790 = vst [vmem:[%s172 + $0x68] sm:$0xf] %v662
      %791 = vst [vmem:[%s172 + $0x6c] sm:$0xf] %v663
      %792 = vst [vmem:[%s172 + $0x70] sm:$0xf] %v664
      %793 = vst [vmem:[%s172 + $0x74] sm:$0xf] %v665
      %794 = vst [vmem:[%s172 + $0x78] sm:$0xf] %v666
      %795 = vst [vmem:[%s172 + $0x7c] sm:$0xf] %v667
      %796 = vst [vmem:[%s172 + $0x80] sm:$0xf] %v668
      %797 = vst [vmem:[%s172 + $0x84] sm:$0xf] %v669
      %798 = vst [vmem:[%s172 + $0x88] sm:$0xf] %v670
      %799 = vst [vmem:[%s172 + $0x8c] sm:$0xf] %v671
      %800 = vst [vmem:[%s172 + $0x90] sm:$0xf] %v672
      %801 = vst [vmem:[%s172 + $0x94] sm:$0xf] %v673
      %802 = vst [vmem:[%s172 + $0x98] sm:$0xf] %v674
      %803 = vst [vmem:[%s172 + $0x9c] sm:$0xf] %v675
      %804 = vst [vmem:[%s172 + $0xa0] sm:$0xf] %v676
      %805 = vst [vmem:[%s172 + $0xa4] sm:$0xf] %v677
      %806 = vst [vmem:[%s172 + $0xa8] sm:$0xf] %v678
      %807 = vst [vmem:[%s172 + $0xac] sm:$0xf] %v679
      %808 = vst [vmem:[%s172 + $0xb0] sm:$0xf] %v680
      %809 = vst [vmem:[%s172 + $0xb4] sm:$0xf] %v681
      %810 = vst [vmem:[%s172 + $0xb8] sm:$0xf] %v682
      %811 = vst [vmem:[%s172 + $0xbc] sm:$0xf] %v683
      %812 = vst [vmem:[%s172 + $0xc0] sm:$0xf] %v684
      %813 = vst [vmem:[%s172 + $0xc4] sm:$0xf] %v685
      %814 = vst [vmem:[%s172 + $0xc8] sm:$0xf] %v686
      %815 = vst [vmem:[%s172 + $0xcc] sm:$0xf] %v687
      %816 = vst [vmem:[%s172 + $0xd0] sm:$0xf] %v688
      %817 = vst [vmem:[%s172 + $0xd4] sm:$0xf] %v689
      %818 = vst [vmem:[%s172 + $0xd8] sm:$0xf] %v690
      %819 = vst [vmem:[%s172 + $0xdc] sm:$0xf] %v691
      %820 = vst [vmem:[%s172 + $0xe0] sm:$0xf] %v692
      %821 = vst [vmem:[%s172 + $0xe4] sm:$0xf] %v693
      %822 = vst [vmem:[%s172 + $0xe8] sm:$0xf] %v694
      %823 = vst [vmem:[%s172 + $0xec] sm:$0xf] %v695
      %824 = vst [vmem:[%s172 + $0xf0] sm:$0xf] %v696
      %825 = vst [vmem:[%s172 + $0xf4] sm:$0xf] %v697
      %826 = vst [vmem:[%s172 + $0xf8] sm:$0xf] %v698
      %827 = vst [vmem:[%s172 + $0xfc] sm:$0xf] %v699
      %s828 = smul.u32 64, %s14
      %p829 = scmp.lt.s32.totalorder %s828, 127
      %s830 = scalar_select %p829, %s828, 127
      %s831 = smul.addr %s830, 4
      %s832 = scalar_lea.vmem %s3, %s831
      // Predicated region
      $region33: #{double_conv_forward.5} parent=31 // pred_check
        %p833 = pneg %p100
      $region34: #{double_conv_forward.5} parent=31 // pred_check_branch
        %835 = sbr.rel (%p833) target = $region36
      $region35: #{double_conv_forward.5} parent=31 // pred_region
        %s836 = smul.u32 64, %s14
      $region36: #{double_conv_forward.5} parent=31 // pred_fallthru
        _
    $region32: #{double_conv_forward.5} parent=5 // pred_fallthru
      _
    %p837 = scmp.le.s32.totalorder 2, %s9
    // Predicated region
    $region37: #{double_conv_forward.5} parent=5 // pred_check
      %p838 = pneg %p837
    $region38: #{double_conv_forward.5} parent=5 // pred_check_branch
      %840 = sbr.rel (%p838) target = $region40
    $region39: #{double_conv_forward.5} parent=5 // pred_region
      %s841 = ssub.s32 %s9, 2
      // Predicated region
      $region41: #{double_conv_forward.5} parent=39 // pred_check
        %p842 = pneg %p106
      $region42: #{double_conv_forward.5} parent=39 // pred_check_branch
        %844 = sbr.rel (%p842) target = $region44
      $region43: #{double_conv_forward.5} parent=39 // pred_region
        %s845 = smul.u32 64, %s15
        %p846 = scmp.lt.s32.totalorder %s845, 127
        %s847 = scalar_select %p846, %s845, 127
        %s848 = smul.addr %s847, 4
        %s849 = scalar_lea.vmem %s3, %s848
      $region44: #{double_conv_forward.5} parent=39 // pred_fallthru
        _
    $region40: #{double_conv_forward.5} parent=5 // pred_fallthru
      _
  $region6: #{double_conv_forward.5} parent=0 // loop_footer
    %s13 = sadd.s32 1, %s9
  $region7: #{double_conv_forward.5} parent=0 // loop_footer_branch
    %8 = sbr.rel target = $region3
  $region8: #{double_conv_forward.5} parent=0 // loop_exit
    _

// kernel: double_conv_forward.4
$region0: #{double_conv_forward.4}
  #allocation0 [shape = 'u32[]', space=smem, size = 0x4, offset = 0x4, fixed_abs, tag = 'smem constant byte address 0x4 - core index']
  #allocation1 [shape = 'u32[144,128]{1,0:T(1,128)}', space=vmem, size = 0x12000, scoped, tag = 'internal scratch']
  %s0 = inlined_call_operand.vmem [shape: bf16[1024,128], index: 0, kind: input, shape index: {}]
  %s1 = inlined_call_operand.vmem [shape: bf16[128,128], index: 1, kind: input, shape index: {}]
  %s2 = inlined_call_operand.vmem [shape: bf16[1024,128], index: 2, kind: output, shape index: {0}]
  %s3 = inlined_call_operand.vmem [shape: f32[2,2,128], index: 3, kind: output, shape index: {1}]
  %4 = xla_tuple %s2, %s3
  %s5 = sld [smem:[#allocation0]]
  $region49: #{double_conv_forward.4} parent=0
    _
  %s7 = ssub.s32 1, %s5
  %s8 = scalar_select 0, %s7, %s5
  loop: start=0, step=1, limit=4
  $region2: #{double_conv_forward.4} parent=0 // loop_pre_header
    _
  $region3: #{double_conv_forward.4} parent=0 // loop_header
    %s10 = sphi 0, %s14
    %p11 = scmp.ge.s32.totalorder %s10, 4
    %s20 = sphi 0, %s22
    %s23 = sphi 0, %s20
    %s24 = sphi 0, %s23
    %s40 = sphi 0, %s24
    %s44 = sphi 0, %s44
    %s46 = sphi 0, %s44
    %s47 = sphi 0, %s46
    %s61 = sphi 0, %s47
    %s67 = sphi 0, %s69
    %s70 = sphi 0, %s67
    %s71 = sphi 0, %s70
    %s87 = sphi 0, %s71
    %s93 = sphi 0, %s95
    %s96 = sphi 0, %s93
    %s97 = sphi 0, %s96
    %s113 = sphi 0, %s97
  $region4: #{double_conv_forward.4} parent=0 // loop_header_branch
    %13 = sbr.rel (%p11) target = $region8
  $region5: #{double_conv_forward.4} parent=0 // loop_body
    %s15 = ssub.s32 %s10, 1
    %s16 = ssub.s32 %s10, 2
    %s17 = sadd.s32 %s10, 1
    %s18 = ssub.s32 %s10, %s17
    %p19 = scmp.eq.s32.totalorder %s18, 0
    %s21 = sadd.s32 %s20, 1
    %s22 = scalar_select %p19, %s20, %s21
    %p25 = pneg %p19
    %p26 = scmp.eq.s32.totalorder %s10, 1
    %p27 = por %p25, %p26
    %p28 = scmp.ne.s32.totalorder %s20, %s23
    %p29 = scmp.eq.s32.totalorder %s10, 0
    %p30 = por %p28, %p29
    %p31 = scmp.ne.s32.totalorder %s20, %s23
    %p32 = scmp.eq.s32.totalorder %s15, 1
    %p33 = por %p31, %p32
    %p34 = scmp.ne.s32.totalorder %s23, %s24
    %p35 = scmp.eq.s32.totalorder %s15, 0
    %p36 = por %p34, %p35
    %p37 = scmp.ne.s32.totalorder %s23, %s24
    %p38 = scmp.eq.s32.totalorder %s16, 1
    %p39 = por %p37, %p38
    %p41 = scmp.ne.s32.totalorder %s24, %s40
    %p42 = scmp.eq.s32.totalorder %s16, 0
    %p43 = por %p41, %p42
    %s45 = sadd.s32 %s44, 1
    %p48 = scmp.eq.s32.totalorder %s10, 1
    %p49 = scmp.ne.s32.totalorder %s44, %s46
    %p50 = scmp.eq.s32.totalorder %s10, 0
    %p51 = por %p49, %p50
    %p52 = scmp.ne.s32.totalorder %s44, %s46
    %p53 = scmp.eq.s32.totalorder %s15, 1
    %p54 = por %p52, %p53
    %p55 = scmp.ne.s32.totalorder %s46, %s47
    %p56 = scmp.eq.s32.totalorder %s15, 0
    %p57 = por %p55, %p56
    %p58 = scmp.ne.s32.totalorder %s46, %s47
    %p59 = scmp.eq.s32.totalorder %s16, 1
    %p60 = por %p58, %p59
    %p62 = scmp.ne.s32.totalorder %s47, %s61
    %p63 = scmp.eq.s32.totalorder %s16, 0
    %p64 = por %p62, %p63
    %s65 = ssub.s32 %s10, %s17
    %p66 = scmp.eq.s32.totalorder %s65, 0
    %s68 = sadd.s32 %s67, 1
    %s69 = scalar_select %p66, %s67, %s68
    %p72 = pneg %p66
    %p73 = scmp.eq.s32.totalorder %s10, 1
    %p74 = por %p72, %p73
    %p75 = scmp.ne.s32.totalorder %s67, %s70
    %p76 = scmp.eq.s32.totalorder %s10, 0
    %p77 = por %p75, %p76
    %p78 = scmp.ne.s32.totalorder %s67, %s70
    %p79 = scmp.eq.s32.totalorder %s15, 1
    %p80 = por %p78, %p79
    %p81 = scmp.ne.s32.totalorder %s70, %s71
    %p82 = scmp.eq.s32.totalorder %s15, 0
    %p83 = por %p81, %p82
    %p84 = scmp.ne.s32.totalorder %s70, %s71
    %p85 = scmp.eq.s32.totalorder %s16, 1
    %p86 = por %p84, %p85
    %p88 = scmp.ne.s32.totalorder %s71, %s87
    %p89 = scmp.eq.s32.totalorder %s16, 0
    %p90 = por %p88, %p89
    %s91 = ssub.s32 %s10, %s17
    %p92 = scmp.eq.s32.totalorder %s91, 0
    %s94 = sadd.s32 %s93, 1
    %s95 = scalar_select %p92, %s93, %s94
    %p98 = pneg %p92
    %p99 = scmp.eq.s32.totalorder %s10, 1
    %p100 = por %p98, %p99
    %p101 = scmp.ne.s32.totalorder %s93, %s96
    %p102 = scmp.eq.s32.totalorder %s10, 0
    %p103 = por %p101, %p102
    %p104 = scmp.ne.s32.totalorder %s93, %s96
    %p105 = scmp.eq.s32.totalorder %s15, 1
    %p106 = por %p104, %p105
    %p107 = scmp.ne.s32.totalorder %s96, %s97
    %p108 = scmp.eq.s32.totalorder %s15, 0
    %p109 = por %p107, %p108
    %p110 = scmp.ne.s32.totalorder %s96, %s97
    %p111 = scmp.eq.s32.totalorder %s16, 1
    %p112 = por %p110, %p111
    %p114 = scmp.ne.s32.totalorder %s97, %s113
    %p115 = scmp.eq.s32.totalorder %s16, 0
    %p116 = por %p114, %p115
    %p117 = scmp.le.s32.totalorder 1, %s10
    %p118 = scmp.lt.s32.totalorder %s10, 3
    %p119 = pnand %p117, %p118
    %p120 = pneg %p119
    // Predicated region
    $region9: #{double_conv_forward.4} parent=5 // pred_check
      _
    $region10: #{double_conv_forward.4} parent=5 // pred_check_branch
      %122 = sbr.rel (%p119) target = $region12
    $region11: #{double_conv_forward.4} parent=5 // pred_region
      %s123 = ssub.s32 %s10, 1
      // Predicated region
      $region13: #{double_conv_forward.4} parent=11 // pred_check
        %p124 = pneg %p57
      $region14: #{double_conv_forward.4} parent=11 // pred_check_branch
        %126 = sbr.rel (%p124) target = $region16
      $region15: #{double_conv_forward.4} parent=11 // pred_region
        _
      $region16: #{double_conv_forward.4} parent=11 // pred_fallthru
        _
    $region12: #{double_conv_forward.4} parent=5 // pred_fallthru
      _
    %p127 = scmp.lt.s32.totalorder %s10, 2
    // Predicated region
    $region17: #{double_conv_forward.4} parent=5 // pred_check
      %p128 = pneg %p127
    $region18: #{double_conv_forward.4} parent=5 // pred_check_branch
      %130 = sbr.rel (%p128) target = $region20
    $region19: #{double_conv_forward.4} parent=5 // pred_region
      // Predicated region
      $region21: #{double_conv_forward.4} parent=19 // pred_check
        %p131 = pneg %p30
      $region22: #{double_conv_forward.4} parent=19 // pred_check_branch
        %133 = sbr.rel (%p131) target = $region24
      $region23: #{double_conv_forward.4} parent=19 // pred_region
        %s134 = smul.u32 64, %s10
        %p135 = scmp.lt.s32.totalorder %s134, 127
        %s136 = scalar_select %p135, %s134, 127
        %s137 = smul.addr %s136, 4
        %s138 = scalar_lea.vmem %s0, %s137
        %s139 = smul.u32 64, %s10
      $region24: #{double_conv_forward.4} parent=19 // pred_fallthru
        _
    $region20: #{double_conv_forward.4} parent=5 // pred_fallthru
      _
    %p140 = scmp.le.s32.totalorder 1, %s10
    %p141 = scmp.lt.s32.totalorder %s10, 3
    %p142 = pnand %p140, %p141
    %p143 = pneg %p142
    // Predicated region
    $region25: #{double_conv_forward.4} parent=5 // pred_check
      _
    $region26: #{double_conv_forward.4} parent=5 // pred_check_branch
      %145 = sbr.rel (%p142) target = $region28
    $region27: #{double_conv_forward.4} parent=5 // pred_region
      %s146 = ssub.s32 %s10, 1
      %s147 = smul.u32 64, %s15
      %p148 = scmp.lt.s32.totalorder %s147, 127
      %s149 = scalar_select %p148, %s147, 127
      %s150 = smul.addr %s149, 4
      %s151 = scalar_lea.vmem %s0, %s150
      %p152 = pneg %p36
      %p153 = pneg %p33
      %p154 = pneg %p57
      %p155 = pneg %p54
      %p156 = pneg %p83
      %p157 = pneg %p80
      %s158 = smul.u32 64, %s15
      %p159 = scmp.lt.s32.totalorder %s158, 127
      %s160 = scalar_select %p159, %s158, 127
      %s161 = smul.addr %s160, 4
      %s162 = scalar_lea.vmem %s2, %s161
      %p163 = pneg %p109
      %p164 = pneg %p106
      %p165 = scmp.lt.s32.totalorder %s15, 1
      %s166 = scalar_select %p165, %s15, 1
      %s167 = smul.addr %s166, 2
      %s168 = scalar_lea.vmem %s3, %s167
      %s169 = smul.u32 64, %s15
      %p170 = scmp.lt.s32.totalorder %s169, 127
      %s171 = scalar_select %p170, %s169, 127
      %s172 = smul.addr %s171, 4
      %s173 = scalar_lea.vmem %s0, %s172
      %s174 = smul.u32 64, %s15
      %s175 = smul.u32 64, %s15
      %p176 = scmp.lt.s32.totalorder %s175, 127
      %s177 = scalar_select %p176, %s175, 127
      %s178 = smul.addr %s177, 4
      %s179 = scalar_lea.vmem %s2, %s178
      %s180 = smul.u32 64, %s15
      %p181 = scmp.lt.s32.totalorder %s15, 1
      %s182 = scalar_select %p181, %s15, 1
      %s183 = smul.addr %s182, 2
      %s184 = scalar_lea.vmem %s3, %s183
      %v186 = vld [vmem:[%s173] sm:$0xf]
      %v187 = vld [vmem:[%s173 + $0x4] sm:$0xf]
      %v188 = vld [vmem:[%s173 + $0x8] sm:$0xf]
      %v189 = vld [vmem:[%s173 + $0xc] sm:$0xf]
      %v190 = vld [vmem:[%s173 + $0x10] sm:$0xf]
      %v191 = vld [vmem:[%s173 + $0x14] sm:$0xf]
      %v192 = vld [vmem:[%s173 + $0x18] sm:$0xf]
      %v193 = vld [vmem:[%s173 + $0x1c] sm:$0xf]
      %v194 = vld [vmem:[%s173 + $0x20] sm:$0xf]
      %v195 = vld [vmem:[%s173 + $0x24] sm:$0xf]
      %v196 = vld [vmem:[%s173 + $0x28] sm:$0xf]
      %v197 = vld [vmem:[%s173 + $0x2c] sm:$0xf]
      %v198 = vld [vmem:[%s173 + $0x30] sm:$0xf]
      %v199 = vld [vmem:[%s173 + $0x34] sm:$0xf]
      %v200 = vld [vmem:[%s173 + $0x38] sm:$0xf]
      %v201 = vld [vmem:[%s173 + $0x3c] sm:$0xf]
      %v202 = vld [vmem:[%s173 + $0x40] sm:$0xf]
      %v203 = vld [vmem:[%s173 + $0x44] sm:$0xf]
      %v204 = vld [vmem:[%s173 + $0x48] sm:$0xf]
      %v205 = vld [vmem:[%s173 + $0x4c] sm:$0xf]
      %v206 = vld [vmem:[%s173 + $0x50] sm:$0xf]
      %v207 = vld [vmem:[%s173 + $0x54] sm:$0xf]
      %v208 = vld [vmem:[%s173 + $0x58] sm:$0xf]
      %v209 = vld [vmem:[%s173 + $0x5c] sm:$0xf]
      %v210 = vld [vmem:[%s173 + $0x60] sm:$0xf]
      %v211 = vld [vmem:[%s173 + $0x64] sm:$0xf]
      %v212 = vld [vmem:[%s173 + $0x68] sm:$0xf]
      %v213 = vld [vmem:[%s173 + $0x6c] sm:$0xf]
      %v214 = vld [vmem:[%s173 + $0x70] sm:$0xf]
      %v215 = vld [vmem:[%s173 + $0x74] sm:$0xf]
      %v216 = vld [vmem:[%s173 + $0x78] sm:$0xf]
      %v217 = vld [vmem:[%s173 + $0x7c] sm:$0xf]
      %v218 = vld [vmem:[%s173 + $0x80] sm:$0xf]
      %v219 = vld [vmem:[%s173 + $0x84] sm:$0xf]
      %v220 = vld [vmem:[%s173 + $0x88] sm:$0xf]
      %v221 = vld [vmem:[%s173 + $0x8c] sm:$0xf]
      %v222 = vld [vmem:[%s173 + $0x90] sm:$0xf]
      %v223 = vld [vmem:[%s173 + $0x94] sm:$0xf]
      %v224 = vld [vmem:[%s173 + $0x98] sm:$0xf]
      %v225 = vld [vmem:[%s173 + $0x9c] sm:$0xf]
      %v226 = vld [vmem:[%s173 + $0xa0] sm:$0xf]
      %v227 = vld [vmem:[%s173 + $0xa4] sm:$0xf]
      %v228 = vld [vmem:[%s173 + $0xa8] sm:$0xf]
      %v229 = vld [vmem:[%s173 + $0xac] sm:$0xf]
      %v230 = vld [vmem:[%s173 + $0xb0] sm:$0xf]
      %v231 = vld [vmem:[%s173 + $0xb4] sm:$0xf]
      %v232 = vld [vmem:[%s173 + $0xb8] sm:$0xf]
      %v233 = vld [vmem:[%s173 + $0xbc] sm:$0xf]
      %v234 = vld [vmem:[%s173 + $0xc0] sm:$0xf]
      %v235 = vld [vmem:[%s173 + $0xc4] sm:$0xf]
      %v236 = vld [vmem:[%s173 + $0xc8] sm:$0xf]
      %v237 = vld [vmem:[%s173 + $0xcc] sm:$0xf]
      %v238 = vld [vmem:[%s173 + $0xd0] sm:$0xf]
      %v239 = vld [vmem:[%s173 + $0xd4] sm:$0xf]
      %v240 = vld [vmem:[%s173 + $0xd8] sm:$0xf]
      %v241 = vld [vmem:[%s173 + $0xdc] sm:$0xf]
      %v242 = vld [vmem:[%s173 + $0xe0] sm:$0xf]
      %v243 = vld [vmem:[%s173 + $0xe4] sm:$0xf]
      %v244 = vld [vmem:[%s173 + $0xe8] sm:$0xf]
      %v245 = vld [vmem:[%s173 + $0xec] sm:$0xf]
      %v246 = vld [vmem:[%s173 + $0xf0] sm:$0xf]
      %v247 = vld [vmem:[%s173 + $0xf4] sm:$0xf]
      %v248 = vld [vmem:[%s173 + $0xf8] sm:$0xf]
      %v249 = vld [vmem:[%s173 + $0xfc] sm:$0xf]
      %v250 = vld [vmem:[%s1] sm:$0xf]
      %v251 = vld [vmem:[%s1 + $0x4] sm:$0xf]
      %v252 = vld [vmem:[%s1 + $0x8] sm:$0xf]
      %v253 = vld [vmem:[%s1 + $0xc] sm:$0xf]
      %v254 = vld [vmem:[%s1 + $0x10] sm:$0xf]
      %v255 = vld [vmem:[%s1 + $0x14] sm:$0xf]
      %v256 = vld [vmem:[%s1 + $0x18] sm:$0xf]
      %v257 = vld [vmem:[%s1 + $0x1c] sm:$0xf]
      %v258 = vld [vmem:[%s1 + $0x20] sm:$0xf]
      %v259 = vld [vmem:[%s1 + $0x24] sm:$0xf]
      %v260 = vld [vmem:[%s1 + $0x28] sm:$0xf]
      %v261 = vld [vmem:[%s1 + $0x2c] sm:$0xf]
      %v262 = vld [vmem:[%s1 + $0x30] sm:$0xf]
      %v263 = vld [vmem:[%s1 + $0x34] sm:$0xf]
      %v264 = vld [vmem:[%s1 + $0x38] sm:$0xf]
      %v265 = vld [vmem:[%s1 + $0x3c] sm:$0xf]
      %v330 = vunpack.c.l.b16 %v186
      %v331 = vunpack.c.l.b16 %v187
      %v332 = vunpack.c.l.b16 %v188
      %v333 = vunpack.c.l.b16 %v189
      %v334 = vunpack.c.l.b16 %v190
      %v335 = vunpack.c.l.b16 %v191
      %v336 = vunpack.c.l.b16 %v192
      %v337 = vunpack.c.l.b16 %v193
      %v338 = vunpack.c.l.b16 %v194
      %v339 = vunpack.c.l.b16 %v195
      %v340 = vunpack.c.l.b16 %v196
      %v341 = vunpack.c.l.b16 %v197
      %v342 = vunpack.c.l.b16 %v198
      %v343 = vunpack.c.l.b16 %v199
      %v344 = vunpack.c.l.b16 %v200
      %v345 = vunpack.c.l.b16 %v201
      %v346 = vunpack.c.l.b16 %v202
      %v347 = vunpack.c.l.b16 %v203
      %v348 = vunpack.c.l.b16 %v204
      %v349 = vunpack.c.l.b16 %v205
      %v350 = vunpack.c.l.b16 %v206
      %v351 = vunpack.c.l.b16 %v207
      %v352 = vunpack.c.l.b16 %v208
      %v353 = vunpack.c.l.b16 %v209
      %v354 = vunpack.c.l.b16 %v210
      %v355 = vunpack.c.l.b16 %v211
      %v356 = vunpack.c.l.b16 %v212
      %v357 = vunpack.c.l.b16 %v213
      %v358 = vunpack.c.l.b16 %v214
      %v359 = vunpack.c.l.b16 %v215
      %v360 = vunpack.c.l.b16 %v216
      %v361 = vunpack.c.l.b16 %v217
      %v362 = vunpack.c.l.b16 %v218
      %v363 = vunpack.c.l.b16 %v219
      %v364 = vunpack.c.l.b16 %v220
      %v365 = vunpack.c.l.b16 %v221
      %v366 = vunpack.c.l.b16 %v222
      %v367 = vunpack.c.l.b16 %v223
      %v368 = vunpack.c.l.b16 %v224
      %v369 = vunpack.c.l.b16 %v225
      %v370 = vunpack.c.l.b16 %v226
      %v371 = vunpack.c.l.b16 %v227
      %v372 = vunpack.c.l.b16 %v228
      %v373 = vunpack.c.l.b16 %v229
      %v374 = vunpack.c.l.b16 %v230
      %v375 = vunpack.c.l.b16 %v231
      %v376 = vunpack.c.l.b16 %v232
      %v377 = vunpack.c.l.b16 %v233
      %v378 = vunpack.c.l.b16 %v234
      %v379 = vunpack.c.l.b16 %v235
      %v380 = vunpack.c.l.b16 %v236
      %v381 = vunpack.c.l.b16 %v237
      %v382 = vunpack.c.l.b16 %v238
      %v383 = vunpack.c.l.b16 %v239
      %v384 = vunpack.c.l.b16 %v240
      %v385 = vunpack.c.l.b16 %v241
      %v386 = vunpack.c.l.b16 %v242
      %v387 = vunpack.c.l.b16 %v243
      %v388 = vunpack.c.l.b16 %v244
      %v389 = vunpack.c.l.b16 %v245
      %v390 = vunpack.c.l.b16 %v246
      %v391 = vunpack.c.l.b16 %v247
      %v392 = vunpack.c.l.b16 %v248
      %v393 = vunpack.c.l.b16 %v249
      %v394 = vpack.c.b16 %v331, %v330
      %v395 = vpack.c.b16 %v333, %v332
      %v396 = vpack.c.b16 %v335, %v334
      %v397 = vpack.c.b16 %v337, %v336
      %v398 = vpack.c.b16 %v339, %v338
      %v399 = vpack.c.b16 %v341, %v340
      %v400 = vpack.c.b16 %v343, %v342
      %v401 = vpack.c.b16 %v345, %v344
      %v402 = vpack.c.b16 %v347, %v346
      %v403 = vpack.c.b16 %v349, %v348
      %v404 = vpack.c.b16 %v351, %v350
      %v405 = vpack.c.b16 %v353, %v352
      %v406 = vpack.c.b16 %v355, %v354
      %v407 = vpack.c.b16 %v357, %v356
      %v408 = vpack.c.b16 %v359, %v358
      %v409 = vpack.c.b16 %v361, %v360
      %v410 = vpack.c.b16 %v363, %v362
      %v411 = vpack.c.b16 %v365, %v364
      %v412 = vpack.c.b16 %v367, %v366
      %v413 = vpack.c.b16 %v369, %v368
      %v414 = vpack.c.b16 %v371, %v370
      %v415 = vpack.c.b16 %v373, %v372
      %v416 = vpack.c.b16 %v375, %v374
      %v417 = vpack.c.b16 %v377, %v376
      %v418 = vpack.c.b16 %v379, %v378
      %v419 = vpack.c.b16 %v381, %v380
      %v420 = vpack.c.b16 %v383, %v382
      %v421 = vpack.c.b16 %v385, %v384
      %v422 = vpack.c.b16 %v387, %v386
      %v423 = vpack.c.b16 %v389, %v388
      %v424 = vpack.c.b16 %v391, %v390
      %v425 = vpack.c.b16 %v393, %v392
      %v474 = vunpack.c.l.b16 %v250
      %v475 = vunpack.c.l.b16 %v251
      %v476 = vunpack.c.l.b16 %v252
      %v477 = vunpack.c.l.b16 %v253
      %v478 = vunpack.c.l.b16 %v254
      %v479 = vunpack.c.l.b16 %v255
      %v480 = vunpack.c.l.b16 %v256
      %v481 = vunpack.c.l.b16 %v257
      %v482 = vunpack.c.l.b16 %v258
      %v483 = vunpack.c.l.b16 %v259
      %v484 = vunpack.c.l.b16 %v260
      %v485 = vunpack.c.l.b16 %v261
      %v486 = vunpack.c.l.b16 %v262
      %v487 = vunpack.c.l.b16 %v263
      %v488 = vunpack.c.l.b16 %v264
      %v489 = vunpack.c.l.b16 %v265
      %v490 = vpack.c.b16 %v475, %v474
      %v491 = vpack.c.b16 %v477, %v476
      %v492 = vpack.c.b16 %v479, %v478
      %v493 = vpack.c.b16 %v481, %v480
      %v494 = vpack.c.b16 %v483, %v482
      %v495 = vpack.c.b16 %v485, %v484
      %v496 = vpack.c.b16 %v487, %v486
      %v497 = vpack.c.b16 %v489, %v488
      %506 = vmatprep.subr.bf16.mxu0 0
      %507 = vmatpush1.bf16.msra.mxu0 %v490
      %508 = vmatprep.subr.bf16.mxu0 0
      %509 = vmatpush1.bf16.msra.mxu0 %v491
      %510 = vmatprep.subr.bf16.mxu0 0
      %511 = vmatpush1.bf16.msra.mxu0 %v492
      %512 = vmatprep.subr.bf16.mxu0 0
      %513 = vmatpush1.bf16.msra.mxu0 %v493
      %514 = vmatprep.subr.bf16.mxu0 0
      %515 = vmatpush1.bf16.msra.mxu0 %v494
      %516 = vmatprep.subr.bf16.mxu0 0
      %517 = vmatpush1.bf16.msra.mxu0 %v495
      %518 = vmatprep.subr.bf16.mxu0 0
      %519 = vmatpush1.bf16.msra.mxu0 %v496
      %520 = vmatprep.subr.bf16.mxu0 0
      %521 = vmatpush1.bf16.msra.mxu0 %v497
      %522 = vmatprep.subr.bf16.mxu0 0
      %523 = vmatpush1.bf16.msra.mxu0 0
      %524 = vmatprep.subr.bf16.mxu0 0
      %525 = vmatpush1.bf16.msra.mxu0 0
      %526 = vmatprep.subr.bf16.mxu0 0
      %527 = vmatpush1.bf16.msra.mxu0 0
      %528 = vmatprep.subr.bf16.mxu0 0
      %529 = vmatpush1.bf16.msra.mxu0 0
      %530 = vmatprep.subr.bf16.mxu0 0
      %531 = vmatpush1.bf16.msra.mxu0 0
      %532 = vmatprep.subr.bf16.mxu0 0
      %533 = vmatpush1.bf16.msra.mxu0 0
      %534 = vmatprep.subr.bf16.mxu0 0
      %535 = vmatpush1.bf16.msra.mxu0 0
      %536 = vmatprep.subr.bf16.mxu0 0
      %537 = vmatpush1.bf16.msra.mxu0 0
      %538 = vmatprep.mubr.bf16.mxu0 0
      %539 = vmatmul.mubr.bf16.gmra.mrb[0].mxu0 %v394
      %v540 = vpop.f32.mrb[0].mxu0
      %v541 = vadd.f32 0.0, %v540
      %v542 = vpop.f32.mrb[0].mxu0
      %v543 = vpop.f32.mrb[0].mxu0
      %v544 = vadd.f32 0.0, %v543
      %v545 = vpop.f32.mrb[0].mxu0
      %546 = vmatprep.mubr.bf16.mxu0 0
      %547 = vmatmul.mubr.bf16.gmra.mrb[0].mxu0 %v395
      %v548 = vpop.f32.mrb[0].mxu0
      %v549 = vadd.f32 0.0, %v548
      %v550 = vpop.f32.mrb[0].mxu0
      %v551 = vpop.f32.mrb[0].mxu0
      %v552 = vadd.f32 0.0, %v551
      %v553 = vpop.f32.mrb[0].mxu0
      %554 = vmatprep.mubr.bf16.mxu0 0
      %555 = vmatmul.mubr.bf16.gmra.mrb[0].mxu0 %v396
      %v556 = vpop.f32.mrb[0].mxu0
      %v557 = vadd.f32 0.0, %v556
      %v558 = vpop.f32.mrb[0].mxu0
      %v559 = vpop.f32.mrb[0].mxu0
      %v560 = vadd.f32 0.0, %v559
      %v561 = vpop.f32.mrb[0].mxu0
      %562 = vmatprep.mubr.bf16.mxu0 0
      %563 = vmatmul.mubr.bf16.gmra.mrb[0].mxu0 %v397
      %v564 = vpop.f32.mrb[0].mxu0
      %v565 = vadd.f32 0.0, %v564
      %v566 = vpop.f32.mrb[0].mxu0
      %v567 = vpop.f32.mrb[0].mxu0
      %v568 = vadd.f32 0.0, %v567
      %v569 = vpop.f32.mrb[0].mxu0
      %570 = vmatprep.mubr.bf16.mxu0 0
      %571 = vmatmul.mubr.bf16.gmra.mrb[0].mxu0 %v398
      %v572 = vpop.f32.mrb[0].mxu0
      %v573 = vadd.f32 0.0, %v572
      %v574 = vpop.f32.mrb[0].mxu0
      %v575 = vpop.f32.mrb[0].mxu0
      %v576 = vadd.f32 0.0, %v575
      %v577 = vpop.f32.mrb[0].mxu0
      %578 = vmatprep.mubr.bf16.mxu0 0
      %579 = vmatmul.mubr.bf16.gmra.mrb[0].mxu0 %v399
      %v580 = vpop.f32.mrb[0].mxu0
      %v581 = vadd.f32 0.0, %v580
      %v582 = vpop.f32.mrb[0].mxu0
      %v583 = vpop.f32.mrb[0].mxu0
      %v584 = vadd.f32 0.0, %v583
      %v585 = vpop.f32.mrb[0].mxu0
      %586 = vmatprep.mubr.bf16.mxu0 0
      %587 = vmatmul.mubr.bf16.gmra.mrb[0].mxu0 %v400
      %v588 = vpop.f32.mrb[0].mxu0
      %v589 = vadd.f32 0.0, %v588
      %v590 = vpop.f32.mrb[0].mxu0
      %v591 = vpop.f32.mrb[0].mxu0
      %v592 = vadd.f32 0.0, %v591
      %v593 = vpop.f32.mrb[0].mxu0
      %594 = vmatprep.mubr.bf16.mxu0 0
      %595 = vmatmul.mubr.bf16.gmra.mrb[0].mxu0 %v401
      %v596 = vpop.f32.mrb[0].mxu0
      %v597 = vadd.f32 0.0, %v596
      %v598 = vpop.f32.mrb[0].mxu0
      %v599 = vpop.f32.mrb[0].mxu0
      %v600 = vadd.f32 0.0, %v599
      %v601 = vpop.f32.mrb[0].mxu0
      %602 = vmatprep.mubr.bf16.mxu0 0
      %603 = vmatmul.mubr.bf16.gmra.mrb[0].mxu0 %v402
      %v604 = vpop.f32.mrb[0].mxu0
      %v605 = vadd.f32 0.0, %v604
      %v606 = vpop.f32.mrb[0].mxu0
      %v607 = vpop.f32.mrb[0].mxu0
      %v608 = vadd.f32 0.0, %v607
      %v609 = vpop.f32.mrb[0].mxu0
      %610 = vmatprep.mubr.bf16.mxu0 0
      %611 = vmatmul.mubr.bf16.gmra.mrb[0].mxu0 %v403
      %v612 = vpop.f32.mrb[0].mxu0
      %v613 = vadd.f32 0.0, %v612
      %v614 = vpop.f32.mrb[0].mxu0
      %v615 = vpop.f32.mrb[0].mxu0
      %v616 = vadd.f32 0.0, %v615
      %v617 = vpop.f32.mrb[0].mxu0
      %618 = vmatprep.mubr.bf16.mxu0 0
      %619 = vmatmul.mubr.bf16.gmra.mrb[0].mxu0 %v404
      %v620 = vpop.f32.mrb[0].mxu0
      %v621 = vadd.f32 0.0, %v620
      %v622 = vpop.f32.mrb[0].mxu0
      %v623 = vpop.f32.mrb[0].mxu0
      %v624 = vadd.f32 0.0, %v623
      %v625 = vpop.f32.mrb[0].mxu0
      %626 = vmatprep.mubr.bf16.mxu0 0
      %627 = vmatmul.mubr.bf16.gmra.mrb[0].mxu0 %v405
      %v628 = vpop.f32.mrb[0].mxu0
      %v629 = vadd.f32 0.0, %v628
      %v630 = vpop.f32.mrb[0].mxu0
      %v631 = vpop.f32.mrb[0].mxu0
      %v632 = vadd.f32 0.0, %v631
      %v633 = vpop.f32.mrb[0].mxu0
      %634 = vmatprep.mubr.bf16.mxu0 0
      %635 = vmatmul.mubr.bf16.gmra.mrb[0].mxu0 %v406
      %v636 = vpop.f32.mrb[0].mxu0
      %v637 = vadd.f32 0.0, %v636
      %v638 = vpop.f32.mrb[0].mxu0
      %v639 = vpop.f32.mrb[0].mxu0
      %v640 = vadd.f32 0.0, %v639
      %v641 = vpop.f32.mrb[0].mxu0
      %642 = vmatprep.mubr.bf16.mxu0 0
      %643 = vmatmul.mubr.bf16.gmra.mrb[0].mxu0 %v407
      %v644 = vpop.f32.mrb[0].mxu0
      %v645 = vadd.f32 0.0, %v644
      %v646 = vpop.f32.mrb[0].mxu0
      %v647 = vpop.f32.mrb[0].mxu0
      %v648 = vadd.f32 0.0, %v647
      %v649 = vpop.f32.mrb[0].mxu0
      %650 = vmatprep.mubr.bf16.mxu0 0
      %651 = vmatmul.mubr.bf16.gmra.mrb[0].mxu0 %v408
      %v652 = vpop.f32.mrb[0].mxu0
      %v653 = vadd.f32 0.0, %v652
      %v654 = vpop.f32.mrb[0].mxu0
      %v655 = vpop.f32.mrb[0].mxu0
      %v656 = vadd.f32 0.0, %v655
      %v657 = vpop.f32.mrb[0].mxu0
      %658 = vmatprep.mubr.bf16.mxu0 0
      %659 = vmatmul.mubr.bf16.gmra.mrb[0].mxu0 %v409
      %v660 = vpop.f32.mrb[0].mxu0
      %v661 = vadd.f32 0.0, %v660
      %v662 = vpop.f32.mrb[0].mxu0
      %v663 = vpop.f32.mrb[0].mxu0
      %v664 = vadd.f32 0.0, %v663
      %v665 = vpop.f32.mrb[0].mxu0
      %666 = vmatprep.mubr.bf16.mxu0 0
      %667 = vmatmul.mubr.bf16.gmra.mrb[0].mxu0 %v410
      %v668 = vpop.f32.mrb[0].mxu0
      %v669 = vadd.f32 0.0, %v668
      %v670 = vpop.f32.mrb[0].mxu0
      %v671 = vpop.f32.mrb[0].mxu0
      %v672 = vadd.f32 0.0, %v671
      %v673 = vpop.f32.mrb[0].mxu0
      %674 = vmatprep.mubr.bf16.mxu0 0
      %675 = vmatmul.mubr.bf16.gmra.mrb[0].mxu0 %v411
      %v676 = vpop.f32.mrb[0].mxu0
      %v677 = vadd.f32 0.0, %v676
      %v678 = vpop.f32.mrb[0].mxu0
      %v679 = vpop.f32.mrb[0].mxu0
      %v680 = vadd.f32 0.0, %v679
      %v681 = vpop.f32.mrb[0].mxu0
      %682 = vmatprep.mubr.bf16.mxu0 0
      %683 = vmatmul.mubr.bf16.gmra.mrb[0].mxu0 %v412
      %v684 = vpop.f32.mrb[0].mxu0
      %v685 = vadd.f32 0.0, %v684
      %v686 = vpop.f32.mrb[0].mxu0
      %v687 = vpop.f32.mrb[0].mxu0
      %v688 = vadd.f32 0.0, %v687
      %v689 = vpop.f32.mrb[0].mxu0
      %690 = vmatprep.mubr.bf16.mxu0 0
      %691 = vmatmul.mubr.bf16.gmra.mrb[0].mxu0 %v413
      %v692 = vpop.f32.mrb[0].mxu0
      %v693 = vadd.f32 0.0, %v692
      %v694 = vpop.f32.mrb[0].mxu0
      %v695 = vpop.f32.mrb[0].mxu0
      %v696 = vadd.f32 0.0, %v695
      %v697 = vpop.f32.mrb[0].mxu0
      %698 = vmatprep.mubr.bf16.mxu0 0
      %699 = vmatmul.mubr.bf16.gmra.mrb[0].mxu0 %v414
      %v700 = vpop.f32.mrb[0].mxu0
      %v701 = vadd.f32 0.0, %v700
      %v702 = vpop.f32.mrb[0].mxu0
      %v703 = vpop.f32.mrb[0].mxu0
      %v704 = vadd.f32 0.0, %v703
      %v705 = vpop.f32.mrb[0].mxu0
      %706 = vmatprep.mubr.bf16.mxu0 0
      %707 = vmatmul.mubr.bf16.gmra.mrb[0].mxu0 %v415
      %v708 = vpop.f32.mrb[0].mxu0
      %v709 = vadd.f32 0.0, %v708
      %v710 = vpop.f32.mrb[0].mxu0
      %v711 = vpop.f32.mrb[0].mxu0
      %v712 = vadd.f32 0.0, %v711
      %v713 = vpop.f32.mrb[0].mxu0
      %714 = vmatprep.mubr.bf16.mxu0 0
      %715 = vmatmul.mubr.bf16.gmra.mrb[0].mxu0 %v416
      %v716 = vpop.f32.mrb[0].mxu0
      %v717 = vadd.f32 0.0, %v716
      %v718 = vpop.f32.mrb[0].mxu0
      %v719 = vpop.f32.mrb[0].mxu0
      %v720 = vadd.f32 0.0, %v719
      %v721 = vpop.f32.mrb[0].mxu0
      %722 = vmatprep.mubr.bf16.mxu0 0
      %723 = vmatmul.mubr.bf16.gmra.mrb[0].mxu0 %v417
      %v724 = vpop.f32.mrb[0].mxu0
      %v725 = vadd.f32 0.0, %v724
      %v726 = vpop.f32.mrb[0].mxu0
      %v727 = vpop.f32.mrb[0].mxu0
      %v728 = vadd.f32 0.0, %v727
      %v729 = vpop.f32.mrb[0].mxu0
      %730 = vmatprep.mubr.bf16.mxu0 0
      %731 = vmatmul.mubr.bf16.gmra.mrb[0].mxu0 %v418
      %v732 = vpop.f32.mrb[0].mxu0
      %v733 = vadd.f32 0.0, %v732
      %v734 = vpop.f32.mrb[0].mxu0
      %v735 = vpop.f32.mrb[0].mxu0
      %v736 = vadd.f32 0.0, %v735
      %v737 = vpop.f32.mrb[0].mxu0
      %738 = vmatprep.mubr.bf16.mxu0 0
      %739 = vmatmul.mubr.bf16.gmra.mrb[0].mxu0 %v419
      %v740 = vpop.f32.mrb[0].mxu0
      %v741 = vadd.f32 0.0, %v740
      %v742 = vpop.f32.mrb[0].mxu0
      %v743 = vpop.f32.mrb[0].mxu0
      %v744 = vadd.f32 0.0, %v743
      %v745 = vpop.f32.mrb[0].mxu0
      %746 = vmatprep.mubr.bf16.mxu0 0
      %747 = vmatmul.mubr.bf16.gmra.mrb[0].mxu0 %v420
      %v748 = vpop.f32.mrb[0].mxu0
      %v749 = vadd.f32 0.0, %v748
      %v750 = vpop.f32.mrb[0].mxu0
      %v751 = vpop.f32.mrb[0].mxu0
      %v752 = vadd.f32 0.0, %v751
      %v753 = vpop.f32.mrb[0].mxu0
      %754 = vmatprep.mubr.bf16.mxu0 0
      %755 = vmatmul.mubr.bf16.gmra.mrb[0].mxu0 %v421
      %v756 = vpop.f32.mrb[0].mxu0
      %v757 = vadd.f32 0.0, %v756
      %v758 = vpop.f32.mrb[0].mxu0
      %v759 = vpop.f32.mrb[0].mxu0
      %v760 = vadd.f32 0.0, %v759
      %v761 = vpop.f32.mrb[0].mxu0
      %762 = vmatprep.mubr.bf16.mxu0 0
      %763 = vmatmul.mubr.bf16.gmra.mrb[0].mxu0 %v422
      %v764 = vpop.f32.mrb[0].mxu0
      %v765 = vadd.f32 0.0, %v764
      %v766 = vpop.f32.mrb[0].mxu0
      %v767 = vpop.f32.mrb[0].mxu0
      %v768 = vadd.f32 0.0, %v767
      %v769 = vpop.f32.mrb[0].mxu0
      %770 = vmatprep.mubr.bf16.mxu0 0
      %771 = vmatmul.mubr.bf16.gmra.mrb[0].mxu0 %v423
      %v772 = vpop.f32.mrb[0].mxu0
      %v773 = vadd.f32 0.0, %v772
      %v774 = vpop.f32.mrb[0].mxu0
      %v775 = vpop.f32.mrb[0].mxu0
      %v776 = vadd.f32 0.0, %v775
      %v777 = vpop.f32.mrb[0].mxu0
      %778 = vmatprep.mubr.bf16.mxu0 0
      %779 = vmatmul.mubr.bf16.gmra.mrb[0].mxu0 %v424
      %v780 = vpop.f32.mrb[0].mxu0
      %v781 = vadd.f32 0.0, %v780
      %v782 = vpop.f32.mrb[0].mxu0
      %v783 = vpop.f32.mrb[0].mxu0
      %v784 = vadd.f32 0.0, %v783
      %v785 = vpop.f32.mrb[0].mxu0
      %786 = vmatprep.mubr.bf16.mxu0 0
      %787 = vmatmul.mubr.bf16.gmra.mrb[0].mxu0 %v425
      %v788 = vpop.f32.mrb[0].mxu0
      %v789 = vadd.f32 0.0, %v788
      %v790 = vpop.f32.mrb[0].mxu0
      %v791 = vpop.f32.mrb[0].mxu0
      %v792 = vadd.f32 0.0, %v791
      %v793 = vpop.f32.mrb[0].mxu0
      %794 = vdwg.mxu0
      %v795 = vpack.c.bf16 %v544, %v541
      %v796 = vpack.c.bf16 %v552, %v549
      %v797 = vpack.c.bf16 %v560, %v557
      %v798 = vpack.c.bf16 %v568, %v565
      %v799 = vpack.c.bf16 %v576, %v573
      %v800 = vpack.c.bf16 %v584, %v581
      %v801 = vpack.c.bf16 %v592, %v589
      %v802 = vpack.c.bf16 %v600, %v597
      %v803 = vpack.c.bf16 %v608, %v605
      %v804 = vpack.c.bf16 %v616, %v613
      %v805 = vpack.c.bf16 %v624, %v621
      %v806 = vpack.c.bf16 %v632, %v629
      %v807 = vpack.c.bf16 %v640, %v637
      %v808 = vpack.c.bf16 %v648, %v645
      %v809 = vpack.c.bf16 %v656, %v653
      %v810 = vpack.c.bf16 %v664, %v661
      %v811 = vpack.c.bf16 %v672, %v669
      %v812 = vpack.c.bf16 %v680, %v677
      %v813 = vpack.c.bf16 %v688, %v685
      %v814 = vpack.c.bf16 %v696, %v693
      %v815 = vpack.c.bf16 %v704, %v701
      %v816 = vpack.c.bf16 %v712, %v709
      %v817 = vpack.c.bf16 %v720, %v717
      %v818 = vpack.c.bf16 %v728, %v725
      %v819 = vpack.c.bf16 %v736, %v733
      %v820 = vpack.c.bf16 %v744, %v741
      %v821 = vpack.c.bf16 %v752, %v749
      %v822 = vpack.c.bf16 %v760, %v757
      %v823 = vpack.c.bf16 %v768, %v765
      %v824 = vpack.c.bf16 %v776, %v773
      %v825 = vpack.c.bf16 %v784, %v781
      %v826 = vpack.c.bf16 %v792, %v789
      %v859 = vunpack.c.l.b16 %v795
      %v860 = vunpack.c.h.b16 %v795
      %v861 = vunpack.c.l.b16 %v796
      %v862 = vunpack.c.h.b16 %v796
      %v863 = vunpack.c.l.b16 %v797
      %v864 = vunpack.c.h.b16 %v797
      %v865 = vunpack.c.l.b16 %v798
      %v866 = vunpack.c.h.b16 %v798
      %v867 = vunpack.c.l.b16 %v799
      %v868 = vunpack.c.h.b16 %v799
      %v869 = vunpack.c.l.b16 %v800
      %v870 = vunpack.c.h.b16 %v800
      %v871 = vunpack.c.l.b16 %v801
      %v872 = vunpack.c.h.b16 %v801
      %v873 = vunpack.c.l.b16 %v802
      %v874 = vunpack.c.h.b16 %v802
      %v875 = vunpack.c.l.b16 %v803
      %v876 = vunpack.c.h.b16 %v803
      %v877 = vunpack.c.l.b16 %v804
      %v878 = vunpack.c.h.b16 %v804
      %v879 = vunpack.c.l.b16 %v805
      %v880 = vunpack.c.h.b16 %v805
      %v881 = vunpack.c.l.b16 %v806
      %v882 = vunpack.c.h.b16 %v806
      %v883 = vunpack.c.l.b16 %v807
      %v884 = vunpack.c.h.b16 %v807
      %v885 = vunpack.c.l.b16 %v808
      %v886 = vunpack.c.h.b16 %v808
      %v887 = vunpack.c.l.b16 %v809
      %v888 = vunpack.c.h.b16 %v809
      %v889 = vunpack.c.l.b16 %v810
      %v890 = vunpack.c.h.b16 %v810
      %v891 = vunpack.c.l.b16 %v811
      %v892 = vunpack.c.h.b16 %v811
      %v893 = vunpack.c.l.b16 %v812
      %v894 = vunpack.c.h.b16 %v812
      %v895 = vunpack.c.l.b16 %v813
      %v896 = vunpack.c.h.b16 %v813
      %v897 = vunpack.c.l.b16 %v814
      %v898 = vunpack.c.h.b16 %v814
      %v899 = vunpack.c.l.b16 %v815
      %v900 = vunpack.c.h.b16 %v815
      %v901 = vunpack.c.l.b16 %v816
      %v902 = vunpack.c.h.b16 %v816
      %v903 = vunpack.c.l.b16 %v817
      %v904 = vunpack.c.h.b16 %v817
      %v905 = vunpack.c.l.b16 %v818
      %v906 = vunpack.c.h.b16 %v818
      %v907 = vunpack.c.l.b16 %v819
      %v908 = vunpack.c.h.b16 %v819
      %v909 = vunpack.c.l.b16 %v820
      %v910 = vunpack.c.h.b16 %v820
      %v911 = vunpack.c.l.b16 %v821
      %v912 = vunpack.c.h.b16 %v821
      %v913 = vunpack.c.l.b16 %v822
      %v914 = vunpack.c.h.b16 %v822
      %v915 = vunpack.c.l.b16 %v823
      %v916 = vunpack.c.h.b16 %v823
      %v917 = vunpack.c.l.b16 %v824
      %v918 = vunpack.c.h.b16 %v824
      %v919 = vunpack.c.l.b16 %v825
      %v920 = vunpack.c.h.b16 %v825
      %v921 = vunpack.c.l.b16 %v826
      %v922 = vunpack.c.h.b16 %v826
      %v923 = vpack.c.b16 %v859, %v859
      %v924 = vpack.c.b16 %v860, %v860
      %v925 = vpack.c.b16 %v861, %v861
      %v926 = vpack.c.b16 %v862, %v862
      %v927 = vpack.c.b16 %v863, %v863
      %v928 = vpack.c.b16 %v864, %v864
      %v929 = vpack.c.b16 %v865, %v865
      %v930 = vpack.c.b16 %v866, %v866
      %v931 = vpack.c.b16 %v867, %v867
      %v932 = vpack.c.b16 %v868, %v868
      %v933 = vpack.c.b16 %v869, %v869
      %v934 = vpack.c.b16 %v870, %v870
      %v935 = vpack.c.b16 %v871, %v871
      %v936 = vpack.c.b16 %v872, %v872
      %v937 = vpack.c.b16 %v873, %v873
      %v938 = vpack.c.b16 %v874, %v874
      %v939 = vpack.c.b16 %v875, %v875
      %v940 = vpack.c.b16 %v876, %v876
      %v941 = vpack.c.b16 %v877, %v877
      %v942 = vpack.c.b16 %v878, %v878
      %v943 = vpack.c.b16 %v879, %v879
      %v944 = vpack.c.b16 %v880, %v880
      %v945 = vpack.c.b16 %v881, %v881
      %v946 = vpack.c.b16 %v882, %v882
      %v947 = vpack.c.b16 %v883, %v883
      %v948 = vpack.c.b16 %v884, %v884
      %v949 = vpack.c.b16 %v885, %v885
      %v950 = vpack.c.b16 %v886, %v886
      %v951 = vpack.c.b16 %v887, %v887
      %v952 = vpack.c.b16 %v888, %v888
      %v953 = vpack.c.b16 %v889, %v889
      %v954 = vpack.c.b16 %v890, %v890
      %v955 = vpack.c.b16 %v891, %v891
      %v956 = vpack.c.b16 %v892, %v892
      %v957 = vpack.c.b16 %v893, %v893
      %v958 = vpack.c.b16 %v894, %v894
      %v959 = vpack.c.b16 %v895, %v895
      %v960 = vpack.c.b16 %v896, %v896
      %v961 = vpack.c.b16 %v897, %v897
      %v962 = vpack.c.b16 %v898, %v898
      %v963 = vpack.c.b16 %v899, %v899
      %v964 = vpack.c.b16 %v900, %v900
      %v965 = vpack.c.b16 %v901, %v901
      %v966 = vpack.c.b16 %v902, %v902
      %v967 = vpack.c.b16 %v903, %v903
      %v968 = vpack.c.b16 %v904, %v904
      %v969 = vpack.c.b16 %v905, %v905
      %v970 = vpack.c.b16 %v906, %v906
      %v971 = vpack.c.b16 %v907, %v907
      %v972 = vpack.c.b16 %v908, %v908
      %v973 = vpack.c.b16 %v909, %v909
      %v974 = vpack.c.b16 %v910, %v910
      %v975 = vpack.c.b16 %v911, %v911
      %v976 = vpack.c.b16 %v912, %v912
      %v977 = vpack.c.b16 %v913, %v913
      %v978 = vpack.c.b16 %v914, %v914
      %v979 = vpack.c.b16 %v915, %v915
      %v980 = vpack.c.b16 %v916, %v916
      %v981 = vpack.c.b16 %v917, %v917
      %v982 = vpack.c.b16 %v918, %v918
      %v983 = vpack.c.b16 %v919, %v919
      %v984 = vpack.c.b16 %v920, %v920
      %v985 = vpack.c.b16 %v921, %v921
      %v986 = vpack.c.b16 %v922, %v922
      %1051 = vst [vmem:[%s179] sm:$0xf] %v923
      %1052 = vst [vmem:[%s179 + $0x4] sm:$0xf] %v924
      %1053 = vst [vmem:[%s179 + $0x8] sm:$0xf] %v925
      %1054 = vst [vmem:[%s179 + $0xc] sm:$0xf] %v926
      %1055 = vst [vmem:[%s179 + $0x10] sm:$0xf] %v927
      %1056 = vst [vmem:[%s179 + $0x14] sm:$0xf] %v928
      %1057 = vst [vmem:[%s179 + $0x18] sm:$0xf] %v929
      %1058 = vst [vmem:[%s179 + $0x1c] sm:$0xf] %v930
      %1059 = vst [vmem:[%s179 + $0x20] sm:$0xf] %v931
      %1060 = vst [vmem:[%s179 + $0x24] sm:$0xf] %v932
      %1061 = vst [vmem:[%s179 + $0x28] sm:$0xf] %v933
      %1062 = vst [vmem:[%s179 + $0x2c] sm:$0xf] %v934
      %1063 = vst [vmem:[%s179 + $0x30] sm:$0xf] %v935
      %1064 = vst [vmem:[%s179 + $0x34] sm:$0xf] %v936
      %1065 = vst [vmem:[%s179 + $0x38] sm:$0xf] %v937
      %1066 = vst [vmem:[%s179 + $0x3c] sm:$0xf] %v938
      %1067 = vst [vmem:[%s179 + $0x40] sm:$0xf] %v939
      %1068 = vst [vmem:[%s179 + $0x44] sm:$0xf] %v940
      %1069 = vst [vmem:[%s179 + $0x48] sm:$0xf] %v941
      %1070 = vst [vmem:[%s179 + $0x4c] sm:$0xf] %v942
      %1071 = vst [vmem:[%s179 + $0x50] sm:$0xf] %v943
      %1072 = vst [vmem:[%s179 + $0x54] sm:$0xf] %v944
      %1073 = vst [vmem:[%s179 + $0x58] sm:$0xf] %v945
      %1074 = vst [vmem:[%s179 + $0x5c] sm:$0xf] %v946
      %1075 = vst [vmem:[%s179 + $0x60] sm:$0xf] %v947
      %1076 = vst [vmem:[%s179 + $0x64] sm:$0xf] %v948
      %1077 = vst [vmem:[%s179 + $0x68] sm:$0xf] %v949
      %1078 = vst [vmem:[%s179 + $0x6c] sm:$0xf] %v950
      %1079 = vst [vmem:[%s179 + $0x70] sm:$0xf] %v951
      %1080 = vst [vmem:[%s179 + $0x74] sm:$0xf] %v952
      %1081 = vst [vmem:[%s179 + $0x78] sm:$0xf] %v953
      %1082 = vst [vmem:[%s179 + $0x7c] sm:$0xf] %v954
      %1083 = vst [vmem:[%s179 + $0x80] sm:$0xf] %v955
      %1084 = vst [vmem:[%s179 + $0x84] sm:$0xf] %v956
      %1085 = vst [vmem:[%s179 + $0x88] sm:$0xf] %v957
      %1086 = vst [vmem:[%s179 + $0x8c] sm:$0xf] %v958
      %1087 = vst [vmem:[%s179 + $0x90] sm:$0xf] %v959
      %1088 = vst [vmem:[%s179 + $0x94] sm:$0xf] %v960
      %1089 = vst [vmem:[%s179 + $0x98] sm:$0xf] %v961
      %1090 = vst [vmem:[%s179 + $0x9c] sm:$0xf] %v962
      %1091 = vst [vmem:[%s179 + $0xa0] sm:$0xf] %v963
      %1092 = vst [vmem:[%s179 + $0xa4] sm:$0xf] %v964
      %1093 = vst [vmem:[%s179 + $0xa8] sm:$0xf] %v965
      %1094 = vst [vmem:[%s179 + $0xac] sm:$0xf] %v966
      %1095 = vst [vmem:[%s179 + $0xb0] sm:$0xf] %v967
      %1096 = vst [vmem:[%s179 + $0xb4] sm:$0xf] %v968
      %1097 = vst [vmem:[%s179 + $0xb8] sm:$0xf] %v969
      %1098 = vst [vmem:[%s179 + $0xbc] sm:$0xf] %v970
      %1099 = vst [vmem:[%s179 + $0xc0] sm:$0xf] %v971
      %1100 = vst [vmem:[%s179 + $0xc4] sm:$0xf] %v972
      %1101 = vst [vmem:[%s179 + $0xc8] sm:$0xf] %v973
      %1102 = vst [vmem:[%s179 + $0xcc] sm:$0xf] %v974
      %1103 = vst [vmem:[%s179 + $0xd0] sm:$0xf] %v975
      %1104 = vst [vmem:[%s179 + $0xd4] sm:$0xf] %v976
      %1105 = vst [vmem:[%s179 + $0xd8] sm:$0xf] %v977
      %1106 = vst [vmem:[%s179 + $0xdc] sm:$0xf] %v978
      %1107 = vst [vmem:[%s179 + $0xe0] sm:$0xf] %v979
      %1108 = vst [vmem:[%s179 + $0xe4] sm:$0xf] %v980
      %1109 = vst [vmem:[%s179 + $0xe8] sm:$0xf] %v981
      %1110 = vst [vmem:[%s179 + $0xec] sm:$0xf] %v982
      %1111 = vst [vmem:[%s179 + $0xf0] sm:$0xf] %v983
      %1112 = vst [vmem:[%s179 + $0xf4] sm:$0xf] %v984
      %1113 = vst [vmem:[%s179 + $0xf8] sm:$0xf] %v985
      %1114 = vst [vmem:[%s179 + $0xfc] sm:$0xf] %v986
      %v1115 = vlaneseq
      %v1116 = vshrl.u32 %v1115, 7
      %v1117 = vadd.s32 %v1116, 8
      %v1118 = vadd.s32 %v1116, 16
      %v1119 = vadd.s32 %v1116, 24
      %v1120 = vadd.s32 %v1116, 32
      %v1121 = vadd.s32 %v1116, 40
      %v1122 = vadd.s32 %v1116, 48
      %v1123 = vadd.s32 %v1116, 56
      %v1124 = vadd.s32 %v1116, 64
      %v1125 = vadd.s32 %v1116, 72
      %v1126 = vadd.s32 %v1116, 80
      %v1127 = vadd.s32 %v1116, 88
      %v1128 = vadd.s32 %v1116, 96
      %v1129 = vadd.s32 %v1116, 104
      %v1130 = vadd.s32 %v1116, 112
      %v1131 = vadd.s32 %v1116, 120
      %v1132 = vadd.s32 %v1116, 128
      %v1133 = vadd.s32 %v1116, 136
      %v1134 = vadd.s32 %v1116, 144
      %v1135 = vadd.s32 %v1116, 152
      %v1136 = vadd.s32 %v1116, 160
      %v1137 = vadd.s32 %v1116, 168
      %v1138 = vadd.s32 %v1116, 176
      %v1139 = vadd.s32 %v1116, 184
      %v1140 = vadd.s32 %v1116, 192
      %v1141 = vadd.s32 %v1116, 200
      %v1142 = vadd.s32 %v1116, 208
      %v1143 = vadd.s32 %v1116, 216
      %v1144 = vadd.s32 %v1116, 224
      %v1145 = vadd.s32 %v1116, 232
      %v1146 = vadd.s32 %v1116, 240
      %v1147 = vadd.s32 %v1116, 248
      %v1148 = vadd.s32 %v1116, 256
      %v1149 = vadd.s32 %v1116, 264
      %v1150 = vadd.s32 %v1116, 272
      %v1151 = vadd.s32 %v1116, 280
      %v1152 = vadd.s32 %v1116, 288
      %v1153 = vadd.s32 %v1116, 296
      %v1154 = vadd.s32 %v1116, 304
      %v1155 = vadd.s32 %v1116, 312
      %v1156 = vadd.s32 %v1116, 320
      %v1157 = vadd.s32 %v1116, 328
      %v1158 = vadd.s32 %v1116, 336
      %v1159 = vadd.s32 %v1116, 344
      %v1160 = vadd.s32 %v1116, 352
      %v1161 = vadd.s32 %v1116, 360
      %v1162 = vadd.s32 %v1116, 368
      %v1163 = vadd.s32 %v1116, 376
      %v1164 = vadd.s32 %v1116, 384
      %v1165 = vadd.s32 %v1116, 392
      %v1166 = vadd.s32 %v1116, 400
      %v1167 = vadd.s32 %v1116, 408
      %v1168 = vadd.s32 %v1116, 416
      %v1169 = vadd.s32 %v1116, 424
      %v1170 = vadd.s32 %v1116, 432
      %v1171 = vadd.s32 %v1116, 440
      %v1172 = vadd.s32 %v1116, 448
      %v1173 = vadd.s32 %v1116, 456
      %v1174 = vadd.s32 %v1116, 464
      %v1175 = vadd.s32 %v1116, 472
      %v1176 = vadd.s32 %v1116, 480
      %v1177 = vadd.s32 %v1116, 488
      %v1178 = vadd.s32 %v1116, 496
      %v1179 = vadd.s32 %v1116, 504
      %s1180 = smul.u32 %s15, 512
      %v1181 = vstv %s1180
      %v1182 = vadd.s32 %v1116, %v1181
      %v1183 = vadd.s32 %v1117, %v1181
      %v1184 = vadd.s32 %v1118, %v1181
      %v1185 = vadd.s32 %v1119, %v1181
      %v1186 = vadd.s32 %v1120, %v1181
      %v1187 = vadd.s32 %v1121, %v1181
      %v1188 = vadd.s32 %v1122, %v1181
      %v1189 = vadd.s32 %v1123, %v1181
      %v1190 = vadd.s32 %v1124, %v1181
      %v1191 = vadd.s32 %v1125, %v1181
      %v1192 = vadd.s32 %v1126, %v1181
      %v1193 = vadd.s32 %v1127, %v1181
      %v1194 = vadd.s32 %v1128, %v1181
      %v1195 = vadd.s32 %v1129, %v1181
      %v1196 = vadd.s32 %v1130, %v1181
      %v1197 = vadd.s32 %v1131, %v1181
      %v1198 = vadd.s32 %v1132, %v1181
      %v1199 = vadd.s32 %v1133, %v1181
      %v1200 = vadd.s32 %v1134, %v1181
      %v1201 = vadd.s32 %v1135, %v1181
      %v1202 = vadd.s32 %v1136, %v1181
      %v1203 = vadd.s32 %v1137, %v1181
      %v1204 = vadd.s32 %v1138, %v1181
      %v1205 = vadd.s32 %v1139, %v1181
      %v1206 = vadd.s32 %v1140, %v1181
      %v1207 = vadd.s32 %v1141, %v1181
      %v1208 = vadd.s32 %v1142, %v1181
      %v1209 = vadd.s32 %v1143, %v1181
      %v1210 = vadd.s32 %v1144, %v1181
      %v1211 = vadd.s32 %v1145, %v1181
      %v1212 = vadd.s32 %v1146, %v1181
      %v1213 = vadd.s32 %v1147, %v1181
      %v1214 = vadd.s32 %v1148, %v1181
      %v1215 = vadd.s32 %v1149, %v1181
      %v1216 = vadd.s32 %v1150, %v1181
      %v1217 = vadd.s32 %v1151, %v1181
      %v1218 = vadd.s32 %v1152, %v1181
      %v1219 = vadd.s32 %v1153, %v1181
      %v1220 = vadd.s32 %v1154, %v1181
      %v1221 = vadd.s32 %v1155, %v1181
      %v1222 = vadd.s32 %v1156, %v1181
      %v1223 = vadd.s32 %v1157, %v1181
      %v1224 = vadd.s32 %v1158, %v1181
      %v1225 = vadd.s32 %v1159, %v1181
      %v1226 = vadd.s32 %v1160, %v1181
      %v1227 = vadd.s32 %v1161, %v1181
      %v1228 = vadd.s32 %v1162, %v1181
      %v1229 = vadd.s32 %v1163, %v1181
      %v1230 = vadd.s32 %v1164, %v1181
      %v1231 = vadd.s32 %v1165, %v1181
      %v1232 = vadd.s32 %v1166, %v1181
      %v1233 = vadd.s32 %v1167, %v1181
      %v1234 = vadd.s32 %v1168, %v1181
      %v1235 = vadd.s32 %v1169, %v1181
      %v1236 = vadd.s32 %v1170, %v1181
      %v1237 = vadd.s32 %v1171, %v1181
      %v1238 = vadd.s32 %v1172, %v1181
      %v1239 = vadd.s32 %v1173, %v1181
      %v1240 = vadd.s32 %v1174, %v1181
      %v1241 = vadd.s32 %v1175, %v1181
      %v1242 = vadd.s32 %v1176, %v1181
      %v1243 = vadd.s32 %v1177, %v1181
      %v1244 = vadd.s32 %v1178, %v1181
      %v1245 = vadd.s32 %v1179, %v1181
      %vm1246 = vcmp.lt.s32.totalorder %v1182, 1024
      %vm1247 = vcmp.lt.s32.totalorder %v1183, 1024
      %vm1248 = vcmp.lt.s32.totalorder %v1184, 1024
      %vm1249 = vcmp.lt.s32.totalorder %v1185, 1024
      %vm1250 = vcmp.lt.s32.totalorder %v1186, 1024
      %vm1251 = vcmp.lt.s32.totalorder %v1187, 1024
      %vm1252 = vcmp.lt.s32.totalorder %v1188, 1024
      %vm1253 = vcmp.lt.s32.totalorder %v1189, 1024
      %vm1254 = vcmp.lt.s32.totalorder %v1190, 1024
      %vm1255 = vcmp.lt.s32.totalorder %v1191, 1024
      %vm1256 = vcmp.lt.s32.totalorder %v1192, 1024
      %vm1257 = vcmp.lt.s32.totalorder %v1193, 1024
      %vm1258 = vcmp.lt.s32.totalorder %v1194, 1024
      %vm1259 = vcmp.lt.s32.totalorder %v1195, 1024
      %vm1260 = vcmp.lt.s32.totalorder %v1196, 1024
      %vm1261 = vcmp.lt.s32.totalorder %v1197, 1024
      %vm1262 = vcmp.lt.s32.totalorder %v1198, 1024
      %vm1263 = vcmp.lt.s32.totalorder %v1199, 1024
      %vm1264 = vcmp.lt.s32.totalorder %v1200, 1024
      %vm1265 = vcmp.lt.s32.totalorder %v1201, 1024
      %vm1266 = vcmp.lt.s32.totalorder %v1202, 1024
      %vm1267 = vcmp.lt.s32.totalorder %v1203, 1024
      %vm1268 = vcmp.lt.s32.totalorder %v1204, 1024
      %vm1269 = vcmp.lt.s32.totalorder %v1205, 1024
      %vm1270 = vcmp.lt.s32.totalorder %v1206, 1024
      %vm1271 = vcmp.lt.s32.totalorder %v1207, 1024
      %vm1272 = vcmp.lt.s32.totalorder %v1208, 1024
      %vm1273 = vcmp.lt.s32.totalorder %v1209, 1024
      %vm1274 = vcmp.lt.s32.totalorder %v1210, 1024
      %vm1275 = vcmp.lt.s32.totalorder %v1211, 1024
      %vm1276 = vcmp.lt.s32.totalorder %v1212, 1024
      %vm1277 = vcmp.lt.s32.totalorder %v1213, 1024
      %vm1278 = vcmp.lt.s32.totalorder %v1214, 1024
      %vm1279 = vcmp.lt.s32.totalorder %v1215, 1024
      %vm1280 = vcmp.lt.s32.totalorder %v1216, 1024
      %vm1281 = vcmp.lt.s32.totalorder %v1217, 1024
      %vm1282 = vcmp.lt.s32.totalorder %v1218, 1024
      %vm1283 = vcmp.lt.s32.totalorder %v1219, 1024
      %vm1284 = vcmp.lt.s32.totalorder %v1220, 1024
      %vm1285 = vcmp.lt.s32.totalorder %v1221, 1024
      %vm1286 = vcmp.lt.s32.totalorder %v1222, 1024
      %vm1287 = vcmp.lt.s32.totalorder %v1223, 1024
      %vm1288 = vcmp.lt.s32.totalorder %v1224, 1024
      %vm1289 = vcmp.lt.s32.totalorder %v1225, 1024
      %vm1290 = vcmp.lt.s32.totalorder %v1226, 1024
      %vm1291 = vcmp.lt.s32.totalorder %v1227, 1024
      %vm1292 = vcmp.lt.s32.totalorder %v1228, 1024
      %vm1293 = vcmp.lt.s32.totalorder %v1229, 1024
      %vm1294 = vcmp.lt.s32.totalorder %v1230, 1024
      %vm1295 = vcmp.lt.s32.totalorder %v1231, 1024
      %vm1296 = vcmp.lt.s32.totalorder %v1232, 1024
      %vm1297 = vcmp.lt.s32.totalorder %v1233, 1024
      %vm1298 = vcmp.lt.s32.totalorder %v1234, 1024
      %vm1299 = vcmp.lt.s32.totalorder %v1235, 1024
      %vm1300 = vcmp.lt.s32.totalorder %v1236, 1024
      %vm1301 = vcmp.lt.s32.totalorder %v1237, 1024
      %vm1302 = vcmp.lt.s32.totalorder %v1238, 1024
      %vm1303 = vcmp.lt.s32.totalorder %v1239, 1024
      %vm1304 = vcmp.lt.s32.totalorder %v1240, 1024
      %vm1305 = vcmp.lt.s32.totalorder %v1241, 1024
      %vm1306 = vcmp.lt.s32.totalorder %v1242, 1024
      %vm1307 = vcmp.lt.s32.totalorder %v1243, 1024
      %vm1308 = vcmp.lt.s32.totalorder %v1244, 1024
      %vm1309 = vcmp.lt.s32.totalorder %v1245, 1024
      %v1310 = vsel %vm1246, 1, 0
      %v1311 = vsel %vm1247, 1, 0
      %v1312 = vsel %vm1248, 1, 0
      %v1313 = vsel %vm1249, 1, 0
      %v1314 = vsel %vm1250, 1, 0
      %v1315 = vsel %vm1251, 1, 0
      %v1316 = vsel %vm1252, 1, 0
      %v1317 = vsel %vm1253, 1, 0
      %v1318 = vsel %vm1254, 1, 0
      %v1319 = vsel %vm1255, 1, 0
      %v1320 = vsel %vm1256, 1, 0
      %v1321 = vsel %vm1257, 1, 0
      %v1322 = vsel %vm1258, 1, 0
      %v1323 = vsel %vm1259, 1, 0
      %v1324 = vsel %vm1260, 1, 0
      %v1325 = vsel %vm1261, 1, 0
      %v1326 = vsel %vm1262, 1, 0
      %v1327 = vsel %vm1263, 1, 0
      %v1328 = vsel %vm1264, 1, 0
      %v1329 = vsel %vm1265, 1, 0
      %v1330 = vsel %vm1266, 1, 0
      %v1331 = vsel %vm1267, 1, 0
      %v1332 = vsel %vm1268, 1, 0
      %v1333 = vsel %vm1269, 1, 0
      %v1334 = vsel %vm1270, 1, 0
      %v1335 = vsel %vm1271, 1, 0
      %v1336 = vsel %vm1272, 1, 0
      %v1337 = vsel %vm1273, 1, 0
      %v1338 = vsel %vm1274, 1, 0
      %v1339 = vsel %vm1275, 1, 0
      %v1340 = vsel %vm1276, 1, 0
      %v1341 = vsel %vm1277, 1, 0
      %v1342 = vsel %vm1278, 1, 0
      %v1343 = vsel %vm1279, 1, 0
      %v1344 = vsel %vm1280, 1, 0
      %v1345 = vsel %vm1281, 1, 0
      %v1346 = vsel %vm1282, 1, 0
      %v1347 = vsel %vm1283, 1, 0
      %v1348 = vsel %vm1284, 1, 0
      %v1349 = vsel %vm1285, 1, 0
      %v1350 = vsel %vm1286, 1, 0
      %v1351 = vsel %vm1287, 1, 0
      %v1352 = vsel %vm1288, 1, 0
      %v1353 = vsel %vm1289, 1, 0
      %v1354 = vsel %vm1290, 1, 0
      %v1355 = vsel %vm1291, 1, 0
      %v1356 = vsel %vm1292, 1, 0
      %v1357 = vsel %vm1293, 1, 0
      %v1358 = vsel %vm1294, 1, 0
      %v1359 = vsel %vm1295, 1, 0
      %v1360 = vsel %vm1296, 1, 0
      %v1361 = vsel %vm1297, 1, 0
      %v1362 = vsel %vm1298, 1, 0
      %v1363 = vsel %vm1299, 1, 0
      %v1364 = vsel %vm1300, 1, 0
      %v1365 = vsel %vm1301, 1, 0
      %v1366 = vsel %vm1302, 1, 0
      %v1367 = vsel %vm1303, 1, 0
      %v1368 = vsel %vm1304, 1, 0
      %v1369 = vsel %vm1305, 1, 0
      %v1370 = vsel %vm1306, 1, 0
      %v1371 = vsel %vm1307, 1, 0
      %v1372 = vsel %vm1308, 1, 0
      %v1373 = vsel %vm1309, 1, 0
      %v1374 = vcvt.s32.f32 %v1310
      %v1375 = vcvt.s32.f32 %v1311
      %v1376 = vcvt.s32.f32 %v1312
      %v1377 = vcvt.s32.f32 %v1313
      %v1378 = vcvt.s32.f32 %v1314
      %v1379 = vcvt.s32.f32 %v1315
      %v1380 = vcvt.s32.f32 %v1316
      %v1381 = vcvt.s32.f32 %v1317
      %v1382 = vcvt.s32.f32 %v1318
      %v1383 = vcvt.s32.f32 %v1319
      %v1384 = vcvt.s32.f32 %v1320
      %v1385 = vcvt.s32.f32 %v1321
      %v1386 = vcvt.s32.f32 %v1322
      %v1387 = vcvt.s32.f32 %v1323
      %v1388 = vcvt.s32.f32 %v1324
      %v1389 = vcvt.s32.f32 %v1325
      %v1390 = vcvt.s32.f32 %v1326
      %v1391 = vcvt.s32.f32 %v1327
      %v1392 = vcvt.s32.f32 %v1328
      %v1393 = vcvt.s32.f32 %v1329
      %v1394 = vcvt.s32.f32 %v1330
      %v1395 = vcvt.s32.f32 %v1331
      %v1396 = vcvt.s32.f32 %v1332
      %v1397 = vcvt.s32.f32 %v1333
      %v1398 = vcvt.s32.f32 %v1334
      %v1399 = vcvt.s32.f32 %v1335
      %v1400 = vcvt.s32.f32 %v1336
      %v1401 = vcvt.s32.f32 %v1337
      %v1402 = vcvt.s32.f32 %v1338
      %v1403 = vcvt.s32.f32 %v1339
      %v1404 = vcvt.s32.f32 %v1340
      %v1405 = vcvt.s32.f32 %v1341
      %v1406 = vcvt.s32.f32 %v1342
      %v1407 = vcvt.s32.f32 %v1343
      %v1408 = vcvt.s32.f32 %v1344
      %v1409 = vcvt.s32.f32 %v1345
      %v1410 = vcvt.s32.f32 %v1346
      %v1411 = vcvt.s32.f32 %v1347
      %v1412 = vcvt.s32.f32 %v1348
      %v1413 = vcvt.s32.f32 %v1349
      %v1414 = vcvt.s32.f32 %v1350
      %v1415 = vcvt.s32.f32 %v1351
      %v1416 = vcvt.s32.f32 %v1352
      %v1417 = vcvt.s32.f32 %v1353
      %v1418 = vcvt.s32.f32 %v1354
      %v1419 = vcvt.s32.f32 %v1355
      %v1420 = vcvt.s32.f32 %v1356
      %v1421 = vcvt.s32.f32 %v1357
      %v1422 = vcvt.s32.f32 %v1358
      %v1423 = vcvt.s32.f32 %v1359
      %v1424 = vcvt.s32.f32 %v1360
      %v1425 = vcvt.s32.f32 %v1361
      %v1426 = vcvt.s32.f32 %v1362
      %v1427 = vcvt.s32.f32 %v1363
      %v1428 = vcvt.s32.f32 %v1364
      %v1429 = vcvt.s32.f32 %v1365
      %v1430 = vcvt.s32.f32 %v1366
      %v1431 = vcvt.s32.f32 %v1367
      %v1432 = vcvt.s32.f32 %v1368
      %v1433 = vcvt.s32.f32 %v1369
      %v1434 = vcvt.s32.f32 %v1370
      %v1435 = vcvt.s32.f32 %v1371
      %v1436 = vcvt.s32.f32 %v1372
      %v1437 = vcvt.s32.f32 %v1373
      %s1438 = ssub.s32 1024, %s1180
      %p1439 = scmp.lt.s32.totalorder %s1438, 512
      %s1440 = scalar_select %p1439, %s1438, 512
      %s1441 = scvt.s32.f32 %s1440
      %v1442 = vmul.f32 %v541, %v1374
      %v1443 = vmul.f32 %v544, %v1375
      %v1444 = vmul.f32 %v549, %v1376
      %v1445 = vmul.f32 %v552, %v1377
      %v1446 = vmul.f32 %v557, %v1378
      %v1447 = vmul.f32 %v560, %v1379
      %v1448 = vmul.f32 %v565, %v1380
      %v1449 = vmul.f32 %v568, %v1381
      %v1450 = vmul.f32 %v573, %v1382
      %v1451 = vmul.f32 %v576, %v1383
      %v1452 = vmul.f32 %v581, %v1384
      %v1453 = vmul.f32 %v584, %v1385
      %v1454 = vmul.f32 %v589, %v1386
      %v1455 = vmul.f32 %v592, %v1387
      %v1456 = vmul.f32 %v597, %v1388
      %v1457 = vmul.f32 %v600, %v1389
      %v1458 = vmul.f32 %v605, %v1390
      %v1459 = vmul.f32 %v608, %v1391
      %v1460 = vmul.f32 %v613, %v1392
      %v1461 = vmul.f32 %v616, %v1393
      %v1462 = vmul.f32 %v621, %v1394
      %v1463 = vmul.f32 %v624, %v1395
      %v1464 = vmul.f32 %v629, %v1396
      %v1465 = vmul.f32 %v632, %v1397
      %v1466 = vmul.f32 %v637, %v1398
      %v1467 = vmul.f32 %v640, %v1399
      %v1468 = vmul.f32 %v645, %v1400
      %v1469 = vmul.f32 %v648, %v1401
      %v1470 = vmul.f32 %v653, %v1402
      %v1471 = vmul.f32 %v656, %v1403
      %v1472 = vmul.f32 %v661, %v1404
      %v1473 = vmul.f32 %v664, %v1405
      %v1474 = vmul.f32 %v669, %v1406
      %v1475 = vmul.f32 %v672, %v1407
      %v1476 = vmul.f32 %v677, %v1408
      %v1477 = vmul.f32 %v680, %v1409
      %v1478 = vmul.f32 %v685, %v1410
      %v1479 = vmul.f32 %v688, %v1411
      %v1480 = vmul.f32 %v693, %v1412
      %v1481 = vmul.f32 %v696, %v1413
      %v1482 = vmul.f32 %v701, %v1414
      %v1483 = vmul.f32 %v704, %v1415
      %v1484 = vmul.f32 %v709, %v1416
      %v1485 = vmul.f32 %v712, %v1417
      %v1486 = vmul.f32 %v717, %v1418
      %v1487 = vmul.f32 %v720, %v1419
      %v1488 = vmul.f32 %v725, %v1420
      %v1489 = vmul.f32 %v728, %v1421
      %v1490 = vmul.f32 %v733, %v1422
      %v1491 = vmul.f32 %v736, %v1423
      %v1492 = vmul.f32 %v741, %v1424
      %v1493 = vmul.f32 %v744, %v1425
      %v1494 = vmul.f32 %v749, %v1426
      %v1495 = vmul.f32 %v752, %v1427
      %v1496 = vmul.f32 %v757, %v1428
      %v1497 = vmul.f32 %v760, %v1429
      %v1498 = vmul.f32 %v765, %v1430
      %v1499 = vmul.f32 %v768, %v1431
      %v1500 = vmul.f32 %v773, %v1432
      %v1501 = vmul.f32 %v776, %v1433
      %v1502 = vmul.f32 %v781, %v1434
      %v1503 = vmul.f32 %v784, %v1435
      %v1504 = vmul.f32 %v789, %v1436
      %v1505 = vmul.f32 %v792, %v1437
      %v1506 = vadd.f32 %v1442, %v1443
      %v1507 = vadd.f32 %v1506, %v1444
      %v1508 = vadd.f32 %v1507, %v1445
      %v1509 = vadd.f32 %v1508, %v1446
      %v1510 = vadd.f32 %v1509, %v1447
      %v1511 = vadd.f32 %v1510, %v1448
      %v1512 = vadd.f32 %v1511, %v1449
      %v1513 = vadd.f32 %v1512, %v1450
      %v1514 = vadd.f32 %v1513, %v1451
      %v1515 = vadd.f32 %v1514, %v1452
      %v1516 = vadd.f32 %v1515, %v1453
      %v1517 = vadd.f32 %v1516, %v1454
      %v1518 = vadd.f32 %v1517, %v1455
      %v1519 = vadd.f32 %v1518, %v1456
      %v1520 = vadd.f32 %v1519, %v1457
      %v1521 = vadd.f32 %v1520, %v1458
      %v1522 = vadd.f32 %v1521, %v1459
      %v1523 = vadd.f32 %v1522, %v1460
      %v1524 = vadd.f32 %v1523, %v1461
      %v1525 = vadd.f32 %v1524, %v1462
      %v1526 = vadd.f32 %v1525, %v1463
      %v1527 = vadd.f32 %v1526, %v1464
      %v1528 = vadd.f32 %v1527, %v1465
      %v1529 = vadd.f32 %v1528, %v1466
      %v1530 = vadd.f32 %v1529, %v1467
      %v1531 = vadd.f32 %v1530, %v1468
      %v1532 = vadd.f32 %v1531, %v1469
      %v1533 = vadd.f32 %v1532, %v1470
      %v1534 = vadd.f32 %v1533, %v1471
      %v1535 = vadd.f32 %v1534, %v1472
      %v1536 = vadd.f32 %v1535, %v1473
      %v1537 = vadd.f32 %v1536, %v1474
      %v1538 = vadd.f32 %v1537, %v1475
      %v1539 = vadd.f32 %v1538, %v1476
      %v1540 = vadd.f32 %v1539, %v1477
      %v1541 = vadd.f32 %v1540, %v1478
      %v1542 = vadd.f32 %v1541, %v1479
      %v1543 = vadd.f32 %v1542, %v1480
      %v1544 = vadd.f32 %v1543, %v1481
      %v1545 = vadd.f32 %v1544, %v1482
      %v1546 = vadd.f32 %v1545, %v1483
      %v1547 = vadd.f32 %v1546, %v1484
      %v1548 = vadd.f32 %v1547, %v1485
      %v1549 = vadd.f32 %v1548, %v1486
      %v1550 = vadd.f32 %v1549, %v1487
      %v1551 = vadd.f32 %v1550, %v1488
      %v1552 = vadd.f32 %v1551, %v1489
      %v1553 = vadd.f32 %v1552, %v1490
      %v1554 = vadd.f32 %v1553, %v1491
      %v1555 = vadd.f32 %v1554, %v1492
      %v1556 = vadd.f32 %v1555, %v1493
      %v1557 = vadd.f32 %v1556, %v1494
      %v1558 = vadd.f32 %v1557, %v1495
      %v1559 = vadd.f32 %v1558, %v1496
      %v1560 = vadd.f32 %v1559, %v1497
      %v1561 = vadd.f32 %v1560, %v1498
      %v1562 = vadd.f32 %v1561, %v1499
      %v1563 = vadd.f32 %v1562, %v1500
      %v1564 = vadd.f32 %v1563, %v1501
      %v1565 = vadd.f32 %v1564, %v1502
      %v1566 = vadd.f32 %v1565, %v1503
      %v1567 = vadd.f32 %v1566, %v1504
      %v1568 = vadd.f32 %v1567, %v1505
      %v1569 = vrot.slane %v1568, 4
      %v1570 = vadd.f32 %v1568, %v1569
      %v1571 = vrot.slane %v1570, 2
      %v1572 = vadd.f32 %v1570, %v1571
      %v1573 = vrot.slane %v1572, 1
      %v1574 = vadd.f32 %v1572, %v1573
      %v1575 = vstv %s1441
      %v1576 = vrcp.pop %v1575
      %v1577 = vmul.f32 %v1574, %v1576
      %v1578 = vsub.f32 %v541, %v1577
      %v1579 = vsub.f32 %v544, %v1577
      %v1580 = vsub.f32 %v549, %v1577
      %v1581 = vsub.f32 %v552, %v1577
      %v1582 = vsub.f32 %v557, %v1577
      %v1583 = vsub.f32 %v560, %v1577
      %v1584 = vsub.f32 %v565, %v1577
      %v1585 = vsub.f32 %v568, %v1577
      %v1586 = vsub.f32 %v573, %v1577
      %v1587 = vsub.f32 %v576, %v1577
      %v1588 = vsub.f32 %v581, %v1577
      %v1589 = vsub.f32 %v584, %v1577
      %v1590 = vsub.f32 %v589, %v1577
      %v1591 = vsub.f32 %v592, %v1577
      %v1592 = vsub.f32 %v597, %v1577
      %v1593 = vsub.f32 %v600, %v1577
      %v1594 = vsub.f32 %v605, %v1577
      %v1595 = vsub.f32 %v608, %v1577
      %v1596 = vsub.f32 %v613, %v1577
      %v1597 = vsub.f32 %v616, %v1577
      %v1598 = vsub.f32 %v621, %v1577
      %v1599 = vsub.f32 %v624, %v1577
      %v1600 = vsub.f32 %v629, %v1577
      %v1601 = vsub.f32 %v632, %v1577
      %v1602 = vsub.f32 %v637, %v1577
      %v1603 = vsub.f32 %v640, %v1577
      %v1604 = vsub.f32 %v645, %v1577
      %v1605 = vsub.f32 %v648, %v1577
      %v1606 = vsub.f32 %v653, %v1577
      %v1607 = vsub.f32 %v656, %v1577
      %v1608 = vsub.f32 %v661, %v1577
      %v1609 = vsub.f32 %v664, %v1577
      %v1610 = vsub.f32 %v669, %v1577
      %v1611 = vsub.f32 %v672, %v1577
      %v1612 = vsub.f32 %v677, %v1577
      %v1613 = vsub.f32 %v680, %v1577
      %v1614 = vsub.f32 %v685, %v1577
      %v1615 = vsub.f32 %v688, %v1577
      %v1616 = vsub.f32 %v693, %v1577
      %v1617 = vsub.f32 %v696, %v1577
      %v1618 = vsub.f32 %v701, %v1577
      %v1619 = vsub.f32 %v704, %v1577
      %v1620 = vsub.f32 %v709, %v1577
      %v1621 = vsub.f32 %v712, %v1577
      %v1622 = vsub.f32 %v717, %v1577
      %v1623 = vsub.f32 %v720, %v1577
      %v1624 = vsub.f32 %v725, %v1577
      %v1625 = vsub.f32 %v728, %v1577
      %v1626 = vsub.f32 %v733, %v1577
      %v1627 = vsub.f32 %v736, %v1577
      %v1628 = vsub.f32 %v741, %v1577
      %v1629 = vsub.f32 %v744, %v1577
      %v1630 = vsub.f32 %v749, %v1577
      %v1631 = vsub.f32 %v752, %v1577
      %v1632 = vsub.f32 %v757, %v1577
      %v1633 = vsub.f32 %v760, %v1577
      %v1634 = vsub.f32 %v765, %v1577
      %v1635 = vsub.f32 %v768, %v1577
      %v1636 = vsub.f32 %v773, %v1577
      %v1637 = vsub.f32 %v776, %v1577
      %v1638 = vsub.f32 %v781, %v1577
      %v1639 = vsub.f32 %v784, %v1577
      %v1640 = vsub.f32 %v789, %v1577
      %v1641 = vsub.f32 %v792, %v1577
      %v1642 = vmul.f32 %v1578, %v1374
      %v1643 = vmul.f32 %v1579, %v1375
      %v1644 = vmul.f32 %v1580, %v1376
      %v1645 = vmul.f32 %v1581, %v1377
      %v1646 = vmul.f32 %v1582, %v1378
      %v1647 = vmul.f32 %v1583, %v1379
      %v1648 = vmul.f32 %v1584, %v1380
      %v1649 = vmul.f32 %v1585, %v1381
      %v1650 = vmul.f32 %v1586, %v1382
      %v1651 = vmul.f32 %v1587, %v1383
      %v1652 = vmul.f32 %v1588, %v1384
      %v1653 = vmul.f32 %v1589, %v1385
      %v1654 = vmul.f32 %v1590, %v1386
      %v1655 = vmul.f32 %v1591, %v1387
      %v1656 = vmul.f32 %v1592, %v1388
      %v1657 = vmul.f32 %v1593, %v1389
      %v1658 = vmul.f32 %v1594, %v1390
      %v1659 = vmul.f32 %v1595, %v1391
      %v1660 = vmul.f32 %v1596, %v1392
      %v1661 = vmul.f32 %v1597, %v1393
      %v1662 = vmul.f32 %v1598, %v1394
      %v1663 = vmul.f32 %v1599, %v1395
      %v1664 = vmul.f32 %v1600, %v1396
      %v1665 = vmul.f32 %v1601, %v1397
      %v1666 = vmul.f32 %v1602, %v1398
      %v1667 = vmul.f32 %v1603, %v1399
      %v1668 = vmul.f32 %v1604, %v1400
      %v1669 = vmul.f32 %v1605, %v1401
      %v1670 = vmul.f32 %v1606, %v1402
      %v1671 = vmul.f32 %v1607, %v1403
      %v1672 = vmul.f32 %v1608, %v1404
      %v1673 = vmul.f32 %v1609, %v1405
      %v1674 = vmul.f32 %v1610, %v1406
      %v1675 = vmul.f32 %v1611, %v1407
      %v1676 = vmul.f32 %v1612, %v1408
      %v1677 = vmul.f32 %v1613, %v1409
      %v1678 = vmul.f32 %v1614, %v1410
      %v1679 = vmul.f32 %v1615, %v1411
      %v1680 = vmul.f32 %v1616, %v1412
      %v1681 = vmul.f32 %v1617, %v1413
      %v1682 = vmul.f32 %v1618, %v1414
      %v1683 = vmul.f32 %v1619, %v1415
      %v1684 = vmul.f32 %v1620, %v1416
      %v1685 = vmul.f32 %v1621, %v1417
      %v1686 = vmul.f32 %v1622, %v1418
      %v1687 = vmul.f32 %v1623, %v1419
      %v1688 = vmul.f32 %v1624, %v1420
      %v1689 = vmul.f32 %v1625, %v1421
      %v1690 = vmul.f32 %v1626, %v1422
      %v1691 = vmul.f32 %v1627, %v1423
      %v1692 = vmul.f32 %v1628, %v1424
      %v1693 = vmul.f32 %v1629, %v1425
      %v1694 = vmul.f32 %v1630, %v1426
      %v1695 = vmul.f32 %v1631, %v1427
      %v1696 = vmul.f32 %v1632, %v1428
      %v1697 = vmul.f32 %v1633, %v1429
      %v1698 = vmul.f32 %v1634, %v1430
      %v1699 = vmul.f32 %v1635, %v1431
      %v1700 = vmul.f32 %v1636, %v1432
      %v1701 = vmul.f32 %v1637, %v1433
      %v1702 = vmul.f32 %v1638, %v1434
      %v1703 = vmul.f32 %v1639, %v1435
      %v1704 = vmul.f32 %v1640, %v1436
      %v1705 = vmul.f32 %v1641, %v1437
      %v1706 = vmul.f32 %v1642, %v1642
      %v1707 = vmul.f32 %v1643, %v1643
      %v1708 = vmul.f32 %v1644, %v1644
      %v1709 = vmul.f32 %v1645, %v1645
      %v1710 = vmul.f32 %v1646, %v1646
      %v1711 = vmul.f32 %v1647, %v1647
      %v1712 = vmul.f32 %v1648, %v1648
      %v1713 = vmul.f32 %v1649, %v1649
      %v1714 = vmul.f32 %v1650, %v1650
      %v1715 = vmul.f32 %v1651, %v1651
      %v1716 = vmul.f32 %v1652, %v1652
      %v1717 = vmul.f32 %v1653, %v1653
      %v1718 = vmul.f32 %v1654, %v1654
      %v1719 = vmul.f32 %v1655, %v1655
      %v1720 = vmul.f32 %v1656, %v1656
      %v1721 = vmul.f32 %v1657, %v1657
      %v1722 = vmul.f32 %v1658, %v1658
      %v1723 = vmul.f32 %v1659, %v1659
      %v1724 = vmul.f32 %v1660, %v1660
      %v1725 = vmul.f32 %v1661, %v1661
      %v1726 = vmul.f32 %v1662, %v1662
      %v1727 = vmul.f32 %v1663, %v1663
      %v1728 = vmul.f32 %v1664, %v1664
      %v1729 = vmul.f32 %v1665, %v1665
      %v1730 = vmul.f32 %v1666, %v1666
      %v1731 = vmul.f32 %v1667, %v1667
      %v1732 = vmul.f32 %v1668, %v1668
      %v1733 = vmul.f32 %v1669, %v1669
      %v1734 = vmul.f32 %v1670, %v1670
      %v1735 = vmul.f32 %v1671, %v1671
      %v1736 = vmul.f32 %v1672, %v1672
      %v1737 = vmul.f32 %v1673, %v1673
      %v1738 = vmul.f32 %v1674, %v1674
      %v1739 = vmul.f32 %v1675, %v1675
      %v1740 = vmul.f32 %v1676, %v1676
      %v1741 = vmul.f32 %v1677, %v1677
      %v1742 = vmul.f32 %v1678, %v1678
      %v1743 = vmul.f32 %v1679, %v1679
      %v1744 = vmul.f32 %v1680, %v1680
      %v1745 = vmul.f32 %v1681, %v1681
      %v1746 = vmul.f32 %v1682, %v1682
      %v1747 = vmul.f32 %v1683, %v1683
      %v1748 = vmul.f32 %v1684, %v1684
      %v1749 = vmul.f32 %v1685, %v1685
      %v1750 = vmul.f32 %v1686, %v1686
      %v1751 = vmul.f32 %v1687, %v1687
      %v1752 = vmul.f32 %v1688, %v1688
      %v1753 = vmul.f32 %v1689, %v1689
      %v1754 = vmul.f32 %v1690, %v1690
      %v1755 = vmul.f32 %v1691, %v1691
      %v1756 = vmul.f32 %v1692, %v1692
      %v1757 = vmul.f32 %v1693, %v1693
      %v1758 = vmul.f32 %v1694, %v1694
      %v1759 = vmul.f32 %v1695, %v1695
      %v1760 = vmul.f32 %v1696, %v1696
      %v1761 = vmul.f32 %v1697, %v1697
      %v1762 = vmul.f32 %v1698, %v1698
      %v1763 = vmul.f32 %v1699, %v1699
      %v1764 = vmul.f32 %v1700, %v1700
      %v1765 = vmul.f32 %v1701, %v1701
      %v1766 = vmul.f32 %v1702, %v1702
      %v1767 = vmul.f32 %v1703, %v1703
      %v1768 = vmul.f32 %v1704, %v1704
      %v1769 = vmul.f32 %v1705, %v1705
      %v1770 = vadd.f32 %v1706, %v1707
      %v1771 = vadd.f32 %v1770, %v1708
      %v1772 = vadd.f32 %v1771, %v1709
      %v1773 = vadd.f32 %v1772, %v1710
      %v1774 = vadd.f32 %v1773, %v1711
      %v1775 = vadd.f32 %v1774, %v1712
      %v1776 = vadd.f32 %v1775, %v1713
      %v1777 = vadd.f32 %v1776, %v1714
      %v1778 = vadd.f32 %v1777, %v1715
      %v1779 = vadd.f32 %v1778, %v1716
      %v1780 = vadd.f32 %v1779, %v1717
      %v1781 = vadd.f32 %v1780, %v1718
      %v1782 = vadd.f32 %v1781, %v1719
      %v1783 = vadd.f32 %v1782, %v1720
      %v1784 = vadd.f32 %v1783, %v1721
      %v1785 = vadd.f32 %v1784, %v1722
      %v1786 = vadd.f32 %v1785, %v1723
      %v1787 = vadd.f32 %v1786, %v1724
      %v1788 = vadd.f32 %v1787, %v1725
      %v1789 = vadd.f32 %v1788, %v1726
      %v1790 = vadd.f32 %v1789, %v1727
      %v1791 = vadd.f32 %v1790, %v1728
      %v1792 = vadd.f32 %v1791, %v1729
      %v1793 = vadd.f32 %v1792, %v1730
      %v1794 = vadd.f32 %v1793, %v1731
      %v1795 = vadd.f32 %v1794, %v1732
      %v1796 = vadd.f32 %v1795, %v1733
      %v1797 = vadd.f32 %v1796, %v1734
      %v1798 = vadd.f32 %v1797, %v1735
      %v1799 = vadd.f32 %v1798, %v1736
      %v1800 = vadd.f32 %v1799, %v1737
      %v1801 = vadd.f32 %v1800, %v1738
      %v1802 = vadd.f32 %v1801, %v1739
      %v1803 = vadd.f32 %v1802, %v1740
      %v1804 = vadd.f32 %v1803, %v1741
      %v1805 = vadd.f32 %v1804, %v1742
      %v1806 = vadd.f32 %v1805, %v1743
      %v1807 = vadd.f32 %v1806, %v1744
      %v1808 = vadd.f32 %v1807, %v1745
      %v1809 = vadd.f32 %v1808, %v1746
      %v1810 = vadd.f32 %v1809, %v1747
      %v1811 = vadd.f32 %v1810, %v1748
      %v1812 = vadd.f32 %v1811, %v1749
      %v1813 = vadd.f32 %v1812, %v1750
      %v1814 = vadd.f32 %v1813, %v1751
      %v1815 = vadd.f32 %v1814, %v1752
      %v1816 = vadd.f32 %v1815, %v1753
      %v1817 = vadd.f32 %v1816, %v1754
      %v1818 = vadd.f32 %v1817, %v1755
      %v1819 = vadd.f32 %v1818, %v1756
      %v1820 = vadd.f32 %v1819, %v1757
      %v1821 = vadd.f32 %v1820, %v1758
      %v1822 = vadd.f32 %v1821, %v1759
      %v1823 = vadd.f32 %v1822, %v1760
      %v1824 = vadd.f32 %v1823, %v1761
      %v1825 = vadd.f32 %v1824, %v1762
      %v1826 = vadd.f32 %v1825, %v1763
      %v1827 = vadd.f32 %v1826, %v1764
      %v1828 = vadd.f32 %v1827, %v1765
      %v1829 = vadd.f32 %v1828, %v1766
      %v1830 = vadd.f32 %v1829, %v1767
      %v1831 = vadd.f32 %v1830, %v1768
      %v1832 = vadd.f32 %v1831, %v1769
      %v1833 = vrot.slane %v1832, 4
      %v1834 = vadd.f32 %v1832, %v1833
      %v1835 = vrot.slane %v1834, 2
      %v1836 = vadd.f32 %v1834, %v1835
      %v1837 = vrot.slane %v1836, 1
      %v1838 = vadd.f32 %v1836, %v1837
      %1839 = vst [vmem:[%s184] sm:$0x1] %v1574
      %1840 = vst [vmem:[%s184 + $0x1] sm:$0x1] %v1838
      %s1841 = smul.u32 64, %s15
      %p1842 = scmp.lt.s32.totalorder %s1841, 127
      %s1843 = scalar_select %p1842, %s1841, 127
      %s1844 = smul.addr %s1843, 4
      %s1845 = scalar_lea.vmem %s2, %s1844
      %p1846 = scmp.lt.s32.totalorder %s15, 1
      %s1847 = scalar_select %p1846, %s15, 1
      %s1848 = smul.addr %s1847, 2
      %s1849 = scalar_lea.vmem %s3, %s1848
      // Predicated region
      $region29: #{double_conv_forward.4} parent=27 // pred_check
        %p1850 = pneg %p80
      $region30: #{double_conv_forward.4} parent=27 // pred_check_branch
        %1852 = sbr.rel (%p1850) target = $region32
      $region31: #{double_conv_forward.4} parent=27 // pred_region
        %s1853 = smul.u32 64, %s15
      $region32: #{double_conv_forward.4} parent=27 // pred_fallthru
        _
      // Predicated region
      $region33: #{double_conv_forward.4} parent=27 // pred_check
        %p1854 = pneg %p106
      $region34: #{double_conv_forward.4} parent=27 // pred_check_branch
        %1856 = sbr.rel (%p1854) target = $region36
      $region35: #{double_conv_forward.4} parent=27 // pred_region
        _
      $region36: #{double_conv_forward.4} parent=27 // pred_fallthru
        _
    $region28: #{double_conv_forward.4} parent=5 // pred_fallthru
      _
    %p1857 = scmp.le.s32.totalorder 2, %s10
    // Predicated region
    $region37: #{double_conv_forward.4} parent=5 // pred_check
      %p1858 = pneg %p1857
    $region38: #{double_conv_forward.4} parent=5 // pred_check_branch
      %1860 = sbr.rel (%p1858) target = $region40
    $region39: #{double_conv_forward.4} parent=5 // pred_region
      %s1861 = ssub.s32 %s10, 2
      // Predicated region
      $region41: #{double_conv_forward.4} parent=39 // pred_check
        %p1862 = pneg %p86
      $region42: #{double_conv_forward.4} parent=39 // pred_check_branch
        %1864 = sbr.rel (%p1862) target = $region44
      $region43: #{double_conv_forward.4} parent=39 // pred_region
        %s1865 = smul.u32 64, %s16
        %p1866 = scmp.lt.s32.totalorder %s1865, 127
        %s1867 = scalar_select %p1866, %s1865, 127
        %s1868 = smul.addr %s1867, 4
        %s1869 = scalar_lea.vmem %s2, %s1868
      $region44: #{double_conv_forward.4} parent=39 // pred_fallthru
        _
      // Predicated region
      $region45: #{double_conv_forward.4} parent=39 // pred_check
        %p1870 = pneg %p112
      $region46: #{double_conv_forward.4} parent=39 // pred_check_branch
        %1872 = sbr.rel (%p1870) target = $region48
      $region47: #{double_conv_forward.4} parent=39 // pred_region
        %p1873 = scmp.lt.s32.totalorder %s16, 1
        %s1874 = scalar_select %p1873, %s16, 1
        %s1875 = smul.addr %s1874, 2
        %s1876 = scalar_lea.vmem %s3, %s1875
      $region48: #{double_conv_forward.4} parent=39 // pred_fallthru
        _
    $region40: #{double_conv_forward.4} parent=5 // pred_fallthru
      _
  $region6: #{double_conv_forward.4} parent=0 // loop_footer
    %s14 = sadd.s32 1, %s10
  $region7: #{double_conv_forward.4} parent=0 // loop_footer_branch
    %9 = sbr.rel target = $region3
  $region8: #{double_conv_forward.4} parent=0 // loop_exit
    _

// kernel: double_conv_forward.7
$region0: #{double_conv_forward.7}
  #allocation0 [shape = 'u32[]', space=smem, size = 0x4, offset = 0x4, fixed_abs, tag = 'smem constant byte address 0x4 - core index']
  #allocation1 [shape = 'u32[144,128]{1,0:T(1,128)}', space=vmem, size = 0x12000, scoped, tag = 'internal scratch']
  %s0 = inlined_call_operand.vmem [shape: bf16[1024,128], index: 0, kind: input, shape index: {}]
  %s1 = inlined_call_operand.vmem [shape: f32[1,128], index: 1, kind: input, shape index: {}]
  %s2 = inlined_call_operand.vmem [shape: f32[1,128], index: 2, kind: input, shape index: {}]
  %s3 = inlined_call_operand.vmem [shape: f32[1024,128], index: 3, kind: output, shape index: {}]
  %s4 = sld [smem:[#allocation0]]
  $region45: #{double_conv_forward.7} parent=0
    _
  %s6 = ssub.s32 1, %s4
  %s7 = scalar_select 0, %s6, %s4
  loop: start=0, step=1, limit=4
  $region2: #{double_conv_forward.7} parent=0 // loop_pre_header
    _
  $region3: #{double_conv_forward.7} parent=0 // loop_header
    %s9 = sphi 0, %s13
    %p10 = scmp.ge.s32.totalorder %s9, 4
    %s19 = sphi 0, %s21
    %s22 = sphi 0, %s19
    %s23 = sphi 0, %s22
    %s39 = sphi 0, %s23
    %s43 = sphi 0, %s43
    %s45 = sphi 0, %s43
    %s46 = sphi 0, %s45
    %s60 = sphi 0, %s46
    %s64 = sphi 0, %s64
    %s66 = sphi 0, %s64
    %s67 = sphi 0, %s66
    %s81 = sphi 0, %s67
    %s87 = sphi 0, %s89
    %s90 = sphi 0, %s87
    %s91 = sphi 0, %s90
    %s107 = sphi 0, %s91
  $region4: #{double_conv_forward.7} parent=0 // loop_header_branch
    %12 = sbr.rel (%p10) target = $region8
  $region5: #{double_conv_forward.7} parent=0 // loop_body
    %s14 = ssub.s32 %s9, 1
    %s15 = ssub.s32 %s9, 2
    %s16 = sadd.s32 %s9, 1
    %s17 = ssub.s32 %s9, %s16
    %p18 = scmp.eq.s32.totalorder %s17, 0
    %s20 = sadd.s32 %s19, 1
    %s21 = scalar_select %p18, %s19, %s20
    %p24 = pneg %p18
    %p25 = scmp.eq.s32.totalorder %s9, 1
    %p26 = por %p24, %p25
    %p27 = scmp.ne.s32.totalorder %s19, %s22
    %p28 = scmp.eq.s32.totalorder %s9, 0
    %p29 = por %p27, %p28
    %p30 = scmp.ne.s32.totalorder %s19, %s22
    %p31 = scmp.eq.s32.totalorder %s14, 1
    %p32 = por %p30, %p31
    %p33 = scmp.ne.s32.totalorder %s22, %s23
    %p34 = scmp.eq.s32.totalorder %s14, 0
    %p35 = por %p33, %p34
    %p36 = scmp.ne.s32.totalorder %s22, %s23
    %p37 = scmp.eq.s32.totalorder %s15, 1
    %p38 = por %p36, %p37
    %p40 = scmp.ne.s32.totalorder %s23, %s39
    %p41 = scmp.eq.s32.totalorder %s15, 0
    %p42 = por %p40, %p41
    %s44 = sadd.s32 %s43, 1
    %p47 = scmp.eq.s32.totalorder %s9, 1
    %p48 = scmp.ne.s32.totalorder %s43, %s45
    %p49 = scmp.eq.s32.totalorder %s9, 0
    %p50 = por %p48, %p49
    %p51 = scmp.ne.s32.totalorder %s43, %s45
    %p52 = scmp.eq.s32.totalorder %s14, 1
    %p53 = por %p51, %p52
    %p54 = scmp.ne.s32.totalorder %s45, %s46
    %p55 = scmp.eq.s32.totalorder %s14, 0
    %p56 = por %p54, %p55
    %p57 = scmp.ne.s32.totalorder %s45, %s46
    %p58 = scmp.eq.s32.totalorder %s15, 1
    %p59 = por %p57, %p58
    %p61 = scmp.ne.s32.totalorder %s46, %s60
    %p62 = scmp.eq.s32.totalorder %s15, 0
    %p63 = por %p61, %p62
    %s65 = sadd.s32 %s64, 1
    %p68 = scmp.eq.s32.totalorder %s9, 1
    %p69 = scmp.ne.s32.totalorder %s64, %s66
    %p70 = scmp.eq.s32.totalorder %s9, 0
    %p71 = por %p69, %p70
    %p72 = scmp.ne.s32.totalorder %s64, %s66
    %p73 = scmp.eq.s32.totalorder %s14, 1
    %p74 = por %p72, %p73
    %p75 = scmp.ne.s32.totalorder %s66, %s67
    %p76 = scmp.eq.s32.totalorder %s14, 0
    %p77 = por %p75, %p76
    %p78 = scmp.ne.s32.totalorder %s66, %s67
    %p79 = scmp.eq.s32.totalorder %s15, 1
    %p80 = por %p78, %p79
    %p82 = scmp.ne.s32.totalorder %s67, %s81
    %p83 = scmp.eq.s32.totalorder %s15, 0
    %p84 = por %p82, %p83
    %s85 = ssub.s32 %s9, %s16
    %p86 = scmp.eq.s32.totalorder %s85, 0
    %s88 = sadd.s32 %s87, 1
    %s89 = scalar_select %p86, %s87, %s88
    %p92 = pneg %p86
    %p93 = scmp.eq.s32.totalorder %s9, 1
    %p94 = por %p92, %p93
    %p95 = scmp.ne.s32.totalorder %s87, %s90
    %p96 = scmp.eq.s32.totalorder %s9, 0
    %p97 = por %p95, %p96
    %p98 = scmp.ne.s32.totalorder %s87, %s90
    %p99 = scmp.eq.s32.totalorder %s14, 1
    %p100 = por %p98, %p99
    %p101 = scmp.ne.s32.totalorder %s90, %s91
    %p102 = scmp.eq.s32.totalorder %s14, 0
    %p103 = por %p101, %p102
    %p104 = scmp.ne.s32.totalorder %s90, %s91
    %p105 = scmp.eq.s32.totalorder %s15, 1
    %p106 = por %p104, %p105
    %p108 = scmp.ne.s32.totalorder %s91, %s107
    %p109 = scmp.eq.s32.totalorder %s15, 0
    %p110 = por %p108, %p109
    %p111 = scmp.le.s32.totalorder 1, %s9
    %p112 = scmp.lt.s32.totalorder %s9, 3
    %p113 = pnand %p111, %p112
    %p114 = pneg %p113
    // Predicated region
    $region9: #{double_conv_forward.7} parent=5 // pred_check
      _
    $region10: #{double_conv_forward.7} parent=5 // pred_check_branch
      %116 = sbr.rel (%p113) target = $region12
    $region11: #{double_conv_forward.7} parent=5 // pred_region
      %s117 = ssub.s32 %s9, 1
      // Predicated region
      $region13: #{double_conv_forward.7} parent=11 // pred_check
        %p118 = pneg %p56
      $region14: #{double_conv_forward.7} parent=11 // pred_check_branch
        %120 = sbr.rel (%p118) target = $region16
      $region15: #{double_conv_forward.7} parent=11 // pred_region
        _
      $region16: #{double_conv_forward.7} parent=11 // pred_fallthru
        _
      // Predicated region
      $region17: #{double_conv_forward.7} parent=11 // pred_check
        %p121 = pneg %p77
      $region18: #{double_conv_forward.7} parent=11 // pred_check_branch
        %123 = sbr.rel (%p121) target = $region20
      $region19: #{double_conv_forward.7} parent=11 // pred_region
        _
      $region20: #{double_conv_forward.7} parent=11 // pred_fallthru
        _
    $region12: #{double_conv_forward.7} parent=5 // pred_fallthru
      _
    %p124 = scmp.lt.s32.totalorder %s9, 2
    // Predicated region
    $region21: #{double_conv_forward.7} parent=5 // pred_check
      %p125 = pneg %p124
    $region22: #{double_conv_forward.7} parent=5 // pred_check_branch
      %127 = sbr.rel (%p125) target = $region24
    $region23: #{double_conv_forward.7} parent=5 // pred_region
      // Predicated region
      $region25: #{double_conv_forward.7} parent=23 // pred_check
        %p128 = pneg %p29
      $region26: #{double_conv_forward.7} parent=23 // pred_check_branch
        %130 = sbr.rel (%p128) target = $region28
      $region27: #{double_conv_forward.7} parent=23 // pred_region
        %s131 = smul.u32 64, %s9
        %p132 = scmp.lt.s32.totalorder %s131, 127
        %s133 = scalar_select %p132, %s131, 127
        %s134 = smul.addr %s133, 4
        %s135 = scalar_lea.vmem %s0, %s134
        %s136 = smul.u32 64, %s9
      $region28: #{double_conv_forward.7} parent=23 // pred_fallthru
        _
    $region24: #{double_conv_forward.7} parent=5 // pred_fallthru
      _
    %p137 = scmp.le.s32.totalorder 1, %s9
    %p138 = scmp.lt.s32.totalorder %s9, 3
    %p139 = pnand %p137, %p138
    %p140 = pneg %p139
    // Predicated region
    $region29: #{double_conv_forward.7} parent=5 // pred_check
      _
    $region30: #{double_conv_forward.7} parent=5 // pred_check_branch
      %142 = sbr.rel (%p139) target = $region32
    $region31: #{double_conv_forward.7} parent=5 // pred_region
      %s143 = ssub.s32 %s9, 1
      %s144 = smul.u32 64, %s14
      %p145 = scmp.lt.s32.totalorder %s144, 127
      %s146 = scalar_select %p145, %s144, 127
      %s147 = smul.addr %s146, 4
      %s148 = scalar_lea.vmem %s0, %s147
      %p149 = pneg %p35
      %p150 = pneg %p32
      %p151 = pneg %p56
      %p152 = pneg %p53
      %p153 = pneg %p77
      %p154 = pneg %p74
      %p155 = pneg %p103
      %p156 = pneg %p100
      %s157 = smul.u32 64, %s14
      %p158 = scmp.lt.s32.totalorder %s157, 127
      %s159 = scalar_select %p158, %s157, 127
      %s160 = smul.addr %s159, 8
      %s161 = scalar_lea.vmem %s3, %s160
      %s162 = smul.u32 64, %s14
      %p163 = scmp.lt.s32.totalorder %s162, 127
      %s164 = scalar_select %p163, %s162, 127
      %s165 = smul.addr %s164, 4
      %s166 = scalar_lea.vmem %s0, %s165
      %s167 = smul.u32 64, %s14
      %s168 = smul.u32 64, %s14
      %p169 = scmp.lt.s32.totalorder %s168, 127
      %s170 = scalar_select %p169, %s168, 127
      %s171 = smul.addr %s170, 8
      %s172 = scalar_lea.vmem %s3, %s171
      %s173 = smul.u32 64, %s14
      %v174 = vld [vmem:[%s166] sm:$0xf]
      %v175 = vld [vmem:[%s166 + $0x4] sm:$0xf]
      %v176 = vld [vmem:[%s166 + $0x8] sm:$0xf]
      %v177 = vld [vmem:[%s166 + $0xc] sm:$0xf]
      %v178 = vld [vmem:[%s166 + $0x10] sm:$0xf]
      %v179 = vld [vmem:[%s166 + $0x14] sm:$0xf]
      %v180 = vld [vmem:[%s166 + $0x18] sm:$0xf]
      %v181 = vld [vmem:[%s166 + $0x1c] sm:$0xf]
      %v182 = vld [vmem:[%s166 + $0x20] sm:$0xf]
      %v183 = vld [vmem:[%s166 + $0x24] sm:$0xf]
      %v184 = vld [vmem:[%s166 + $0x28] sm:$0xf]
      %v185 = vld [vmem:[%s166 + $0x2c] sm:$0xf]
      %v186 = vld [vmem:[%s166 + $0x30] sm:$0xf]
      %v187 = vld [vmem:[%s166 + $0x34] sm:$0xf]
      %v188 = vld [vmem:[%s166 + $0x38] sm:$0xf]
      %v189 = vld [vmem:[%s166 + $0x3c] sm:$0xf]
      %v190 = vld [vmem:[%s166 + $0x40] sm:$0xf]
      %v191 = vld [vmem:[%s166 + $0x44] sm:$0xf]
      %v192 = vld [vmem:[%s166 + $0x48] sm:$0xf]
      %v193 = vld [vmem:[%s166 + $0x4c] sm:$0xf]
      %v194 = vld [vmem:[%s166 + $0x50] sm:$0xf]
      %v195 = vld [vmem:[%s166 + $0x54] sm:$0xf]
      %v196 = vld [vmem:[%s166 + $0x58] sm:$0xf]
      %v197 = vld [vmem:[%s166 + $0x5c] sm:$0xf]
      %v198 = vld [vmem:[%s166 + $0x60] sm:$0xf]
      %v199 = vld [vmem:[%s166 + $0x64] sm:$0xf]
      %v200 = vld [vmem:[%s166 + $0x68] sm:$0xf]
      %v201 = vld [vmem:[%s166 + $0x6c] sm:$0xf]
      %v202 = vld [vmem:[%s166 + $0x70] sm:$0xf]
      %v203 = vld [vmem:[%s166 + $0x74] sm:$0xf]
      %v204 = vld [vmem:[%s166 + $0x78] sm:$0xf]
      %v205 = vld [vmem:[%s166 + $0x7c] sm:$0xf]
      %v206 = vld [vmem:[%s166 + $0x80] sm:$0xf]
      %v207 = vld [vmem:[%s166 + $0x84] sm:$0xf]
      %v208 = vld [vmem:[%s166 + $0x88] sm:$0xf]
      %v209 = vld [vmem:[%s166 + $0x8c] sm:$0xf]
      %v210 = vld [vmem:[%s166 + $0x90] sm:$0xf]
      %v211 = vld [vmem:[%s166 + $0x94] sm:$0xf]
      %v212 = vld [vmem:[%s166 + $0x98] sm:$0xf]
      %v213 = vld [vmem:[%s166 + $0x9c] sm:$0xf]
      %v214 = vld [vmem:[%s166 + $0xa0] sm:$0xf]
      %v215 = vld [vmem:[%s166 + $0xa4] sm:$0xf]
      %v216 = vld [vmem:[%s166 + $0xa8] sm:$0xf]
      %v217 = vld [vmem:[%s166 + $0xac] sm:$0xf]
      %v218 = vld [vmem:[%s166 + $0xb0] sm:$0xf]
      %v219 = vld [vmem:[%s166 + $0xb4] sm:$0xf]
      %v220 = vld [vmem:[%s166 + $0xb8] sm:$0xf]
      %v221 = vld [vmem:[%s166 + $0xbc] sm:$0xf]
      %v222 = vld [vmem:[%s166 + $0xc0] sm:$0xf]
      %v223 = vld [vmem:[%s166 + $0xc4] sm:$0xf]
      %v224 = vld [vmem:[%s166 + $0xc8] sm:$0xf]
      %v225 = vld [vmem:[%s166 + $0xcc] sm:$0xf]
      %v226 = vld [vmem:[%s166 + $0xd0] sm:$0xf]
      %v227 = vld [vmem:[%s166 + $0xd4] sm:$0xf]
      %v228 = vld [vmem:[%s166 + $0xd8] sm:$0xf]
      %v229 = vld [vmem:[%s166 + $0xdc] sm:$0xf]
      %v230 = vld [vmem:[%s166 + $0xe0] sm:$0xf]
      %v231 = vld [vmem:[%s166 + $0xe4] sm:$0xf]
      %v232 = vld [vmem:[%s166 + $0xe8] sm:$0xf]
      %v233 = vld [vmem:[%s166 + $0xec] sm:$0xf]
      %v234 = vld [vmem:[%s166 + $0xf0] sm:$0xf]
      %v235 = vld [vmem:[%s166 + $0xf4] sm:$0xf]
      %v236 = vld [vmem:[%s166 + $0xf8] sm:$0xf]
      %v237 = vld [vmem:[%s166 + $0xfc] sm:$0xf]
      %v238 = vunpack.c.l.bf16 %v174
      %v239 = vunpack.c.l.bf16 %v175
      %v240 = vunpack.c.l.bf16 %v176
      %v241 = vunpack.c.l.bf16 %v177
      %v242 = vunpack.c.l.bf16 %v178
      %v243 = vunpack.c.l.bf16 %v179
      %v244 = vunpack.c.l.bf16 %v180
      %v245 = vunpack.c.l.bf16 %v181
      %v246 = vunpack.c.l.bf16 %v182
      %v247 = vunpack.c.l.bf16 %v183
      %v248 = vunpack.c.l.bf16 %v184
      %v249 = vunpack.c.l.bf16 %v185
      %v250 = vunpack.c.l.bf16 %v186
      %v251 = vunpack.c.l.bf16 %v187
      %v252 = vunpack.c.l.bf16 %v188
      %v253 = vunpack.c.l.bf16 %v189
      %v254 = vunpack.c.l.bf16 %v190
      %v255 = vunpack.c.l.bf16 %v191
      %v256 = vunpack.c.l.bf16 %v192
      %v257 = vunpack.c.l.bf16 %v193
      %v258 = vunpack.c.l.bf16 %v194
      %v259 = vunpack.c.l.bf16 %v195
      %v260 = vunpack.c.l.bf16 %v196
      %v261 = vunpack.c.l.bf16 %v197
      %v262 = vunpack.c.l.bf16 %v198
      %v263 = vunpack.c.l.bf16 %v199
      %v264 = vunpack.c.l.bf16 %v200
      %v265 = vunpack.c.l.bf16 %v201
      %v266 = vunpack.c.l.bf16 %v202
      %v267 = vunpack.c.l.bf16 %v203
      %v268 = vunpack.c.l.bf16 %v204
      %v269 = vunpack.c.l.bf16 %v205
      %v270 = vunpack.c.l.bf16 %v206
      %v271 = vunpack.c.l.bf16 %v207
      %v272 = vunpack.c.l.bf16 %v208
      %v273 = vunpack.c.l.bf16 %v209
      %v274 = vunpack.c.l.bf16 %v210
      %v275 = vunpack.c.l.bf16 %v211
      %v276 = vunpack.c.l.bf16 %v212
      %v277 = vunpack.c.l.bf16 %v213
      %v278 = vunpack.c.l.bf16 %v214
      %v279 = vunpack.c.l.bf16 %v215
      %v280 = vunpack.c.l.bf16 %v216
      %v281 = vunpack.c.l.bf16 %v217
      %v282 = vunpack.c.l.bf16 %v218
      %v283 = vunpack.c.l.bf16 %v219
      %v284 = vunpack.c.l.bf16 %v220
      %v285 = vunpack.c.l.bf16 %v221
      %v286 = vunpack.c.l.bf16 %v222
      %v287 = vunpack.c.l.bf16 %v223
      %v288 = vunpack.c.l.bf16 %v224
      %v289 = vunpack.c.l.bf16 %v225
      %v290 = vunpack.c.l.bf16 %v226
      %v291 = vunpack.c.l.bf16 %v227
      %v292 = vunpack.c.l.bf16 %v228
      %v293 = vunpack.c.l.bf16 %v229
      %v294 = vunpack.c.l.bf16 %v230
      %v295 = vunpack.c.l.bf16 %v231
      %v296 = vunpack.c.l.bf16 %v232
      %v297 = vunpack.c.l.bf16 %v233
      %v298 = vunpack.c.l.bf16 %v234
      %v299 = vunpack.c.l.bf16 %v235
      %v300 = vunpack.c.l.bf16 %v236
      %v301 = vunpack.c.l.bf16 %v237
      %v302 = vld [vmem:[%s1] sm:$0x1]
      %v304 = vlaneseq
      %v305 = vshrl.u32 %v304, 7
      %v306 = vsub.s32 0, %v305
      %v307 = vrot.slane %v302, %v306
      %v309 = vmul.f32 %v238, %v307
      %v310 = vmul.f32 %v239, %v307
      %v311 = vmul.f32 %v240, %v307
      %v312 = vmul.f32 %v241, %v307
      %v313 = vmul.f32 %v242, %v307
      %v314 = vmul.f32 %v243, %v307
      %v315 = vmul.f32 %v244, %v307
      %v316 = vmul.f32 %v245, %v307
      %v317 = vmul.f32 %v246, %v307
      %v318 = vmul.f32 %v247, %v307
      %v319 = vmul.f32 %v248, %v307
      %v320 = vmul.f32 %v249, %v307
      %v321 = vmul.f32 %v250, %v307
      %v322 = vmul.f32 %v251, %v307
      %v323 = vmul.f32 %v252, %v307
      %v324 = vmul.f32 %v253, %v307
      %v325 = vmul.f32 %v254, %v307
      %v326 = vmul.f32 %v255, %v307
      %v327 = vmul.f32 %v256, %v307
      %v328 = vmul.f32 %v257, %v307
      %v329 = vmul.f32 %v258, %v307
      %v330 = vmul.f32 %v259, %v307
      %v331 = vmul.f32 %v260, %v307
      %v332 = vmul.f32 %v261, %v307
      %v333 = vmul.f32 %v262, %v307
      %v334 = vmul.f32 %v263, %v307
      %v335 = vmul.f32 %v264, %v307
      %v336 = vmul.f32 %v265, %v307
      %v337 = vmul.f32 %v266, %v307
      %v338 = vmul.f32 %v267, %v307
      %v339 = vmul.f32 %v268, %v307
      %v340 = vmul.f32 %v269, %v307
      %v341 = vmul.f32 %v270, %v307
      %v342 = vmul.f32 %v271, %v307
      %v343 = vmul.f32 %v272, %v307
      %v344 = vmul.f32 %v273, %v307
      %v345 = vmul.f32 %v274, %v307
      %v346 = vmul.f32 %v275, %v307
      %v347 = vmul.f32 %v276, %v307
      %v348 = vmul.f32 %v277, %v307
      %v349 = vmul.f32 %v278, %v307
      %v350 = vmul.f32 %v279, %v307
      %v351 = vmul.f32 %v280, %v307
      %v352 = vmul.f32 %v281, %v307
      %v353 = vmul.f32 %v282, %v307
      %v354 = vmul.f32 %v283, %v307
      %v355 = vmul.f32 %v284, %v307
      %v356 = vmul.f32 %v285, %v307
      %v357 = vmul.f32 %v286, %v307
      %v358 = vmul.f32 %v287, %v307
      %v359 = vmul.f32 %v288, %v307
      %v360 = vmul.f32 %v289, %v307
      %v361 = vmul.f32 %v290, %v307
      %v362 = vmul.f32 %v291, %v307
      %v363 = vmul.f32 %v292, %v307
      %v364 = vmul.f32 %v293, %v307
      %v365 = vmul.f32 %v294, %v307
      %v366 = vmul.f32 %v295, %v307
      %v367 = vmul.f32 %v296, %v307
      %v368 = vmul.f32 %v297, %v307
      %v369 = vmul.f32 %v298, %v307
      %v370 = vmul.f32 %v299, %v307
      %v371 = vmul.f32 %v300, %v307
      %v372 = vmul.f32 %v301, %v307
      %v373 = vld [vmem:[%s2] sm:$0x1]
      %v375 = vlaneseq
      %v376 = vshrl.u32 %v375, 7
      %v377 = vsub.s32 0, %v376
      %v378 = vrot.slane %v373, %v377
      %v380 = vadd.f32 %v309, %v378
      %v381 = vadd.f32 %v310, %v378
      %v382 = vadd.f32 %v311, %v378
      %v383 = vadd.f32 %v312, %v378
      %v384 = vadd.f32 %v313, %v378
      %v385 = vadd.f32 %v314, %v378
      %v386 = vadd.f32 %v315, %v378
      %v387 = vadd.f32 %v316, %v378
      %v388 = vadd.f32 %v317, %v378
      %v389 = vadd.f32 %v318, %v378
      %v390 = vadd.f32 %v319, %v378
      %v391 = vadd.f32 %v320, %v378
      %v392 = vadd.f32 %v321, %v378
      %v393 = vadd.f32 %v322, %v378
      %v394 = vadd.f32 %v323, %v378
      %v395 = vadd.f32 %v324, %v378
      %v396 = vadd.f32 %v325, %v378
      %v397 = vadd.f32 %v326, %v378
      %v398 = vadd.f32 %v327, %v378
      %v399 = vadd.f32 %v328, %v378
      %v400 = vadd.f32 %v329, %v378
      %v401 = vadd.f32 %v330, %v378
      %v402 = vadd.f32 %v331, %v378
      %v403 = vadd.f32 %v332, %v378
      %v404 = vadd.f32 %v333, %v378
      %v405 = vadd.f32 %v334, %v378
      %v406 = vadd.f32 %v335, %v378
      %v407 = vadd.f32 %v336, %v378
      %v408 = vadd.f32 %v337, %v378
      %v409 = vadd.f32 %v338, %v378
      %v410 = vadd.f32 %v339, %v378
      %v411 = vadd.f32 %v340, %v378
      %v412 = vadd.f32 %v341, %v378
      %v413 = vadd.f32 %v342, %v378
      %v414 = vadd.f32 %v343, %v378
      %v415 = vadd.f32 %v344, %v378
      %v416 = vadd.f32 %v345, %v378
      %v417 = vadd.f32 %v346, %v378
      %v418 = vadd.f32 %v347, %v378
      %v419 = vadd.f32 %v348, %v378
      %v420 = vadd.f32 %v349, %v378
      %v421 = vadd.f32 %v350, %v378
      %v422 = vadd.f32 %v351, %v378
      %v423 = vadd.f32 %v352, %v378
      %v424 = vadd.f32 %v353, %v378
      %v425 = vadd.f32 %v354, %v378
      %v426 = vadd.f32 %v355, %v378
      %v427 = vadd.f32 %v356, %v378
      %v428 = vadd.f32 %v357, %v378
      %v429 = vadd.f32 %v358, %v378
      %v430 = vadd.f32 %v359, %v378
      %v431 = vadd.f32 %v360, %v378
      %v432 = vadd.f32 %v361, %v378
      %v433 = vadd.f32 %v362, %v378
      %v434 = vadd.f32 %v363, %v378
      %v435 = vadd.f32 %v364, %v378
      %v436 = vadd.f32 %v365, %v378
      %v437 = vadd.f32 %v366, %v378
      %v438 = vadd.f32 %v367, %v378
      %v439 = vadd.f32 %v368, %v378
      %v440 = vadd.f32 %v369, %v378
      %v441 = vadd.f32 %v370, %v378
      %v442 = vadd.f32 %v371, %v378
      %v443 = vadd.f32 %v372, %v378
      %v444 = vmax.f32 %v380, 0.0
      %v445 = vmax.f32 %v381, 0.0
      %v446 = vmax.f32 %v382, 0.0
      %v447 = vmax.f32 %v383, 0.0
      %v448 = vmax.f32 %v384, 0.0
      %v449 = vmax.f32 %v385, 0.0
      %v450 = vmax.f32 %v386, 0.0
      %v451 = vmax.f32 %v387, 0.0
      %v452 = vmax.f32 %v388, 0.0
      %v453 = vmax.f32 %v389, 0.0
      %v454 = vmax.f32 %v390, 0.0
      %v455 = vmax.f32 %v391, 0.0
      %v456 = vmax.f32 %v392, 0.0
      %v457 = vmax.f32 %v393, 0.0
      %v458 = vmax.f32 %v394, 0.0
      %v459 = vmax.f32 %v395, 0.0
      %v460 = vmax.f32 %v396, 0.0
      %v461 = vmax.f32 %v397, 0.0
      %v462 = vmax.f32 %v398, 0.0
      %v463 = vmax.f32 %v399, 0.0
      %v464 = vmax.f32 %v400, 0.0
      %v465 = vmax.f32 %v401, 0.0
      %v466 = vmax.f32 %v402, 0.0
      %v467 = vmax.f32 %v403, 0.0
      %v468 = vmax.f32 %v404, 0.0
      %v469 = vmax.f32 %v405, 0.0
      %v470 = vmax.f32 %v406, 0.0
      %v471 = vmax.f32 %v407, 0.0
      %v472 = vmax.f32 %v408, 0.0
      %v473 = vmax.f32 %v409, 0.0
      %v474 = vmax.f32 %v410, 0.0
      %v475 = vmax.f32 %v411, 0.0
      %v476 = vmax.f32 %v412, 0.0
      %v477 = vmax.f32 %v413, 0.0
      %v478 = vmax.f32 %v414, 0.0
      %v479 = vmax.f32 %v415, 0.0
      %v480 = vmax.f32 %v416, 0.0
      %v481 = vmax.f32 %v417, 0.0
      %v482 = vmax.f32 %v418, 0.0
      %v483 = vmax.f32 %v419, 0.0
      %v484 = vmax.f32 %v420, 0.0
      %v485 = vmax.f32 %v421, 0.0
      %v486 = vmax.f32 %v422, 0.0
      %v487 = vmax.f32 %v423, 0.0
      %v488 = vmax.f32 %v424, 0.0
      %v489 = vmax.f32 %v425, 0.0
      %v490 = vmax.f32 %v426, 0.0
      %v491 = vmax.f32 %v427, 0.0
      %v492 = vmax.f32 %v428, 0.0
      %v493 = vmax.f32 %v429, 0.0
      %v494 = vmax.f32 %v430, 0.0
      %v495 = vmax.f32 %v431, 0.0
      %v496 = vmax.f32 %v432, 0.0
      %v497 = vmax.f32 %v433, 0.0
      %v498 = vmax.f32 %v434, 0.0
      %v499 = vmax.f32 %v435, 0.0
      %v500 = vmax.f32 %v436, 0.0
      %v501 = vmax.f32 %v437, 0.0
      %v502 = vmax.f32 %v438, 0.0
      %v503 = vmax.f32 %v439, 0.0
      %v504 = vmax.f32 %v440, 0.0
      %v505 = vmax.f32 %v441, 0.0
      %v506 = vmax.f32 %v442, 0.0
      %v507 = vmax.f32 %v443, 0.0
      %508 = vst [vmem:[%s172] sm:$0xff] %v444
      %509 = vst [vmem:[%s172 + $0x8] sm:$0xff] %v445
      %510 = vst [vmem:[%s172 + $0x10] sm:$0xff] %v446
      %511 = vst [vmem:[%s172 + $0x18] sm:$0xff] %v447
      %512 = vst [vmem:[%s172 + $0x20] sm:$0xff] %v448
      %513 = vst [vmem:[%s172 + $0x28] sm:$0xff] %v449
      %514 = vst [vmem:[%s172 + $0x30] sm:$0xff] %v450
      %515 = vst [vmem:[%s172 + $0x38] sm:$0xff] %v451
      %516 = vst [vmem:[%s172 + $0x40] sm:$0xff] %v452
      %517 = vst [vmem:[%s172 + $0x48] sm:$0xff] %v453
      %518 = vst [vmem:[%s172 + $0x50] sm:$0xff] %v454
      %519 = vst [vmem:[%s172 + $0x58] sm:$0xff] %v455
      %520 = vst [vmem:[%s172 + $0x60] sm:$0xff] %v456
      %521 = vst [vmem:[%s172 + $0x68] sm:$0xff] %v457
      %522 = vst [vmem:[%s172 + $0x70] sm:$0xff] %v458
      %523 = vst [vmem:[%s172 + $0x78] sm:$0xff] %v459
      %524 = vst [vmem:[%s172 + $0x80] sm:$0xff] %v460
      %525 = vst [vmem:[%s172 + $0x88] sm:$0xff] %v461
      %526 = vst [vmem:[%s172 + $0x90] sm:$0xff] %v462
      %527 = vst [vmem:[%s172 + $0x98] sm:$0xff] %v463
      %528 = vst [vmem:[%s172 + $0xa0] sm:$0xff] %v464
      %529 = vst [vmem:[%s172 + $0xa8] sm:$0xff] %v465
      %530 = vst [vmem:[%s172 + $0xb0] sm:$0xff] %v466
      %531 = vst [vmem:[%s172 + $0xb8] sm:$0xff] %v467
      %532 = vst [vmem:[%s172 + $0xc0] sm:$0xff] %v468
      %533 = vst [vmem:[%s172 + $0xc8] sm:$0xff] %v469
      %534 = vst [vmem:[%s172 + $0xd0] sm:$0xff] %v470
      %535 = vst [vmem:[%s172 + $0xd8] sm:$0xff] %v471
      %536 = vst [vmem:[%s172 + $0xe0] sm:$0xff] %v472
      %537 = vst [vmem:[%s172 + $0xe8] sm:$0xff] %v473
      %538 = vst [vmem:[%s172 + $0xf0] sm:$0xff] %v474
      %539 = vst [vmem:[%s172 + $0xf8] sm:$0xff] %v475
      %540 = vst [vmem:[%s172 + $0x100] sm:$0xff] %v476
      %541 = vst [vmem:[%s172 + $0x108] sm:$0xff] %v477
      %542 = vst [vmem:[%s172 + $0x110] sm:$0xff] %v478
      %543 = vst [vmem:[%s172 + $0x118] sm:$0xff] %v479
      %544 = vst [vmem:[%s172 + $0x120] sm:$0xff] %v480
      %545 = vst [vmem:[%s172 + $0x128] sm:$0xff] %v481
      %546 = vst [vmem:[%s172 + $0x130] sm:$0xff] %v482
      %547 = vst [vmem:[%s172 + $0x138] sm:$0xff] %v483
      %548 = vst [vmem:[%s172 + $0x140] sm:$0xff] %v484
      %549 = vst [vmem:[%s172 + $0x148] sm:$0xff] %v485
      %550 = vst [vmem:[%s172 + $0x150] sm:$0xff] %v486
      %551 = vst [vmem:[%s172 + $0x158] sm:$0xff] %v487
      %552 = vst [vmem:[%s172 + $0x160] sm:$0xff] %v488
      %553 = vst [vmem:[%s172 + $0x168] sm:$0xff] %v489
      %554 = vst [vmem:[%s172 + $0x170] sm:$0xff] %v490
      %555 = vst [vmem:[%s172 + $0x178] sm:$0xff] %v491
      %556 = vst [vmem:[%s172 + $0x180] sm:$0xff] %v492
      %557 = vst [vmem:[%s172 + $0x188] sm:$0xff] %v493
      %558 = vst [vmem:[%s172 + $0x190] sm:$0xff] %v494
      %559 = vst [vmem:[%s172 + $0x198] sm:$0xff] %v495
      %560 = vst [vmem:[%s172 + $0x1a0] sm:$0xff] %v496
      %561 = vst [vmem:[%s172 + $0x1a8] sm:$0xff] %v497
      %562 = vst [vmem:[%s172 + $0x1b0] sm:$0xff] %v498
      %563 = vst [vmem:[%s172 + $0x1b8] sm:$0xff] %v499
      %564 = vst [vmem:[%s172 + $0x1c0] sm:$0xff] %v500
      %565 = vst [vmem:[%s172 + $0x1c8] sm:$0xff] %v501
      %566 = vst [vmem:[%s172 + $0x1d0] sm:$0xff] %v502
      %567 = vst [vmem:[%s172 + $0x1d8] sm:$0xff] %v503
      %568 = vst [vmem:[%s172 + $0x1e0] sm:$0xff] %v504
      %569 = vst [vmem:[%s172 + $0x1e8] sm:$0xff] %v505
      %570 = vst [vmem:[%s172 + $0x1f0] sm:$0xff] %v506
      %571 = vst [vmem:[%s172 + $0x1f8] sm:$0xff] %v507
      %s572 = smul.u32 64, %s14
      %p573 = scmp.lt.s32.totalorder %s572, 127
      %s574 = scalar_select %p573, %s572, 127
      %s575 = smul.addr %s574, 8
      %s576 = scalar_lea.vmem %s3, %s575
      // Predicated region
      $region33: #{double_conv_forward.7} parent=31 // pred_check
        %p577 = pneg %p100
      $region34: #{double_conv_forward.7} parent=31 // pred_check_branch
        %579 = sbr.rel (%p577) target = $region36
      $region35: #{double_conv_forward.7} parent=31 // pred_region
        %s580 = smul.u32 64, %s14
      $region36: #{double_conv_forward.7} parent=31 // pred_fallthru
        _
    $region32: #{double_conv_forward.7} parent=5 // pred_fallthru
      _
    %p581 = scmp.le.s32.totalorder 2, %s9
    // Predicated region
    $region37: #{double_conv_forward.7} parent=5 // pred_check
      %p582 = pneg %p581
    $region38: #{double_conv_forward.7} parent=5 // pred_check_branch
      %584 = sbr.rel (%p582) target = $region40
    $region39: #{double_conv_forward.7} parent=5 // pred_region
      %s585 = ssub.s32 %s9, 2
      // Predicated region
      $region41: #{double_conv_forward.7} parent=39 // pred_check
        %p586 = pneg %p106
      $region42: #{double_conv_forward.7} parent=39 // pred_check_branch
        %588 = sbr.rel (%p586) target = $region44
      $region43: #{double_conv_forward.7} parent=39 // pred_region
        %s589 = smul.u32 64, %s15
        %p590 = scmp.lt.s32.totalorder %s589, 127
        %s591 = scalar_select %p590, %s589, 127
        %s592 = smul.addr %s591, 8
        %s593 = scalar_lea.vmem %s3, %s592
      $region44: #{double_conv_forward.7} parent=39 // pred_fallthru
        _
    $region40: #{double_conv_forward.7} parent=5 // pred_fallthru
      _
  $region6: #{double_conv_forward.7} parent=0 // loop_footer
    %s13 = sadd.s32 1, %s9
  $region7: #{double_conv_forward.7} parent=0 // loop_footer_branch
    %8 = sbr.rel target = $region3
  $region8: #{double_conv_forward.7} parent=0 // loop_exit
    _

</llo_original>
